<compile_context>
chip_gen: v7x
topology: tpu7x:2x2x1
jax: 0.10.0
libtpu: 0.0.40
codegen_flags: <defaults>
</compile_context>

<pallas_src>
import functools

import numpy as np
import jax
import jax.numpy as jnp
from jax import lax
from jax.experimental import pallas as pl
from jax.experimental.pallas import tpu as pltpu


def _window_attention_kernel(x_ref, mask_ref, relbias_ref, wqkv_ref, *rest,
                             num_heads, wb, n_windows, add_qkv_bias):
    """One grid step == WB attention windows.

    x_ref       : (WB, N, C)      window tokens for this step
    mask_ref    : (nW, N, N)      ALL additive window masks (resident)
    relbias_ref : (H, N, N)       relative position bias (pre-gathered, resident)
    wqkv_ref    : (C, 3C)         fused qkv weight (scale folded into q columns)
    [bqkv_ref]  : (1, 3C)         fused qkv bias (only when add_qkv_bias)
    wp_ref      : (C, C)          output projection weight (transposed)
    bp_ref      : (1, C)          output projection bias
    o_ref       : (WB, N, C)
    """
    if add_qkv_bias:
        bqkv_ref, wp_ref, bp_ref, o_ref = rest
    else:
        wp_ref, bp_ref, o_ref = rest

    _, n, c = x_ref.shape
    dh = c // num_heads

    # ---- fused QKV projection: one lane-dense (WB*N, C) x (C, 3C) matmul ----
    x = x_ref[...].reshape(wb * n, c)
    qkv = jnp.dot(x, wqkv_ref[...], preferred_element_type=jnp.float32)   # (WB*N, 3C)
    if add_qkv_bias:
        qkv = qkv + bqkv_ref[...].astype(jnp.float32)

    relbias = relbias_ref[...].astype(jnp.float32)                        # (H, N, N)
    step = pl.program_id(0)

    win_outs = []
    for w in range(wb):                                   # static unroll, WB small
        # Window-mask index for this window (fastest-varying window contract).
        if wb % n_windows == 0:
            mask_w = mask_ref[w % n_windows].astype(jnp.float32)          # static idx
        else:
            widx = (step * wb + w) % n_windows                            # dynamic idx
            mask_w = mask_ref[widx].astype(jnp.float32)
        bias_w = relbias + mask_w[None]                                   # (H, N, N)

        qkv_w = qkv[w * n:(w + 1) * n, :]                                 # (N, 3C)
        q_w = qkv_w[:, 0:c]                                               # (N, C)
        k_wT = qkv_w[:, c:2 * c].T                                        # (C, N) one shared transpose
        v_w = qkv_w[:, 2 * c:3 * c]                                       # (N, C)

        head_outs = []
        for h in range(num_heads):                        # static unroll (small H)
            # TODO(synk): switch to lax.fori_loop + VMEM scratch for H >= ~8 to
            # bound vreg live ranges at realistic Swin-UNETR head counts.
            q_h = q_w[:, h * dh:(h + 1) * dh]                             # (N, Dh)
            k_hT = k_wT[h * dh:(h + 1) * dh, :]                           # (Dh, N)
            v_h = v_w[:, h * dh:(h + 1) * dh]                             # (N, Dh)

            s = jnp.dot(q_h, k_hT, preferred_element_type=jnp.float32)    # (N, N)
            s = s + bias_w[h]

            # Numerically stable softmax (matches torch.nn.Softmax semantics).
            s = s - jnp.max(s, axis=-1, keepdims=True)
            p = jnp.exp(s)
            denom = jnp.sum(p, axis=-1, keepdims=True)
            p = p * pl.reciprocal(denom, approx=False)                    # EUP slot

            # TODO(synk): attn_drop with p > 0 (module default 0.0 -> identity).
            head_outs.append(jnp.dot(p, v_h, preferred_element_type=jnp.float32))

        win_outs.append(jnp.concatenate(head_outs, axis=-1))              # (N, C)

    attn_out = jnp.concatenate(win_outs, axis=0)                          # (WB*N, C)

    # ---- fused output projection: one (WB*N, C) x (C, C) matmul ----
    out = jnp.dot(attn_out, wp_ref[...], preferred_element_type=jnp.float32)
    out = out + bp_ref[...].astype(jnp.float32)
    # TODO(synk): proj_drop with p > 0 (module default 0.0 -> identity).
    o_ref[...] = out.reshape(wb, n, c).astype(o_ref.dtype)


def relative_position_index_3d(window_size):
    """Mirror of the torch __init__ relative_position_index computation (3D)."""
    d, h, w = window_size
    coords = np.stack(
        np.meshgrid(np.arange(d), np.arange(h), np.arange(w), indexing="ij"))
    coords_flat = coords.reshape(3, -1)                         # (3, N)
    rel = coords_flat[:, :, None] - coords_flat[:, None, :]     # (3, N, N)
    rel = np.transpose(rel, (1, 2, 0)).astype(np.int64)         # (N, N, 3)
    rel[..., 0] += d - 1
    rel[..., 1] += h - 1
    rel[..., 2] += w - 1
    rel[..., 0] *= (2 * h - 1) * (2 * w - 1)
    rel[..., 1] *= (2 * w - 1)
    return rel.sum(-1)                                          # (N, N)


def window_attention(x, mask, params, *, num_heads, qkv_bias=False,
                     windows_per_step=None):
    """WindowAttention forward (dropout rates 0).

    x    : (B, N, C)   B = batch * num_windows (window index fastest varying)
    mask : (nW, N, N)  additive mask (or None)
    """
    b, n, c = x.shape
    h = num_heads
    dh = c // h
    scale = dh ** (-0.5)

    if mask is None:
        mask = jnp.zeros((1, n, n), dtype=jnp.float32)
    n_windows = mask.shape[0]

    # ---- pick windows-per-step (WB) ----------------------------------------
    # Prefer WB == n_windows (static mask indices, M = WB*N rows for the fused
    # projections), while keeping the grid length >= 2 so v7x megacore sharding
    # still balances both TensorCores.
    if windows_per_step is None:
        wb = 1
        for cand in range(min(n_windows, b), 0, -1):
            if b % cand == 0 and b // cand >= min(2, b):
                wb = cand
                break
    else:
        wb = windows_per_step
    assert b % wb == 0, (b, wb)
    grid = b // wb

    # ---- parameter re-layout / constant folding (one-time wrapper glue) ----
    # torch qkv weight is (3C, C); W.T columns are ordered [q(H,Dh), k, v].
    wqkv = jnp.asarray(params["qkv_weight"]).T                    # (C, 3C)
    wqkv = wqkv.at[:, 0:c].multiply(scale)                        # fold scale into q

    bqkv = None
    if qkv_bias:
        bq = params.get("qkv_bias", None)
        if bq is None:
            bq = jnp.zeros((3 * c,), x.dtype)
        bqkv = jnp.asarray(bq).at[0:c].multiply(scale).reshape(1, 3 * c)

    wp = jnp.asarray(params["proj_weight"]).T                     # (C, C)
    bp = jnp.asarray(params["proj_bias"]).reshape(1, c)           # (1, C)

    idx = params["rel_pos_index"][:n, :n].reshape(-1)
    rel_bias = params["rel_pos_bias_table"][idx].reshape(n, n, h)
    rel_bias = rel_bias.transpose(2, 0, 1)                        # (H, N, N)

    kernel = functools.partial(
        _window_attention_kernel, num_heads=h, wb=wb,
        n_windows=n_windows, add_qkv_bias=qkv_bias)

    in_specs = [
        pl.BlockSpec((wb, n, c), lambda i: (i, 0, 0)),            # x (tiled)
        pl.BlockSpec((n_windows, n, n), lambda i: (0, 0, 0)),     # all masks (resident)
        pl.BlockSpec((h, n, n), lambda i: (0, 0, 0)),             # rel bias (resident)
        pl.BlockSpec((c, 3 * c), lambda i: (0, 0)),               # Wqkv (resident)
    ]
    args = [x, mask, rel_bias, wqkv]
    if qkv_bias:
        in_specs.append(pl.BlockSpec((1, 3 * c), lambda i: (0, 0)))   # fused qkv bias
        args.append(bqkv)
    in_specs += [
        pl.BlockSpec((c, c), lambda i: (0, 0)),                   # Wproj (resident)
        pl.BlockSpec((1, c), lambda i: (0, 0)),                   # bproj (resident)
    ]
    args += [wp, bp]

    out = pl.pallas_call(
        kernel,
        out_shape=jax.ShapeDtypeStruct((b, n, c), x.dtype),
        grid_spec=pltpu.PrefetchScalarGridSpec(
            num_scalar_prefetch=0,
            grid=(grid,),
            in_specs=in_specs,
            out_specs=pl.BlockSpec((wb, n, c), lambda i: (i, 0, 0)),
        ),
        compiler_params=pltpu.CompilerParams(
            dimension_semantics=("parallel",),
        ),
    )(*args)
    return out


def _reference(x, mask, params, *, num_heads):
    """Pure-JAX mirror of the torch forward (high precision)."""
    b, n, c = x.shape
    h = num_heads
    dh = c // h
    scale = dh ** (-0.5)
    prec = lax.Precision.HIGHEST

    bqkv = params.get("qkv_bias", None)
    if bqkv is None:
        bqkv = jnp.zeros((3 * c,), x.dtype)
    qkv = jnp.dot(x, params["qkv_weight"].T, precision=prec) + bqkv
    qkv = qkv.reshape(b, n, 3, h, dh).transpose(2, 0, 3, 1, 4)        # (3, B, H, N, Dh)
    q, k, v = qkv[0] * scale, qkv[1], qkv[2]

    attn = jnp.einsum("bhnd,bhmd->bhnm", q, k, precision=prec)
    idx = params["rel_pos_index"][:n, :n].reshape(-1)
    rel = params["rel_pos_bias_table"][idx].reshape(n, n, h).transpose(2, 0, 1)
    attn = attn + rel[None]
    if mask is not None:
        nw = mask.shape[0]
        attn = attn.reshape(b // nw, nw, h, n, n) + mask[None, :, None]
        attn = attn.reshape(b, h, n, n)
    attn = jax.nn.softmax(attn, axis=-1)
    out = jnp.einsum("bhnm,bhmd->bhnd", attn, v, precision=prec)
    out = out.transpose(0, 2, 1, 3).reshape(b, n, c)
    out = jnp.dot(out, params["proj_weight"].T, precision=prec) + params["proj_bias"]
    return out


if __name__ == "__main__":
    # WindowAttention(dim=32, num_heads=2, window_size=(4,4,4), qkv_bias=False)
    dim = 32
    num_heads = 2
    window_size = (4, 4, 4)
    n = window_size[0] * window_size[1] * window_size[2]      # 64 tokens / window
    batch = 2
    n_windows = 4                                             # windows per image
    b = batch * n_windows                                     # total windows = 8

    key = jax.random.PRNGKey(0)
    kx, kmask, ktab, kqkv, kproj, kpb = jax.random.split(key, 6)

    x = jax.random.normal(kx, (b, n, dim), dtype=jnp.float32)
    # Shifted-window style additive mask: 0 (allowed) or -100 (blocked).
    mask = jnp.where(jax.random.uniform(kmask, (n_windows, n, n)) > 0.8,
                     -100.0, 0.0).astype(jnp.float32)

    table_len = ((2 * window_size[0] - 1) * (2 * window_size[1] - 1)
                 * (2 * window_size[2] - 1))
    params = {
        "qkv_weight": jax.random.normal(kqkv, (3 * dim, dim), jnp.float32)
                      * (dim ** -0.5),
        "proj_weight": jax.random.normal(kproj, (dim, dim), jnp.float32)
                       * (dim ** -0.5),
        "proj_bias": jax.random.normal(kpb, (dim,), jnp.float32) * 0.02,
        "rel_pos_bias_table": jax.random.normal(ktab, (table_len, num_heads),
                                                jnp.float32) * 0.02,
        "rel_pos_index": jnp.asarray(relative_position_index_3d(window_size),
                                     dtype=jnp.int32),
        # qkv_bias=False (module default) -> no "qkv_bias" entry.
    }

    out = window_attention(x, mask, params, num_heads=num_heads, qkv_bias=False)
    out = jax.block_until_ready(out)
    assert out.shape == (b, n, dim), out.shape

    ref = _reference(x, mask, params, num_heads=num_heads)
    if not jnp.allclose(out, ref.astype(out.dtype), atol=2e-3, rtol=2e-3):
        err = float(jnp.max(jnp.abs(out - ref)))
        raise AssertionError(f"Pallas output mismatch, max abs err = {err}")

    print("KERNEL_OK")
</pallas_src>

<mosaic_0001>
module attributes {stable_mosaic.version = 11 : i64} {
  func.func @_window_attention_kernel(%arg0: i32, %arg1: memref<4x64x32xf32, #tpu.memory_space<vmem>>, %arg2: memref<4x64x64xf32, #tpu.memory_space<vmem>>, %arg3: memref<2x64x64xf32, #tpu.memory_space<vmem>>, %arg4: memref<32x96xf32, #tpu.memory_space<vmem>>, %arg5: memref<32x32xf32, #tpu.memory_space<vmem>>, %arg6: memref<1x32xf32, #tpu.memory_space<vmem>>, %arg7: memref<4x64x32xf32, #tpu.memory_space<vmem>>) attributes {dimension_semantics = [#tpu.dimension_semantics<parallel>], iteration_bounds = array<i64: 2>, scalar_prefetch = 0 : i64, scratch_operands = 0 : i64, tpu.core_type = #tpu.core_type<tc>, window_params = [{transform_indices = @transform_0, window_bounds = array<i64: 4, 64, 32>}, {pipeline_mode = #tpu.pipeline_mode<synchronous>, transform_indices = @transform_1, window_bounds = array<i64: 4, 64, 64>}, {pipeline_mode = #tpu.pipeline_mode<synchronous>, transform_indices = @transform_2, window_bounds = array<i64: 2, 64, 64>}, {pipeline_mode = #tpu.pipeline_mode<synchronous>, transform_indices = @transform_3, window_bounds = array<i64: 32, 96>}, {pipeline_mode = #tpu.pipeline_mode<synchronous>, transform_indices = @transform_4, window_bounds = array<i64: 32, 32>}, {pipeline_mode = #tpu.pipeline_mode<synchronous>, transform_indices = @transform_5, window_bounds = array<i64: 1, 32>}, {transform_indices = @transform_6, window_bounds = array<i64: 4, 64, 32>}]} {
    %c0 = arith.constant 0 : index
    %c0_0 = arith.constant 0 : index
    %c0_1 = arith.constant 0 : index
    %0 = vector.load %arg1[%c0, %c0_0, %c0_1] : memref<4x64x32xf32, #tpu.memory_space<vmem>>, vector<4x64x32xf32>
    %1 = vector.shape_cast %0 : vector<4x64x32xf32> to vector<256x32xf32>
    %c0_2 = arith.constant 0 : index
    %c0_3 = arith.constant 0 : index
    %2 = vector.load %arg4[%c0_2, %c0_3] : memref<32x96xf32, #tpu.memory_space<vmem>>, vector<32x96xf32>
    %cst = arith.constant dense<0.000000e+00> : vector<256x96xf32>
    %3 = tpu.matmul %1, %2, %cst {dimension_numbers = #tpu.dot_dimension_numbers<[1], [0], [0], [1], [0, 0, 1, 1], [], []>} : vector<256x32xf32>, vector<32x96xf32>, vector<256x96xf32> -> vector<256x96xf32>
    %c0_4 = arith.constant 0 : index
    %c0_5 = arith.constant 0 : index
    %c0_6 = arith.constant 0 : index
    %4 = vector.load %arg3[%c0_4, %c0_5, %c0_6] : memref<2x64x64xf32, #tpu.memory_space<vmem>>, vector<2x64x64xf32>
    %c0_7 = arith.constant 0 : index
    %c0_8 = arith.constant 0 : index
    %c0_9 = arith.constant 0 : index
    %5 = vector.load %arg2[%c0_7, %c0_8, %c0_9] : memref<4x64x64xf32, #tpu.memory_space<vmem>>, vector<1x64x64xf32>
    %6 = vector.shape_cast %5 : vector<1x64x64xf32> to vector<64x64xf32>
    %7 = vector.shape_cast %6 : vector<64x64xf32> to vector<1x64x64xf32>
    %8 = vector.broadcast %7 : vector<1x64x64xf32> to vector<2x64x64xf32>
    %9 = arith.addf %4, %8 : vector<2x64x64xf32>
    %10 = vector.extract_strided_slice %3 {offsets = [0, 0], sizes = [64, 96], strides = [1, 1]} : vector<256x96xf32> to vector<64x96xf32>
    %11 = vector.extract_strided_slice %10 {offsets = [0, 0], sizes = [64, 32], strides = [1, 1]} : vector<64x96xf32> to vector<64x32xf32>
    %12 = vector.extract_strided_slice %10 {offsets = [0, 32], sizes = [64, 32], strides = [1, 1]} : vector<64x96xf32> to vector<64x32xf32>
    %13 = tpu.transpose %12, [1, 0] : vector<64x32xf32> -> vector<32x64xf32>
    %14 = vector.extract_strided_slice %10 {offsets = [0, 64], sizes = [64, 32], strides = [1, 1]} : vector<64x96xf32> to vector<64x32xf32>
    %15 = vector.extract_strided_slice %11 {offsets = [0, 0], sizes = [64, 16], strides = [1, 1]} : vector<64x32xf32> to vector<64x16xf32>
    %16 = vector.extract_strided_slice %13 {offsets = [0, 0], sizes = [16, 64], strides = [1, 1]} : vector<32x64xf32> to vector<16x64xf32>
    %17 = vector.extract_strided_slice %14 {offsets = [0, 0], sizes = [64, 16], strides = [1, 1]} : vector<64x32xf32> to vector<64x16xf32>
    %cst_10 = arith.constant dense<0.000000e+00> : vector<64x64xf32>
    %18 = tpu.matmul %15, %16, %cst_10 {dimension_numbers = #tpu.dot_dimension_numbers<[1], [0], [0], [1], [0, 0, 1, 1], [], []>} : vector<64x16xf32>, vector<16x64xf32>, vector<64x64xf32> -> vector<64x64xf32>
    %19 = vector.extract_strided_slice %9 {offsets = [0, 0, 0], sizes = [1, 64, 64], strides = [1, 1, 1]} : vector<2x64x64xf32> to vector<1x64x64xf32>
    %20 = vector.shape_cast %19 : vector<1x64x64xf32> to vector<64x64xf32>
    %21 = arith.addf %18, %20 : vector<64x64xf32>
    %cst_11 = arith.constant dense<0xFF800000> : vector<64xf32>
    %22 = vector.multi_reduction <maximumf>, %21, %cst_11 [1] : vector<64x64xf32> to vector<64xf32>
    %23 = vector.shape_cast %22 : vector<64xf32> to vector<64x1xf32>
    %24 = vector.broadcast %23 : vector<64x1xf32> to vector<64x64xf32>
    %25 = arith.subf %21, %24 : vector<64x64xf32>
    %26 = math.exp %25 : vector<64x64xf32>
    %cst_12 = arith.constant dense<0.000000e+00> : vector<64xf32>
    %27 = vector.multi_reduction <add>, %26, %cst_12 [1] : vector<64x64xf32> to vector<64xf32>
    %28 = vector.shape_cast %27 : vector<64xf32> to vector<64x1xf32>
    %29 = tpu.reciprocal %28 : vector<64x1xf32> -> vector<64x1xf32>
    %30 = vector.broadcast %29 : vector<64x1xf32> to vector<64x64xf32>
    %31 = arith.mulf %26, %30 : vector<64x64xf32>
    %cst_13 = arith.constant dense<0.000000e+00> : vector<64x16xf32>
    %32 = tpu.matmul %31, %17, %cst_13 {dimension_numbers = #tpu.dot_dimension_numbers<[1], [0], [0], [1], [0, 0, 1, 1], [], []>} : vector<64x64xf32>, vector<64x16xf32>, vector<64x16xf32> -> vector<64x16xf32>
    %33 = vector.extract_strided_slice %11 {offsets = [0, 16], sizes = [64, 16], strides = [1, 1]} : vector<64x32xf32> to vector<64x16xf32>
    %34 = vector.extract_strided_slice %13 {offsets = [16, 0], sizes = [16, 64], strides = [1, 1]} : vector<32x64xf32> to vector<16x64xf32>
    %35 = vector.extract_strided_slice %14 {offsets = [0, 16], sizes = [64, 16], strides = [1, 1]} : vector<64x32xf32> to vector<64x16xf32>
    %cst_14 = arith.constant dense<0.000000e+00> : vector<64x64xf32>
    %36 = tpu.matmul %33, %34, %cst_14 {dimension_numbers = #tpu.dot_dimension_numbers<[1], [0], [0], [1], [0, 0, 1, 1], [], []>} : vector<64x16xf32>, vector<16x64xf32>, vector<64x64xf32> -> vector<64x64xf32>
    %37 = vector.extract_strided_slice %9 {offsets = [1, 0, 0], sizes = [1, 64, 64], strides = [1, 1, 1]} : vector<2x64x64xf32> to vector<1x64x64xf32>
    %38 = vector.shape_cast %37 : vector<1x64x64xf32> to vector<64x64xf32>
    %39 = arith.addf %36, %38 : vector<64x64xf32>
    %cst_15 = arith.constant dense<0xFF800000> : vector<64xf32>
    %40 = vector.multi_reduction <maximumf>, %39, %cst_15 [1] : vector<64x64xf32> to vector<64xf32>
    %41 = vector.shape_cast %40 : vector<64xf32> to vector<64x1xf32>
    %42 = vector.broadcast %41 : vector<64x1xf32> to vector<64x64xf32>
    %43 = arith.subf %39, %42 : vector<64x64xf32>
    %44 = math.exp %43 : vector<64x64xf32>
    %cst_16 = arith.constant dense<0.000000e+00> : vector<64xf32>
    %45 = vector.multi_reduction <add>, %44, %cst_16 [1] : vector<64x64xf32> to vector<64xf32>
    %46 = vector.shape_cast %45 : vector<64xf32> to vector<64x1xf32>
    %47 = tpu.reciprocal %46 : vector<64x1xf32> -> vector<64x1xf32>
    %48 = vector.broadcast %47 : vector<64x1xf32> to vector<64x64xf32>
    %49 = arith.mulf %44, %48 : vector<64x64xf32>
    %cst_17 = arith.constant dense<0.000000e+00> : vector<64x16xf32>
    %50 = tpu.matmul %49, %35, %cst_17 {dimension_numbers = #tpu.dot_dimension_numbers<[1], [0], [0], [1], [0, 0, 1, 1], [], []>} : vector<64x64xf32>, vector<64x16xf32>, vector<64x16xf32> -> vector<64x16xf32>
    %51 = tpu.concatenate %32, %50 in 1 : vector<64x16xf32>, vector<64x16xf32> -> vector<64x32xf32>
    %c1 = arith.constant 1 : index
    %c0_18 = arith.constant 0 : index
    %c0_19 = arith.constant 0 : index
    %52 = vector.load %arg2[%c1, %c0_18, %c0_19] : memref<4x64x64xf32, #tpu.memory_space<vmem>>, vector<1x64x64xf32>
    %53 = vector.shape_cast %52 : vector<1x64x64xf32> to vector<64x64xf32>
    %54 = vector.shape_cast %53 : vector<64x64xf32> to vector<1x64x64xf32>
    %55 = vector.broadcast %54 : vector<1x64x64xf32> to vector<2x64x64xf32>
    %56 = arith.addf %4, %55 : vector<2x64x64xf32>
    %57 = vector.extract_strided_slice %3 {offsets = [64, 0], sizes = [64, 96], strides = [1, 1]} : vector<256x96xf32> to vector<64x96xf32>
    %58 = vector.extract_strided_slice %57 {offsets = [0, 0], sizes = [64, 32], strides = [1, 1]} : vector<64x96xf32> to vector<64x32xf32>
    %59 = vector.extract_strided_slice %57 {offsets = [0, 32], sizes = [64, 32], strides = [1, 1]} : vector<64x96xf32> to vector<64x32xf32>
    %60 = tpu.transpose %59, [1, 0] : vector<64x32xf32> -> vector<32x64xf32>
    %61 = vector.extract_strided_slice %57 {offsets = [0, 64], sizes = [64, 32], strides = [1, 1]} : vector<64x96xf32> to vector<64x32xf32>
    %62 = vector.extract_strided_slice %58 {offsets = [0, 0], sizes = [64, 16], strides = [1, 1]} : vector<64x32xf32> to vector<64x16xf32>
    %63 = vector.extract_strided_slice %60 {offsets = [0, 0], sizes = [16, 64], strides = [1, 1]} : vector<32x64xf32> to vector<16x64xf32>
    %64 = vector.extract_strided_slice %61 {offsets = [0, 0], sizes = [64, 16], strides = [1, 1]} : vector<64x32xf32> to vector<64x16xf32>
    %cst_20 = arith.constant dense<0.000000e+00> : vector<64x64xf32>
    %65 = tpu.matmul %62, %63, %cst_20 {dimension_numbers = #tpu.dot_dimension_numbers<[1], [0], [0], [1], [0, 0, 1, 1], [], []>} : vector<64x16xf32>, vector<16x64xf32>, vector<64x64xf32> -> vector<64x64xf32>
    %66 = vector.extract_strided_slice %56 {offsets = [0, 0, 0], sizes = [1, 64, 64], strides = [1, 1, 1]} : vector<2x64x64xf32> to vector<1x64x64xf32>
    %67 = vector.shape_cast %66 : vector<1x64x64xf32> to vector<64x64xf32>
    %68 = arith.addf %65, %67 : vector<64x64xf32>
    %cst_21 = arith.constant dense<0xFF800000> : vector<64xf32>
    %69 = vector.multi_reduction <maximumf>, %68, %cst_21 [1] : vector<64x64xf32> to vector<64xf32>
    %70 = vector.shape_cast %69 : vector<64xf32> to vector<64x1xf32>
    %71 = vector.broadcast %70 : vector<64x1xf32> to vector<64x64xf32>
    %72 = arith.subf %68, %71 : vector<64x64xf32>
    %73 = math.exp %72 : vector<64x64xf32>
    %cst_22 = arith.constant dense<0.000000e+00> : vector<64xf32>
    %74 = vector.multi_reduction <add>, %73, %cst_22 [1] : vector<64x64xf32> to vector<64xf32>
    %75 = vector.shape_cast %74 : vector<64xf32> to vector<64x1xf32>
    %76 = tpu.reciprocal %75 : vector<64x1xf32> -> vector<64x1xf32>
    %77 = vector.broadcast %76 : vector<64x1xf32> to vector<64x64xf32>
    %78 = arith.mulf %73, %77 : vector<64x64xf32>
    %cst_23 = arith.constant dense<0.000000e+00> : vector<64x16xf32>
    %79 = tpu.matmul %78, %64, %cst_23 {dimension_numbers = #tpu.dot_dimension_numbers<[1], [0], [0], [1], [0, 0, 1, 1], [], []>} : vector<64x64xf32>, vector<64x16xf32>, vector<64x16xf32> -> vector<64x16xf32>
    %80 = vector.extract_strided_slice %58 {offsets = [0, 16], sizes = [64, 16], strides = [1, 1]} : vector<64x32xf32> to vector<64x16xf32>
    %81 = vector.extract_strided_slice %60 {offsets = [16, 0], sizes = [16, 64], strides = [1, 1]} : vector<32x64xf32> to vector<16x64xf32>
    %82 = vector.extract_strided_slice %61 {offsets = [0, 16], sizes = [64, 16], strides = [1, 1]} : vector<64x32xf32> to vector<64x16xf32>
    %cst_24 = arith.constant dense<0.000000e+00> : vector<64x64xf32>
    %83 = tpu.matmul %80, %81, %cst_24 {dimension_numbers = #tpu.dot_dimension_numbers<[1], [0], [0], [1], [0, 0, 1, 1], [], []>} : vector<64x16xf32>, vector<16x64xf32>, vector<64x64xf32> -> vector<64x64xf32>
    %84 = vector.extract_strided_slice %56 {offsets = [1, 0, 0], sizes = [1, 64, 64], strides = [1, 1, 1]} : vector<2x64x64xf32> to vector<1x64x64xf32>
    %85 = vector.shape_cast %84 : vector<1x64x64xf32> to vector<64x64xf32>
    %86 = arith.addf %83, %85 : vector<64x64xf32>
    %cst_25 = arith.constant dense<0xFF800000> : vector<64xf32>
    %87 = vector.multi_reduction <maximumf>, %86, %cst_25 [1] : vector<64x64xf32> to vector<64xf32>
    %88 = vector.shape_cast %87 : vector<64xf32> to vector<64x1xf32>
    %89 = vector.broadcast %88 : vector<64x1xf32> to vector<64x64xf32>
    %90 = arith.subf %86, %89 : vector<64x64xf32>
    %91 = math.exp %90 : vector<64x64xf32>
    %cst_26 = arith.constant dense<0.000000e+00> : vector<64xf32>
    %92 = vector.multi_reduction <add>, %91, %cst_26 [1] : vector<64x64xf32> to vector<64xf32>
    %93 = vector.shape_cast %92 : vector<64xf32> to vector<64x1xf32>
    %94 = tpu.reciprocal %93 : vector<64x1xf32> -> vector<64x1xf32>
    %95 = vector.broadcast %94 : vector<64x1xf32> to vector<64x64xf32>
    %96 = arith.mulf %91, %95 : vector<64x64xf32>
    %cst_27 = arith.constant dense<0.000000e+00> : vector<64x16xf32>
    %97 = tpu.matmul %96, %82, %cst_27 {dimension_numbers = #tpu.dot_dimension_numbers<[1], [0], [0], [1], [0, 0, 1, 1], [], []>} : vector<64x64xf32>, vector<64x16xf32>, vector<64x16xf32> -> vector<64x16xf32>
    %98 = tpu.concatenate %79, %97 in 1 : vector<64x16xf32>, vector<64x16xf32> -> vector<64x32xf32>
    %c2 = arith.constant 2 : index
    %c0_28 = arith.constant 0 : index
    %c0_29 = arith.constant 0 : index
    %99 = vector.load %arg2[%c2, %c0_28, %c0_29] : memref<4x64x64xf32, #tpu.memory_space<vmem>>, vector<1x64x64xf32>
    %100 = vector.shape_cast %99 : vector<1x64x64xf32> to vector<64x64xf32>
    %101 = vector.shape_cast %100 : vector<64x64xf32> to vector<1x64x64xf32>
    %102 = vector.broadcast %101 : vector<1x64x64xf32> to vector<2x64x64xf32>
    %103 = arith.addf %4, %102 : vector<2x64x64xf32>
    %104 = vector.extract_strided_slice %3 {offsets = [128, 0], sizes = [64, 96], strides = [1, 1]} : vector<256x96xf32> to vector<64x96xf32>
    %105 = vector.extract_strided_slice %104 {offsets = [0, 0], sizes = [64, 32], strides = [1, 1]} : vector<64x96xf32> to vector<64x32xf32>
    %106 = vector.extract_strided_slice %104 {offsets = [0, 32], sizes = [64, 32], strides = [1, 1]} : vector<64x96xf32> to vector<64x32xf32>
    %107 = tpu.transpose %106, [1, 0] : vector<64x32xf32> -> vector<32x64xf32>
    %108 = vector.extract_strided_slice %104 {offsets = [0, 64], sizes = [64, 32], strides = [1, 1]} : vector<64x96xf32> to vector<64x32xf32>
    %109 = vector.extract_strided_slice %105 {offsets = [0, 0], sizes = [64, 16], strides = [1, 1]} : vector<64x32xf32> to vector<64x16xf32>
    %110 = vector.extract_strided_slice %107 {offsets = [0, 0], sizes = [16, 64], strides = [1, 1]} : vector<32x64xf32> to vector<16x64xf32>
    %111 = vector.extract_strided_slice %108 {offsets = [0, 0], sizes = [64, 16], strides = [1, 1]} : vector<64x32xf32> to vector<64x16xf32>
    %cst_30 = arith.constant dense<0.000000e+00> : vector<64x64xf32>
    %112 = tpu.matmul %109, %110, %cst_30 {dimension_numbers = #tpu.dot_dimension_numbers<[1], [0], [0], [1], [0, 0, 1, 1], [], []>} : vector<64x16xf32>, vector<16x64xf32>, vector<64x64xf32> -> vector<64x64xf32>
    %113 = vector.extract_strided_slice %103 {offsets = [0, 0, 0], sizes = [1, 64, 64], strides = [1, 1, 1]} : vector<2x64x64xf32> to vector<1x64x64xf32>
    %114 = vector.shape_cast %113 : vector<1x64x64xf32> to vector<64x64xf32>
    %115 = arith.addf %112, %114 : vector<64x64xf32>
    %cst_31 = arith.constant dense<0xFF800000> : vector<64xf32>
    %116 = vector.multi_reduction <maximumf>, %115, %cst_31 [1] : vector<64x64xf32> to vector<64xf32>
    %117 = vector.shape_cast %116 : vector<64xf32> to vector<64x1xf32>
    %118 = vector.broadcast %117 : vector<64x1xf32> to vector<64x64xf32>
    %119 = arith.subf %115, %118 : vector<64x64xf32>
    %120 = math.exp %119 : vector<64x64xf32>
    %cst_32 = arith.constant dense<0.000000e+00> : vector<64xf32>
    %121 = vector.multi_reduction <add>, %120, %cst_32 [1] : vector<64x64xf32> to vector<64xf32>
    %122 = vector.shape_cast %121 : vector<64xf32> to vector<64x1xf32>
    %123 = tpu.reciprocal %122 : vector<64x1xf32> -> vector<64x1xf32>
    %124 = vector.broadcast %123 : vector<64x1xf32> to vector<64x64xf32>
    %125 = arith.mulf %120, %124 : vector<64x64xf32>
    %cst_33 = arith.constant dense<0.000000e+00> : vector<64x16xf32>
    %126 = tpu.matmul %125, %111, %cst_33 {dimension_numbers = #tpu.dot_dimension_numbers<[1], [0], [0], [1], [0, 0, 1, 1], [], []>} : vector<64x64xf32>, vector<64x16xf32>, vector<64x16xf32> -> vector<64x16xf32>
    %127 = vector.extract_strided_slice %105 {offsets = [0, 16], sizes = [64, 16], strides = [1, 1]} : vector<64x32xf32> to vector<64x16xf32>
    %128 = vector.extract_strided_slice %107 {offsets = [16, 0], sizes = [16, 64], strides = [1, 1]} : vector<32x64xf32> to vector<16x64xf32>
    %129 = vector.extract_strided_slice %108 {offsets = [0, 16], sizes = [64, 16], strides = [1, 1]} : vector<64x32xf32> to vector<64x16xf32>
    %cst_34 = arith.constant dense<0.000000e+00> : vector<64x64xf32>
    %130 = tpu.matmul %127, %128, %cst_34 {dimension_numbers = #tpu.dot_dimension_numbers<[1], [0], [0], [1], [0, 0, 1, 1], [], []>} : vector<64x16xf32>, vector<16x64xf32>, vector<64x64xf32> -> vector<64x64xf32>
    %131 = vector.extract_strided_slice %103 {offsets = [1, 0, 0], sizes = [1, 64, 64], strides = [1, 1, 1]} : vector<2x64x64xf32> to vector<1x64x64xf32>
    %132 = vector.shape_cast %131 : vector<1x64x64xf32> to vector<64x64xf32>
    %133 = arith.addf %130, %132 : vector<64x64xf32>
    %cst_35 = arith.constant dense<0xFF800000> : vector<64xf32>
    %134 = vector.multi_reduction <maximumf>, %133, %cst_35 [1] : vector<64x64xf32> to vector<64xf32>
    %135 = vector.shape_cast %134 : vector<64xf32> to vector<64x1xf32>
    %136 = vector.broadcast %135 : vector<64x1xf32> to vector<64x64xf32>
    %137 = arith.subf %133, %136 : vector<64x64xf32>
    %138 = math.exp %137 : vector<64x64xf32>
    %cst_36 = arith.constant dense<0.000000e+00> : vector<64xf32>
    %139 = vector.multi_reduction <add>, %138, %cst_36 [1] : vector<64x64xf32> to vector<64xf32>
    %140 = vector.shape_cast %139 : vector<64xf32> to vector<64x1xf32>
    %141 = tpu.reciprocal %140 : vector<64x1xf32> -> vector<64x1xf32>
    %142 = vector.broadcast %141 : vector<64x1xf32> to vector<64x64xf32>
    %143 = arith.mulf %138, %142 : vector<64x64xf32>
    %cst_37 = arith.constant dense<0.000000e+00> : vector<64x16xf32>
    %144 = tpu.matmul %143, %129, %cst_37 {dimension_numbers = #tpu.dot_dimension_numbers<[1], [0], [0], [1], [0, 0, 1, 1], [], []>} : vector<64x64xf32>, vector<64x16xf32>, vector<64x16xf32> -> vector<64x16xf32>
    %145 = tpu.concatenate %126, %144 in 1 : vector<64x16xf32>, vector<64x16xf32> -> vector<64x32xf32>
    %c3 = arith.constant 3 : index
    %c0_38 = arith.constant 0 : index
    %c0_39 = arith.constant 0 : index
    %146 = vector.load %arg2[%c3, %c0_38, %c0_39] : memref<4x64x64xf32, #tpu.memory_space<vmem>>, vector<1x64x64xf32>
    %147 = vector.shape_cast %146 : vector<1x64x64xf32> to vector<64x64xf32>
    %148 = vector.shape_cast %147 : vector<64x64xf32> to vector<1x64x64xf32>
    %149 = vector.broadcast %148 : vector<1x64x64xf32> to vector<2x64x64xf32>
    %150 = arith.addf %4, %149 : vector<2x64x64xf32>
    %151 = vector.extract_strided_slice %3 {offsets = [192, 0], sizes = [64, 96], strides = [1, 1]} : vector<256x96xf32> to vector<64x96xf32>
    %152 = vector.extract_strided_slice %151 {offsets = [0, 0], sizes = [64, 32], strides = [1, 1]} : vector<64x96xf32> to vector<64x32xf32>
    %153 = vector.extract_strided_slice %151 {offsets = [0, 32], sizes = [64, 32], strides = [1, 1]} : vector<64x96xf32> to vector<64x32xf32>
    %154 = tpu.transpose %153, [1, 0] : vector<64x32xf32> -> vector<32x64xf32>
    %155 = vector.extract_strided_slice %151 {offsets = [0, 64], sizes = [64, 32], strides = [1, 1]} : vector<64x96xf32> to vector<64x32xf32>
    %156 = vector.extract_strided_slice %152 {offsets = [0, 0], sizes = [64, 16], strides = [1, 1]} : vector<64x32xf32> to vector<64x16xf32>
    %157 = vector.extract_strided_slice %154 {offsets = [0, 0], sizes = [16, 64], strides = [1, 1]} : vector<32x64xf32> to vector<16x64xf32>
    %158 = vector.extract_strided_slice %155 {offsets = [0, 0], sizes = [64, 16], strides = [1, 1]} : vector<64x32xf32> to vector<64x16xf32>
    %cst_40 = arith.constant dense<0.000000e+00> : vector<64x64xf32>
    %159 = tpu.matmul %156, %157, %cst_40 {dimension_numbers = #tpu.dot_dimension_numbers<[1], [0], [0], [1], [0, 0, 1, 1], [], []>} : vector<64x16xf32>, vector<16x64xf32>, vector<64x64xf32> -> vector<64x64xf32>
    %160 = vector.extract_strided_slice %150 {offsets = [0, 0, 0], sizes = [1, 64, 64], strides = [1, 1, 1]} : vector<2x64x64xf32> to vector<1x64x64xf32>
    %161 = vector.shape_cast %160 : vector<1x64x64xf32> to vector<64x64xf32>
    %162 = arith.addf %159, %161 : vector<64x64xf32>
    %cst_41 = arith.constant dense<0xFF800000> : vector<64xf32>
    %163 = vector.multi_reduction <maximumf>, %162, %cst_41 [1] : vector<64x64xf32> to vector<64xf32>
    %164 = vector.shape_cast %163 : vector<64xf32> to vector<64x1xf32>
    %165 = vector.broadcast %164 : vector<64x1xf32> to vector<64x64xf32>
    %166 = arith.subf %162, %165 : vector<64x64xf32>
    %167 = math.exp %166 : vector<64x64xf32>
    %cst_42 = arith.constant dense<0.000000e+00> : vector<64xf32>
    %168 = vector.multi_reduction <add>, %167, %cst_42 [1] : vector<64x64xf32> to vector<64xf32>
    %169 = vector.shape_cast %168 : vector<64xf32> to vector<64x1xf32>
    %170 = tpu.reciprocal %169 : vector<64x1xf32> -> vector<64x1xf32>
    %171 = vector.broadcast %170 : vector<64x1xf32> to vector<64x64xf32>
    %172 = arith.mulf %167, %171 : vector<64x64xf32>
    %cst_43 = arith.constant dense<0.000000e+00> : vector<64x16xf32>
    %173 = tpu.matmul %172, %158, %cst_43 {dimension_numbers = #tpu.dot_dimension_numbers<[1], [0], [0], [1], [0, 0, 1, 1], [], []>} : vector<64x64xf32>, vector<64x16xf32>, vector<64x16xf32> -> vector<64x16xf32>
    %174 = vector.extract_strided_slice %152 {offsets = [0, 16], sizes = [64, 16], strides = [1, 1]} : vector<64x32xf32> to vector<64x16xf32>
    %175 = vector.extract_strided_slice %154 {offsets = [16, 0], sizes = [16, 64], strides = [1, 1]} : vector<32x64xf32> to vector<16x64xf32>
    %176 = vector.extract_strided_slice %155 {offsets = [0, 16], sizes = [64, 16], strides = [1, 1]} : vector<64x32xf32> to vector<64x16xf32>
    %cst_44 = arith.constant dense<0.000000e+00> : vector<64x64xf32>
    %177 = tpu.matmul %174, %175, %cst_44 {dimension_numbers = #tpu.dot_dimension_numbers<[1], [0], [0], [1], [0, 0, 1, 1], [], []>} : vector<64x16xf32>, vector<16x64xf32>, vector<64x64xf32> -> vector<64x64xf32>
    %178 = vector.extract_strided_slice %150 {offsets = [1, 0, 0], sizes = [1, 64, 64], strides = [1, 1, 1]} : vector<2x64x64xf32> to vector<1x64x64xf32>
    %179 = vector.shape_cast %178 : vector<1x64x64xf32> to vector<64x64xf32>
    %180 = arith.addf %177, %179 : vector<64x64xf32>
    %cst_45 = arith.constant dense<0xFF800000> : vector<64xf32>
    %181 = vector.multi_reduction <maximumf>, %180, %cst_45 [1] : vector<64x64xf32> to vector<64xf32>
    %182 = vector.shape_cast %181 : vector<64xf32> to vector<64x1xf32>
    %183 = vector.broadcast %182 : vector<64x1xf32> to vector<64x64xf32>
    %184 = arith.subf %180, %183 : vector<64x64xf32>
    %185 = math.exp %184 : vector<64x64xf32>
    %cst_46 = arith.constant dense<0.000000e+00> : vector<64xf32>
    %186 = vector.multi_reduction <add>, %185, %cst_46 [1] : vector<64x64xf32> to vector<64xf32>
    %187 = vector.shape_cast %186 : vector<64xf32> to vector<64x1xf32>
    %188 = tpu.reciprocal %187 : vector<64x1xf32> -> vector<64x1xf32>
    %189 = vector.broadcast %188 : vector<64x1xf32> to vector<64x64xf32>
    %190 = arith.mulf %185, %189 : vector<64x64xf32>
    %cst_47 = arith.constant dense<0.000000e+00> : vector<64x16xf32>
    %191 = tpu.matmul %190, %176, %cst_47 {dimension_numbers = #tpu.dot_dimension_numbers<[1], [0], [0], [1], [0, 0, 1, 1], [], []>} : vector<64x64xf32>, vector<64x16xf32>, vector<64x16xf32> -> vector<64x16xf32>
    %192 = tpu.concatenate %173, %191 in 1 : vector<64x16xf32>, vector<64x16xf32> -> vector<64x32xf32>
    %193 = tpu.concatenate %51, %98, %145, %192 in 0 : vector<64x32xf32>, vector<64x32xf32>, vector<64x32xf32>, vector<64x32xf32> -> vector<256x32xf32>
    %c0_48 = arith.constant 0 : index
    %c0_49 = arith.constant 0 : index
    %194 = vector.load %arg5[%c0_48, %c0_49] : memref<32x32xf32, #tpu.memory_space<vmem>>, vector<32x32xf32>
    %cst_50 = arith.constant dense<0.000000e+00> : vector<256x32xf32>
    %195 = tpu.matmul %193, %194, %cst_50 {dimension_numbers = #tpu.dot_dimension_numbers<[1], [0], [0], [1], [0, 0, 1, 1], [], []>} : vector<256x32xf32>, vector<32x32xf32>, vector<256x32xf32> -> vector<256x32xf32>
    %c0_51 = arith.constant 0 : index
    %c0_52 = arith.constant 0 : index
    %196 = vector.load %arg6[%c0_51, %c0_52] : memref<1x32xf32, #tpu.memory_space<vmem>>, vector<1x32xf32>
    %197 = vector.broadcast %196 : vector<1x32xf32> to vector<256x32xf32>
    %198 = arith.addf %195, %197 : vector<256x32xf32>
    %199 = vector.shape_cast %198 : vector<256x32xf32> to vector<4x64x32xf32>
    %c0_53 = arith.constant 0 : index
    %c0_54 = arith.constant 0 : index
    %c0_55 = arith.constant 0 : index
    %200 = vector.load %arg7[%c0_53, %c0_54, %c0_55] : memref<4x64x32xf32, #tpu.memory_space<vmem>>, vector<4x64x32xf32>
    tpu.vector_store %arg7[%c0_53, %c0_54, %c0_55], %199 {strides = array<i32>} : memref<4x64x32xf32, #tpu.memory_space<vmem>>, vector<4x64x32xf32>,
    return
  }
  func.func @transform_0(%arg0: i32) -> (i32, i32, i32) {
    %c0_i32 = arith.constant 0 : i32
    %c0_i32_0 = arith.constant 0 : i32
    %c0_i32_1 = arith.constant 0 : i32
    return %arg0, %c0_i32, %c0_i32_0 : i32, i32, i32
  }
  func.func @transform_1(%arg0: i32) -> (i32, i32, i32) {
    %c0_i32 = arith.constant 0 : i32
    %c0_i32_0 = arith.constant 0 : i32
    %c0_i32_1 = arith.constant 0 : i32
    %c0_i32_2 = arith.constant 0 : i32
    return %c0_i32, %c0_i32_0, %c0_i32_1 : i32, i32, i32
  }
  func.func @transform_2(%arg0: i32) -> (i32, i32, i32) {
    %c0_i32 = arith.constant 0 : i32
    %c0_i32_0 = arith.constant 0 : i32
    %c0_i32_1 = arith.constant 0 : i32
    %c0_i32_2 = arith.constant 0 : i32
    return %c0_i32, %c0_i32_0, %c0_i32_1 : i32, i32, i32
  }
  func.func @transform_3(%arg0: i32) -> (i32, i32) {
    %c0_i32 = arith.constant 0 : i32
    %c0_i32_0 = arith.constant 0 : i32
    %c0_i32_1 = arith.constant 0 : i32
    return %c0_i32, %c0_i32_0 : i32, i32
  }
  func.func @transform_4(%arg0: i32) -> (i32, i32) {
    %c0_i32 = arith.constant 0 : i32
    %c0_i32_0 = arith.constant 0 : i32
    %c0_i32_1 = arith.constant 0 : i32
    return %c0_i32, %c0_i32_0 : i32, i32
  }
  func.func @transform_5(%arg0: i32) -> (i32, i32) {
    %c0_i32 = arith.constant 0 : i32
    %c0_i32_0 = arith.constant 0 : i32
    %c0_i32_1 = arith.constant 0 : i32
    return %c0_i32, %c0_i32_0 : i32, i32
  }
  func.func @transform_6(%arg0: i32) -> (i32, i32, i32) {
    %c0_i32 = arith.constant 0 : i32
    %c0_i32_0 = arith.constant 0 : i32
    %c0_i32_1 = arith.constant 0 : i32
    return %arg0, %c0_i32, %c0_i32_0 : i32, i32, i32
  }
}

</mosaic_0001>

<llo_original>
// kernel: tpu_custom_call.1
$region0: #{tpu_custom_call.1}
  #allocation0 [shape = 'u32[]', space=smem, size = 0x4, offset = 0x4, fixed_abs, tag = 'smem constant byte address 0x4 - core index']
  #allocation1 [shape = 'u32[144,128]{1,0:T(1,128)}', space=vmem, size = 0x12000, scoped, tag = 'internal scratch']
  %s0 = inlined_call_operand.vmem [shape: f32[8,64,32], index: 0, kind: input, shape index: {}]
  %s1 = inlined_call_operand.vmem [shape: f32[4,64,64], index: 1, kind: input, shape index: {}]
  %s2 = inlined_call_operand.vmem [shape: f32[2,64,64], index: 2, kind: input, shape index: {}]
  %s3 = inlined_call_operand.vmem [shape: f32[32,96], index: 3, kind: input, shape index: {}]
  %s4 = inlined_call_operand.vmem [shape: f32[32,32], index: 4, kind: input, shape index: {}]
  %s5 = inlined_call_operand.vmem [shape: f32[1,32], index: 5, kind: input, shape index: {}]
  %s6 = inlined_call_operand.vmem [shape: f32[8,64,32], index: 6, kind: output, shape index: {}]
  %s7 = sld [smem:[#allocation0]]
  $region57: #{tpu_custom_call.1} parent=0
    _
  %s9 = ssub.s32 1, %s7
  %s10 = scalar_select 0, %s9, %s7
  loop: start=0, step=1, limit=4
  $region2: #{tpu_custom_call.1} parent=0 // loop_pre_header
    _
  $region3: #{tpu_custom_call.1} parent=0 // loop_header
    %s12 = sphi 0, %s16
    %p13 = scmp.ge.s32.totalorder %s12, 4
    %s22 = sphi 0, %s24
    %s25 = sphi 0, %s22
    %s26 = sphi 0, %s25
    %s42 = sphi 0, %s26
    %s46 = sphi 0, %s46
    %s48 = sphi 0, %s46
    %s49 = sphi 0, %s48
    %s63 = sphi 0, %s49
    %s67 = sphi 0, %s67
    %s69 = sphi 0, %s67
    %s70 = sphi 0, %s69
    %s84 = sphi 0, %s70
    %s88 = sphi 0, %s88
    %s90 = sphi 0, %s88
    %s91 = sphi 0, %s90
    %s105 = sphi 0, %s91
    %s109 = sphi 0, %s109
    %s111 = sphi 0, %s109
    %s112 = sphi 0, %s111
    %s126 = sphi 0, %s112
    %s130 = sphi 0, %s130
    %s132 = sphi 0, %s130
    %s133 = sphi 0, %s132
    %s147 = sphi 0, %s133
    %s153 = sphi 0, %s155
    %s156 = sphi 0, %s153
    %s157 = sphi 0, %s156
    %s173 = sphi 0, %s157
  $region4: #{tpu_custom_call.1} parent=0 // loop_header_branch
    %15 = sbr.rel (%p13) target = $region8
  $region5: #{tpu_custom_call.1} parent=0 // loop_body
    %s17 = ssub.s32 %s12, 1
    %s18 = ssub.s32 %s12, 2
    %s19 = sadd.s32 %s12, 1
    %s20 = ssub.s32 %s12, %s19
    %p21 = scmp.eq.s32.totalorder %s20, 0
    %s23 = sadd.s32 %s22, 1
    %s24 = scalar_select %p21, %s22, %s23
    %p27 = pneg %p21
    %p28 = scmp.eq.s32.totalorder %s12, 1
    %p29 = por %p27, %p28
    %p30 = scmp.ne.s32.totalorder %s22, %s25
    %p31 = scmp.eq.s32.totalorder %s12, 0
    %p32 = por %p30, %p31
    %p33 = scmp.ne.s32.totalorder %s22, %s25
    %p34 = scmp.eq.s32.totalorder %s17, 1
    %p35 = por %p33, %p34
    %p36 = scmp.ne.s32.totalorder %s25, %s26
    %p37 = scmp.eq.s32.totalorder %s17, 0
    %p38 = por %p36, %p37
    %p39 = scmp.ne.s32.totalorder %s25, %s26
    %p40 = scmp.eq.s32.totalorder %s18, 1
    %p41 = por %p39, %p40
    %p43 = scmp.ne.s32.totalorder %s26, %s42
    %p44 = scmp.eq.s32.totalorder %s18, 0
    %p45 = por %p43, %p44
    %s47 = sadd.s32 %s46, 1
    %p50 = scmp.eq.s32.totalorder %s12, 1
    %p51 = scmp.ne.s32.totalorder %s46, %s48
    %p52 = scmp.eq.s32.totalorder %s12, 0
    %p53 = por %p51, %p52
    %p54 = scmp.ne.s32.totalorder %s46, %s48
    %p55 = scmp.eq.s32.totalorder %s17, 1
    %p56 = por %p54, %p55
    %p57 = scmp.ne.s32.totalorder %s48, %s49
    %p58 = scmp.eq.s32.totalorder %s17, 0
    %p59 = por %p57, %p58
    %p60 = scmp.ne.s32.totalorder %s48, %s49
    %p61 = scmp.eq.s32.totalorder %s18, 1
    %p62 = por %p60, %p61
    %p64 = scmp.ne.s32.totalorder %s49, %s63
    %p65 = scmp.eq.s32.totalorder %s18, 0
    %p66 = por %p64, %p65
    %s68 = sadd.s32 %s67, 1
    %p71 = scmp.eq.s32.totalorder %s12, 1
    %p72 = scmp.ne.s32.totalorder %s67, %s69
    %p73 = scmp.eq.s32.totalorder %s12, 0
    %p74 = por %p72, %p73
    %p75 = scmp.ne.s32.totalorder %s67, %s69
    %p76 = scmp.eq.s32.totalorder %s17, 1
    %p77 = por %p75, %p76
    %p78 = scmp.ne.s32.totalorder %s69, %s70
    %p79 = scmp.eq.s32.totalorder %s17, 0
    %p80 = por %p78, %p79
    %p81 = scmp.ne.s32.totalorder %s69, %s70
    %p82 = scmp.eq.s32.totalorder %s18, 1
    %p83 = por %p81, %p82
    %p85 = scmp.ne.s32.totalorder %s70, %s84
    %p86 = scmp.eq.s32.totalorder %s18, 0
    %p87 = por %p85, %p86
    %s89 = sadd.s32 %s88, 1
    %p92 = scmp.eq.s32.totalorder %s12, 1
    %p93 = scmp.ne.s32.totalorder %s88, %s90
    %p94 = scmp.eq.s32.totalorder %s12, 0
    %p95 = por %p93, %p94
    %p96 = scmp.ne.s32.totalorder %s88, %s90
    %p97 = scmp.eq.s32.totalorder %s17, 1
    %p98 = por %p96, %p97
    %p99 = scmp.ne.s32.totalorder %s90, %s91
    %p100 = scmp.eq.s32.totalorder %s17, 0
    %p101 = por %p99, %p100
    %p102 = scmp.ne.s32.totalorder %s90, %s91
    %p103 = scmp.eq.s32.totalorder %s18, 1
    %p104 = por %p102, %p103
    %p106 = scmp.ne.s32.totalorder %s91, %s105
    %p107 = scmp.eq.s32.totalorder %s18, 0
    %p108 = por %p106, %p107
    %s110 = sadd.s32 %s109, 1
    %p113 = scmp.eq.s32.totalorder %s12, 1
    %p114 = scmp.ne.s32.totalorder %s109, %s111
    %p115 = scmp.eq.s32.totalorder %s12, 0
    %p116 = por %p114, %p115
    %p117 = scmp.ne.s32.totalorder %s109, %s111
    %p118 = scmp.eq.s32.totalorder %s17, 1
    %p119 = por %p117, %p118
    %p120 = scmp.ne.s32.totalorder %s111, %s112
    %p121 = scmp.eq.s32.totalorder %s17, 0
    %p122 = por %p120, %p121
    %p123 = scmp.ne.s32.totalorder %s111, %s112
    %p124 = scmp.eq.s32.totalorder %s18, 1
    %p125 = por %p123, %p124
    %p127 = scmp.ne.s32.totalorder %s112, %s126
    %p128 = scmp.eq.s32.totalorder %s18, 0
    %p129 = por %p127, %p128
    %s131 = sadd.s32 %s130, 1
    %p134 = scmp.eq.s32.totalorder %s12, 1
    %p135 = scmp.ne.s32.totalorder %s130, %s132
    %p136 = scmp.eq.s32.totalorder %s12, 0
    %p137 = por %p135, %p136
    %p138 = scmp.ne.s32.totalorder %s130, %s132
    %p139 = scmp.eq.s32.totalorder %s17, 1
    %p140 = por %p138, %p139
    %p141 = scmp.ne.s32.totalorder %s132, %s133
    %p142 = scmp.eq.s32.totalorder %s17, 0
    %p143 = por %p141, %p142
    %p144 = scmp.ne.s32.totalorder %s132, %s133
    %p145 = scmp.eq.s32.totalorder %s18, 1
    %p146 = por %p144, %p145
    %p148 = scmp.ne.s32.totalorder %s133, %s147
    %p149 = scmp.eq.s32.totalorder %s18, 0
    %p150 = por %p148, %p149
    %s151 = ssub.s32 %s12, %s19
    %p152 = scmp.eq.s32.totalorder %s151, 0
    %s154 = sadd.s32 %s153, 1
    %s155 = scalar_select %p152, %s153, %s154
    %p158 = pneg %p152
    %p159 = scmp.eq.s32.totalorder %s12, 1
    %p160 = por %p158, %p159
    %p161 = scmp.ne.s32.totalorder %s153, %s156
    %p162 = scmp.eq.s32.totalorder %s12, 0
    %p163 = por %p161, %p162
    %p164 = scmp.ne.s32.totalorder %s153, %s156
    %p165 = scmp.eq.s32.totalorder %s17, 1
    %p166 = por %p164, %p165
    %p167 = scmp.ne.s32.totalorder %s156, %s157
    %p168 = scmp.eq.s32.totalorder %s17, 0
    %p169 = por %p167, %p168
    %p170 = scmp.ne.s32.totalorder %s156, %s157
    %p171 = scmp.eq.s32.totalorder %s18, 1
    %p172 = por %p170, %p171
    %p174 = scmp.ne.s32.totalorder %s157, %s173
    %p175 = scmp.eq.s32.totalorder %s18, 0
    %p176 = por %p174, %p175
    %p177 = scmp.le.s32.totalorder 1, %s12
    %p178 = scmp.lt.s32.totalorder %s12, 3
    %p179 = pnand %p177, %p178
    %p180 = pneg %p179
    // Predicated region
    $region9: #{tpu_custom_call.1} parent=5 // pred_check
      _
    $region10: #{tpu_custom_call.1} parent=5 // pred_check_branch
      %182 = sbr.rel (%p179) target = $region12
    $region11: #{tpu_custom_call.1} parent=5 // pred_region
      %s183 = ssub.s32 %s12, 1
      // Predicated region
      $region13: #{tpu_custom_call.1} parent=11 // pred_check
        %p184 = pneg %p59
      $region14: #{tpu_custom_call.1} parent=11 // pred_check_branch
        %186 = sbr.rel (%p184) target = $region16
      $region15: #{tpu_custom_call.1} parent=11 // pred_region
        _
      $region16: #{tpu_custom_call.1} parent=11 // pred_fallthru
        _
      // Predicated region
      $region17: #{tpu_custom_call.1} parent=11 // pred_check
        %p187 = pneg %p80
      $region18: #{tpu_custom_call.1} parent=11 // pred_check_branch
        %189 = sbr.rel (%p187) target = $region20
      $region19: #{tpu_custom_call.1} parent=11 // pred_region
        _
      $region20: #{tpu_custom_call.1} parent=11 // pred_fallthru
        _
      // Predicated region
      $region21: #{tpu_custom_call.1} parent=11 // pred_check
        %p190 = pneg %p101
      $region22: #{tpu_custom_call.1} parent=11 // pred_check_branch
        %192 = sbr.rel (%p190) target = $region24
      $region23: #{tpu_custom_call.1} parent=11 // pred_region
        _
      $region24: #{tpu_custom_call.1} parent=11 // pred_fallthru
        _
      // Predicated region
      $region25: #{tpu_custom_call.1} parent=11 // pred_check
        %p193 = pneg %p122
      $region26: #{tpu_custom_call.1} parent=11 // pred_check_branch
        %195 = sbr.rel (%p193) target = $region28
      $region27: #{tpu_custom_call.1} parent=11 // pred_region
        _
      $region28: #{tpu_custom_call.1} parent=11 // pred_fallthru
        _
      // Predicated region
      $region29: #{tpu_custom_call.1} parent=11 // pred_check
        %p196 = pneg %p143
      $region30: #{tpu_custom_call.1} parent=11 // pred_check_branch
        %198 = sbr.rel (%p196) target = $region32
      $region31: #{tpu_custom_call.1} parent=11 // pred_region
        _
      $region32: #{tpu_custom_call.1} parent=11 // pred_fallthru
        _
    $region12: #{tpu_custom_call.1} parent=5 // pred_fallthru
      _
    %p199 = scmp.lt.s32.totalorder %s12, 2
    // Predicated region
    $region33: #{tpu_custom_call.1} parent=5 // pred_check
      %p200 = pneg %p199
    $region34: #{tpu_custom_call.1} parent=5 // pred_check_branch
      %202 = sbr.rel (%p200) target = $region36
    $region35: #{tpu_custom_call.1} parent=5 // pred_region
      // Predicated region
      $region37: #{tpu_custom_call.1} parent=35 // pred_check
        %p203 = pneg %p32
      $region38: #{tpu_custom_call.1} parent=35 // pred_check_branch
        %205 = sbr.rel (%p203) target = $region40
      $region39: #{tpu_custom_call.1} parent=35 // pred_region
        %s206 = smul.u32 4, %s12
        %p207 = scmp.lt.s32.totalorder %s206, 7
        %s208 = scalar_select %p207, %s206, 7
        %s209 = smul.addr %s208, 8
        %s210 = smul.addr %s209, 8
        %s211 = scalar_lea.vmem %s0, %s210
        %s212 = smul.u32 4, %s12
      $region40: #{tpu_custom_call.1} parent=35 // pred_fallthru
        _
    $region36: #{tpu_custom_call.1} parent=5 // pred_fallthru
      _
    %p213 = scmp.le.s32.totalorder 1, %s12
    %p214 = scmp.lt.s32.totalorder %s12, 3
    %p215 = pnand %p213, %p214
    %p216 = pneg %p215
    // Predicated region
    $region41: #{tpu_custom_call.1} parent=5 // pred_check
      _
    $region42: #{tpu_custom_call.1} parent=5 // pred_check_branch
      %218 = sbr.rel (%p215) target = $region44
    $region43: #{tpu_custom_call.1} parent=5 // pred_region
      %s219 = ssub.s32 %s12, 1
      %s220 = smul.u32 4, %s17
      %p221 = scmp.lt.s32.totalorder %s220, 7
      %s222 = scalar_select %p221, %s220, 7
      %s223 = smul.addr %s222, 8
      %s224 = smul.addr %s223, 8
      %s225 = scalar_lea.vmem %s0, %s224
      %p226 = pneg %p38
      %p227 = pneg %p35
      %p228 = pneg %p59
      %p229 = pneg %p56
      %p230 = pneg %p80
      %p231 = pneg %p77
      %p232 = pneg %p101
      %p233 = pneg %p98
      %p234 = pneg %p122
      %p235 = pneg %p119
      %p236 = pneg %p143
      %p237 = pneg %p140
      %p238 = pneg %p169
      %p239 = pneg %p166
      %s240 = smul.u32 4, %s17
      %p241 = scmp.lt.s32.totalorder %s240, 7
      %s242 = scalar_select %p241, %s240, 7
      %s243 = smul.addr %s242, 8
      %s244 = smul.addr %s243, 8
      %s245 = scalar_lea.vmem %s6, %s244
      %s246 = smul.u32 4, %s17
      %p247 = scmp.lt.s32.totalorder %s246, 7
      %s248 = scalar_select %p247, %s246, 7
      %s249 = smul.addr %s248, 8
      %s250 = smul.addr %s249, 8
      %s251 = scalar_lea.vmem %s0, %s250
      %s252 = smul.u32 4, %s17
      %s253 = smul.u32 4, %s17
      %p254 = scmp.lt.s32.totalorder %s253, 7
      %s255 = scalar_select %p254, %s253, 7
      %s256 = smul.addr %s255, 8
      %s257 = smul.addr %s256, 8
      %s258 = scalar_lea.vmem %s6, %s257
      %s259 = smul.u32 4, %s17
      %v260 = vld [vmem:[%s251] sm:$0xff]
      %v261 = vld [vmem:[%s251 + $0x8] sm:$0xff]
      %v262 = vld [vmem:[%s251 + $0x10] sm:$0xff]
      %v263 = vld [vmem:[%s251 + $0x18] sm:$0xff]
      %v264 = vld [vmem:[%s251 + $0x20] sm:$0xff]
      %v265 = vld [vmem:[%s251 + $0x28] sm:$0xff]
      %v266 = vld [vmem:[%s251 + $0x30] sm:$0xff]
      %v267 = vld [vmem:[%s251 + $0x38] sm:$0xff]
      %v268 = vld [vmem:[%s251 + $0x40] sm:$0xff]
      %v269 = vld [vmem:[%s251 + $0x48] sm:$0xff]
      %v270 = vld [vmem:[%s251 + $0x50] sm:$0xff]
      %v271 = vld [vmem:[%s251 + $0x58] sm:$0xff]
      %v272 = vld [vmem:[%s251 + $0x60] sm:$0xff]
      %v273 = vld [vmem:[%s251 + $0x68] sm:$0xff]
      %v274 = vld [vmem:[%s251 + $0x70] sm:$0xff]
      %v275 = vld [vmem:[%s251 + $0x78] sm:$0xff]
      %v276 = vld [vmem:[%s251 + $0x80] sm:$0xff]
      %v277 = vld [vmem:[%s251 + $0x88] sm:$0xff]
      %v278 = vld [vmem:[%s251 + $0x90] sm:$0xff]
      %v279 = vld [vmem:[%s251 + $0x98] sm:$0xff]
      %v280 = vld [vmem:[%s251 + $0xa0] sm:$0xff]
      %v281 = vld [vmem:[%s251 + $0xa8] sm:$0xff]
      %v282 = vld [vmem:[%s251 + $0xb0] sm:$0xff]
      %v283 = vld [vmem:[%s251 + $0xb8] sm:$0xff]
      %v284 = vld [vmem:[%s251 + $0xc0] sm:$0xff]
      %v285 = vld [vmem:[%s251 + $0xc8] sm:$0xff]
      %v286 = vld [vmem:[%s251 + $0xd0] sm:$0xff]
      %v287 = vld [vmem:[%s251 + $0xd8] sm:$0xff]
      %v288 = vld [vmem:[%s251 + $0xe0] sm:$0xff]
      %v289 = vld [vmem:[%s251 + $0xe8] sm:$0xff]
      %v290 = vld [vmem:[%s251 + $0xf0] sm:$0xff]
      %v291 = vld [vmem:[%s251 + $0xf8] sm:$0xff]
      %v292 = vld [vmem:[%s3] sm:$0xff]
      %v293 = vld [vmem:[%s3 + $0x8] sm:$0xff]
      %v294 = vld [vmem:[%s3 + $0x10] sm:$0xff]
      %v295 = vld [vmem:[%s3 + $0x18] sm:$0xff]
      %vm296 = vcmask 261120
      %v298 = vsel %vm296, %v260, 0
      %v301 = vsel %vm296, %v261, 0
      %v304 = vsel %vm296, %v262, 0
      %v307 = vsel %vm296, %v263, 0
      %v310 = vsel %vm296, %v264, 0
      %v313 = vsel %vm296, %v265, 0
      %v316 = vsel %vm296, %v266, 0
      %v319 = vsel %vm296, %v267, 0
      %v322 = vsel %vm296, %v268, 0
      %v325 = vsel %vm296, %v269, 0
      %v328 = vsel %vm296, %v270, 0
      %v331 = vsel %vm296, %v271, 0
      %v334 = vsel %vm296, %v272, 0
      %v337 = vsel %vm296, %v273, 0
      %v340 = vsel %vm296, %v274, 0
      %v343 = vsel %vm296, %v275, 0
      %v346 = vsel %vm296, %v276, 0
      %v349 = vsel %vm296, %v277, 0
      %v352 = vsel %vm296, %v278, 0
      %v355 = vsel %vm296, %v279, 0
      %v358 = vsel %vm296, %v280, 0
      %v361 = vsel %vm296, %v281, 0
      %v364 = vsel %vm296, %v282, 0
      %v367 = vsel %vm296, %v283, 0
      %v370 = vsel %vm296, %v284, 0
      %v373 = vsel %vm296, %v285, 0
      %v376 = vsel %vm296, %v286, 0
      %v379 = vsel %vm296, %v287, 0
      %v382 = vsel %vm296, %v288, 0
      %v385 = vsel %vm296, %v289, 0
      %v388 = vsel %vm296, %v290, 0
      %v391 = vsel %vm296, %v291, 0
      %393 = vmatprep.subr.mxu0 0.0
      %394 = vmatpush1.msra.mxu0 %v292
      %395 = vmatprep.subr.mxu0 0.0
      %396 = vmatpush1.msra.mxu0 %v293
      %397 = vmatprep.subr.mxu0 0.0
      %398 = vmatpush1.msra.mxu0 %v294
      %399 = vmatprep.subr.mxu0 0.0
      %400 = vmatpush1.msra.mxu0 %v295
      %401 = vmatprep.subr.mxu0 0.0
      %402 = vmatpush1.msra.mxu0 0.0
      %403 = vmatprep.subr.mxu0 0.0
      %404 = vmatpush1.msra.mxu0 0.0
      %405 = vmatprep.subr.mxu0 0.0
      %406 = vmatpush1.msra.mxu0 0.0
      %407 = vmatprep.subr.mxu0 0.0
      %408 = vmatpush1.msra.mxu0 0.0
      %409 = vmatprep.subr.mxu0 0.0
      %410 = vmatpush1.msra.mxu0 0.0
      %411 = vmatprep.subr.mxu0 0.0
      %412 = vmatpush1.msra.mxu0 0.0
      %413 = vmatprep.subr.mxu0 0.0
      %414 = vmatpush1.msra.mxu0 0.0
      %415 = vmatprep.subr.mxu0 0.0
      %416 = vmatpush1.msra.mxu0 0.0
      %417 = vmatprep.subr.mxu0 0.0
      %418 = vmatpush1.msra.mxu0 0.0
      %419 = vmatprep.subr.mxu0 0.0
      %420 = vmatpush1.msra.mxu0 0.0
      %421 = vmatprep.subr.mxu0 0.0
      %422 = vmatpush1.msra.mxu0 0.0
      %423 = vmatprep.subr.mxu0 0.0
      %424 = vmatpush1.msra.mxu0 0.0
      %425 = vmatprep.subr.mxu0 0.0
      %426 = vmatpush1.msra.mxu0 0.0
      %427 = vmatprep.subr.mxu0 0.0
      %428 = vmatpush1.msra.mxu0 0.0
      %429 = vmatprep.subr.mxu0 0.0
      %430 = vmatpush1.msra.mxu0 0.0
      %431 = vmatprep.subr.mxu0 0.0
      %432 = vmatpush1.msra.mxu0 0.0
      %433 = vmatprep.subr.mxu0 0.0
      %434 = vmatpush1.msra.mxu0 0.0
      %435 = vmatprep.subr.mxu0 0.0
      %436 = vmatpush1.msra.mxu0 0.0
      %437 = vmatprep.subr.mxu0 0.0
      %438 = vmatpush1.msra.mxu0 0.0
      %439 = vmatprep.subr.mxu0 0.0
      %440 = vmatpush1.msra.mxu0 0.0
      %441 = vmatprep.subr.mxu0 0.0
      %442 = vmatpush1.msra.mxu0 0.0
      %443 = vmatprep.subr.mxu0 0.0
      %444 = vmatpush1.msra.mxu0 0.0
      %445 = vmatprep.subr.mxu0 0.0
      %446 = vmatpush1.msra.mxu0 0.0
      %447 = vmatprep.subr.mxu0 0.0
      %448 = vmatpush1.msra.mxu0 0.0
      %449 = vmatprep.subr.mxu0 0.0
      %450 = vmatpush1.msra.mxu0 0.0
      %451 = vmatprep.subr.mxu0 0.0
      %452 = vmatpush1.msra.mxu0 0.0
      %453 = vmatprep.subr.mxu0 0.0
      %454 = vmatpush1.msra.mxu0 0.0
      %455 = vmatprep.subr.mxu0 0.0
      %456 = vmatpush1.msra.mxu0 0.0
      %457 = vmatprep.mubr.f32.mxu0 0.0
      %458 = vmatmul.mubr.f32.gmra.mrb[0].mxu0 %v298
      %v459 = vpop.f32.mrb[0].mxu0
      %v460 = vadd.f32 0.0, %v459
      %v461 = vpop.f32.mrb[0].mxu0
      %462 = vmatprep.mubr.f32.mxu0 0.0
      %463 = vmatmul.mubr.f32.gmra.mrb[0].mxu0 %v301
      %v464 = vpop.f32.mrb[0].mxu0
      %v465 = vadd.f32 0.0, %v464
      %v466 = vpop.f32.mrb[0].mxu0
      %467 = vmatprep.mubr.f32.mxu0 0.0
      %468 = vmatmul.mubr.f32.gmra.mrb[0].mxu0 %v304
      %v469 = vpop.f32.mrb[0].mxu0
      %v470 = vadd.f32 0.0, %v469
      %v471 = vpop.f32.mrb[0].mxu0
      %472 = vmatprep.mubr.f32.mxu0 0.0
      %473 = vmatmul.mubr.f32.gmra.mrb[0].mxu0 %v307
      %v474 = vpop.f32.mrb[0].mxu0
      %v475 = vadd.f32 0.0, %v474
      %v476 = vpop.f32.mrb[0].mxu0
      %477 = vmatprep.mubr.f32.mxu0 0.0
      %478 = vmatmul.mubr.f32.gmra.mrb[0].mxu0 %v310
      %v479 = vpop.f32.mrb[0].mxu0
      %v480 = vadd.f32 0.0, %v479
      %v481 = vpop.f32.mrb[0].mxu0
      %482 = vmatprep.mubr.f32.mxu0 0.0
      %483 = vmatmul.mubr.f32.gmra.mrb[0].mxu0 %v313
      %v484 = vpop.f32.mrb[0].mxu0
      %v485 = vadd.f32 0.0, %v484
      %v486 = vpop.f32.mrb[0].mxu0
      %487 = vmatprep.mubr.f32.mxu0 0.0
      %488 = vmatmul.mubr.f32.gmra.mrb[0].mxu0 %v316
      %v489 = vpop.f32.mrb[0].mxu0
      %v490 = vadd.f32 0.0, %v489
      %v491 = vpop.f32.mrb[0].mxu0
      %492 = vmatprep.mubr.f32.mxu0 0.0
      %493 = vmatmul.mubr.f32.gmra.mrb[0].mxu0 %v319
      %v494 = vpop.f32.mrb[0].mxu0
      %v495 = vadd.f32 0.0, %v494
      %v496 = vpop.f32.mrb[0].mxu0
      %497 = vmatprep.mubr.f32.mxu0 0.0
      %498 = vmatmul.mubr.f32.gmra.mrb[0].mxu0 %v322
      %v499 = vpop.f32.mrb[0].mxu0
      %v500 = vadd.f32 0.0, %v499
      %v501 = vpop.f32.mrb[0].mxu0
      %502 = vmatprep.mubr.f32.mxu0 0.0
      %503 = vmatmul.mubr.f32.gmra.mrb[0].mxu0 %v325
      %v504 = vpop.f32.mrb[0].mxu0
      %v505 = vadd.f32 0.0, %v504
      %v506 = vpop.f32.mrb[0].mxu0
      %507 = vmatprep.mubr.f32.mxu0 0.0
      %508 = vmatmul.mubr.f32.gmra.mrb[0].mxu0 %v328
      %v509 = vpop.f32.mrb[0].mxu0
      %v510 = vadd.f32 0.0, %v509
      %v511 = vpop.f32.mrb[0].mxu0
      %512 = vmatprep.mubr.f32.mxu0 0.0
      %513 = vmatmul.mubr.f32.gmra.mrb[0].mxu0 %v331
      %v514 = vpop.f32.mrb[0].mxu0
      %v515 = vadd.f32 0.0, %v514
      %v516 = vpop.f32.mrb[0].mxu0
      %517 = vmatprep.mubr.f32.mxu0 0.0
      %518 = vmatmul.mubr.f32.gmra.mrb[0].mxu0 %v334
      %v519 = vpop.f32.mrb[0].mxu0
      %v520 = vadd.f32 0.0, %v519
      %v521 = vpop.f32.mrb[0].mxu0
      %522 = vmatprep.mubr.f32.mxu0 0.0
      %523 = vmatmul.mubr.f32.gmra.mrb[0].mxu0 %v337
      %v524 = vpop.f32.mrb[0].mxu0
      %v525 = vadd.f32 0.0, %v524
      %v526 = vpop.f32.mrb[0].mxu0
      %527 = vmatprep.mubr.f32.mxu0 0.0
      %528 = vmatmul.mubr.f32.gmra.mrb[0].mxu0 %v340
      %v529 = vpop.f32.mrb[0].mxu0
      %v530 = vadd.f32 0.0, %v529
      %v531 = vpop.f32.mrb[0].mxu0
      %532 = vmatprep.mubr.f32.mxu0 0.0
      %533 = vmatmul.mubr.f32.gmra.mrb[0].mxu0 %v343
      %v534 = vpop.f32.mrb[0].mxu0
      %v535 = vadd.f32 0.0, %v534
      %v536 = vpop.f32.mrb[0].mxu0
      %537 = vmatprep.mubr.f32.mxu0 0.0
      %538 = vmatmul.mubr.f32.gmra.mrb[0].mxu0 %v346
      %v539 = vpop.f32.mrb[0].mxu0
      %v540 = vadd.f32 0.0, %v539
      %v541 = vpop.f32.mrb[0].mxu0
      %542 = vmatprep.mubr.f32.mxu0 0.0
      %543 = vmatmul.mubr.f32.gmra.mrb[0].mxu0 %v349
      %v544 = vpop.f32.mrb[0].mxu0
      %v545 = vadd.f32 0.0, %v544
      %v546 = vpop.f32.mrb[0].mxu0
      %547 = vmatprep.mubr.f32.mxu0 0.0
      %548 = vmatmul.mubr.f32.gmra.mrb[0].mxu0 %v352
      %v549 = vpop.f32.mrb[0].mxu0
      %v550 = vadd.f32 0.0, %v549
      %v551 = vpop.f32.mrb[0].mxu0
      %552 = vmatprep.mubr.f32.mxu0 0.0
      %553 = vmatmul.mubr.f32.gmra.mrb[0].mxu0 %v355
      %v554 = vpop.f32.mrb[0].mxu0
      %v555 = vadd.f32 0.0, %v554
      %v556 = vpop.f32.mrb[0].mxu0
      %557 = vmatprep.mubr.f32.mxu0 0.0
      %558 = vmatmul.mubr.f32.gmra.mrb[0].mxu0 %v358
      %v559 = vpop.f32.mrb[0].mxu0
      %v560 = vadd.f32 0.0, %v559
      %v561 = vpop.f32.mrb[0].mxu0
      %562 = vmatprep.mubr.f32.mxu0 0.0
      %563 = vmatmul.mubr.f32.gmra.mrb[0].mxu0 %v361
      %v564 = vpop.f32.mrb[0].mxu0
      %v565 = vadd.f32 0.0, %v564
      %v566 = vpop.f32.mrb[0].mxu0
      %567 = vmatprep.mubr.f32.mxu0 0.0
      %568 = vmatmul.mubr.f32.gmra.mrb[0].mxu0 %v364
      %v569 = vpop.f32.mrb[0].mxu0
      %v570 = vadd.f32 0.0, %v569
      %v571 = vpop.f32.mrb[0].mxu0
      %572 = vmatprep.mubr.f32.mxu0 0.0
      %573 = vmatmul.mubr.f32.gmra.mrb[0].mxu0 %v367
      %v574 = vpop.f32.mrb[0].mxu0
      %v575 = vadd.f32 0.0, %v574
      %v576 = vpop.f32.mrb[0].mxu0
      %577 = vmatprep.mubr.f32.mxu0 0.0
      %578 = vmatmul.mubr.f32.gmra.mrb[0].mxu0 %v370
      %v579 = vpop.f32.mrb[0].mxu0
      %v580 = vadd.f32 0.0, %v579
      %v581 = vpop.f32.mrb[0].mxu0
      %582 = vmatprep.mubr.f32.mxu0 0.0
      %583 = vmatmul.mubr.f32.gmra.mrb[0].mxu0 %v373
      %v584 = vpop.f32.mrb[0].mxu0
      %v585 = vadd.f32 0.0, %v584
      %v586 = vpop.f32.mrb[0].mxu0
      %587 = vmatprep.mubr.f32.mxu0 0.0
      %588 = vmatmul.mubr.f32.gmra.mrb[0].mxu0 %v376
      %v589 = vpop.f32.mrb[0].mxu0
      %v590 = vadd.f32 0.0, %v589
      %v591 = vpop.f32.mrb[0].mxu0
      %592 = vmatprep.mubr.f32.mxu0 0.0
      %593 = vmatmul.mubr.f32.gmra.mrb[0].mxu0 %v379
      %v594 = vpop.f32.mrb[0].mxu0
      %v595 = vadd.f32 0.0, %v594
      %v596 = vpop.f32.mrb[0].mxu0
      %597 = vmatprep.mubr.f32.mxu0 0.0
      %598 = vmatmul.mubr.f32.gmra.mrb[0].mxu0 %v382
      %v599 = vpop.f32.mrb[0].mxu0
      %v600 = vadd.f32 0.0, %v599
      %v601 = vpop.f32.mrb[0].mxu0
      %602 = vmatprep.mubr.f32.mxu0 0.0
      %603 = vmatmul.mubr.f32.gmra.mrb[0].mxu0 %v385
      %v604 = vpop.f32.mrb[0].mxu0
      %v605 = vadd.f32 0.0, %v604
      %v606 = vpop.f32.mrb[0].mxu0
      %607 = vmatprep.mubr.f32.mxu0 0.0
      %608 = vmatmul.mubr.f32.gmra.mrb[0].mxu0 %v388
      %v609 = vpop.f32.mrb[0].mxu0
      %v610 = vadd.f32 0.0, %v609
      %v611 = vpop.f32.mrb[0].mxu0
      %612 = vmatprep.mubr.f32.mxu0 0.0
      %613 = vmatmul.mubr.f32.gmra.mrb[0].mxu0 %v391
      %v614 = vpop.f32.mrb[0].mxu0
      %v615 = vadd.f32 0.0, %v614
      %v616 = vpop.f32.mrb[0].mxu0
      %617 = vdwg.mxu0
      %v618 = vld [vmem:[%s2] sm:$0xff]
      %v619 = vld [vmem:[%s2 + $0x8] sm:$0xff]
      %v620 = vld [vmem:[%s2 + $0x10] sm:$0xff]
      %v621 = vld [vmem:[%s2 + $0x18] sm:$0xff]
      %v622 = vld [vmem:[%s2 + $0x20] sm:$0xff]
      %v623 = vld [vmem:[%s2 + $0x28] sm:$0xff]
      %v624 = vld [vmem:[%s2 + $0x30] sm:$0xff]
      %v625 = vld [vmem:[%s2 + $0x38] sm:$0xff]
      %v626 = vld [vmem:[%s2 + $0x40] sm:$0xff]
      %v627 = vld [vmem:[%s2 + $0x48] sm:$0xff]
      %v628 = vld [vmem:[%s2 + $0x50] sm:$0xff]
      %v629 = vld [vmem:[%s2 + $0x58] sm:$0xff]
      %v630 = vld [vmem:[%s2 + $0x60] sm:$0xff]
      %v631 = vld [vmem:[%s2 + $0x68] sm:$0xff]
      %v632 = vld [vmem:[%s2 + $0x70] sm:$0xff]
      %v633 = vld [vmem:[%s2 + $0x78] sm:$0xff]
      %v634 = vld [vmem:[%s1] sm:$0xff]
      %v635 = vld [vmem:[%s1 + $0x8] sm:$0xff]
      %v636 = vld [vmem:[%s1 + $0x10] sm:$0xff]
      %v637 = vld [vmem:[%s1 + $0x18] sm:$0xff]
      %v638 = vld [vmem:[%s1 + $0x20] sm:$0xff]
      %v639 = vld [vmem:[%s1 + $0x28] sm:$0xff]
      %v640 = vld [vmem:[%s1 + $0x30] sm:$0xff]
      %v641 = vld [vmem:[%s1 + $0x38] sm:$0xff]
      %v642 = vadd.f32 %v618, %v634
      %v643 = vadd.f32 %v619, %v635
      %v644 = vadd.f32 %v620, %v636
      %v645 = vadd.f32 %v621, %v637
      %v646 = vadd.f32 %v622, %v638
      %v647 = vadd.f32 %v623, %v639
      %v648 = vadd.f32 %v624, %v640
      %v649 = vadd.f32 %v625, %v641
      %v650 = vadd.f32 %v626, %v634
      %v651 = vadd.f32 %v627, %v635
      %v652 = vadd.f32 %v628, %v636
      %v653 = vadd.f32 %v629, %v637
      %v654 = vadd.f32 %v630, %v638
      %v655 = vadd.f32 %v631, %v639
      %v656 = vadd.f32 %v632, %v640
      %v657 = vadd.f32 %v633, %v641
      %666 = vrot.lane.b32.xlu0 %v460, 96
      %v667 = vpop.permute.xlu0 %666
      %668 = vrot.lane.b32.xlu0 %v465, 96
      %v669 = vpop.permute.xlu0 %668
      %670 = vrot.lane.b32.xlu0 %v470, 96
      %v671 = vpop.permute.xlu0 %670
      %672 = vrot.lane.b32.xlu0 %v475, 96
      %v673 = vpop.permute.xlu0 %672
      %674 = vrot.lane.b32.xlu0 %v480, 96
      %v675 = vpop.permute.xlu0 %674
      %676 = vrot.lane.b32.xlu0 %v485, 96
      %v677 = vpop.permute.xlu0 %676
      %678 = vrot.lane.b32.xlu0 %v490, 96
      %v679 = vpop.permute.xlu0 %678
      %680 = vrot.lane.b32.xlu0 %v495, 96
      %v681 = vpop.permute.xlu0 %680
      %vm682 = vcmask 130048
      %v683 = vsel %vm682, %v460, 0
      %v685 = vsel %vm682, %v465, 0
      %v687 = vsel %vm682, %v470, 0
      %v689 = vsel %vm682, %v475, 0
      %v691 = vsel %vm682, %v480, 0
      %v693 = vsel %vm682, %v485, 0
      %v695 = vsel %vm682, %v490, 0
      %v697 = vsel %vm682, %v495, 0
      %v699 = vsel %vm682, %v667, 0
      %v701 = vsel %vm682, %v669, 0
      %v703 = vsel %vm682, %v671, 0
      %v705 = vsel %vm682, %v673, 0
      %v707 = vsel %vm682, %v675, 0
      %v709 = vsel %vm682, %v677, 0
      %v711 = vsel %vm682, %v679, 0
      %v713 = vsel %vm682, %v681, 0
      %715 = vmatprep.subr.mxu0 0.0
      %716 = vmatpush1.xpose.msra.mxu0 %v699
      %717 = vmatprep.subr.mxu0 0.0
      %718 = vmatpush1.xpose.msra.mxu0 %v701
      %719 = vmatprep.subr.mxu0 0.0
      %720 = vmatpush1.xpose.msra.mxu0 %v703
      %721 = vmatprep.subr.mxu0 0.0
      %722 = vmatpush1.xpose.msra.mxu0 %v705
      %723 = vmatprep.subr.mxu0 0.0
      %724 = vmatpush1.xpose.msra.mxu0 %v707
      %725 = vmatprep.subr.mxu0 0.0
      %726 = vmatpush1.xpose.msra.mxu0 %v709
      %727 = vmatprep.subr.mxu0 0.0
      %728 = vmatpush1.xpose.msra.mxu0 %v711
      %729 = vmatprep.subr.mxu0 0.0
      %730 = vmatpush1.xpose.msra.mxu0 %v713
      %731 = vmatprep.subr.mxu0 0.0
      %732 = vmatpush1.xpose.msra.mxu0 0.0
      %733 = vmatprep.subr.mxu0 0.0
      %734 = vmatpush1.xpose.msra.mxu0 0.0
      %735 = vmatprep.subr.mxu0 0.0
      %736 = vmatpush1.xpose.msra.mxu0 0.0
      %737 = vmatprep.subr.mxu0 0.0
      %738 = vmatpush1.xpose.msra.mxu0 0.0
      %739 = vmatprep.subr.mxu0 0.0
      %740 = vmatpush1.xpose.msra.mxu0 0.0
      %741 = vmatprep.subr.mxu0 0.0
      %742 = vmatpush1.xpose.msra.mxu0 0.0
      %743 = vmatprep.subr.mxu0 0.0
      %744 = vmatpush1.xpose.msra.mxu0 0.0
      %745 = vmatprep.subr.mxu0 0.0
      %746 = vmatpush1.xpose.msra.mxu0 0.0
      %747 = vmatprep.subr.mxu0 0.0
      %748 = vmatpush1.xpose.msra.mxu0 0.0
      %749 = vmatprep.subr.mxu0 0.0
      %750 = vmatpush1.xpose.msra.mxu0 0.0
      %751 = vmatprep.subr.mxu0 0.0
      %752 = vmatpush1.xpose.msra.mxu0 0.0
      %753 = vmatprep.subr.mxu0 0.0
      %754 = vmatpush1.xpose.msra.mxu0 0.0
      %755 = vmatprep.subr.mxu0 0.0
      %756 = vmatpush1.xpose.msra.mxu0 0.0
      %757 = vmatprep.subr.mxu0 0.0
      %758 = vmatpush1.xpose.msra.mxu0 0.0
      %759 = vmatprep.subr.mxu0 0.0
      %760 = vmatpush1.xpose.msra.mxu0 0.0
      %761 = vmatprep.subr.mxu0 0.0
      %762 = vmatpush1.xpose.msra.mxu0 0.0
      %763 = vmatprep.subr.mxu0 0.0
      %764 = vmatpush1.xpose.msra.mxu0 0.0
      %765 = vmatprep.subr.mxu0 0.0
      %766 = vmatpush1.xpose.msra.mxu0 0.0
      %767 = vmatprep.subr.mxu0 0.0
      %768 = vmatpush1.xpose.msra.mxu0 0.0
      %769 = vmatprep.subr.mxu0 0.0
      %770 = vmatpush1.xpose.msra.mxu0 0.0
      %771 = vmatprep.subr.mxu0 0.0
      %772 = vmatpush1.xpose.msra.mxu0 0.0
      %773 = vmatprep.subr.mxu0 0.0
      %774 = vmatpush1.xpose.msra.mxu0 0.0
      %775 = vmatprep.subr.mxu0 0.0
      %776 = vmatpush1.xpose.msra.mxu0 0.0
      %777 = vmatprep.subr.mxu0 0.0
      %778 = vmatpush1.xpose.msra.mxu0 0.0
      %779 = vmatprep.mubr.f32.mxu0 0.0
      %780 = vmatmul.mubr.f32.gmra.mrb[0].mxu0 %v683
      %v781 = vpop.f32.mrb[0].mxu0
      %v782 = vadd.f32 %v642, %v781
      %v783 = vpop.f32.mrb[0].mxu0
      %784 = vmatprep.mubr.f32.mxu0 0.0
      %785 = vmatmul.mubr.f32.gmra.mrb[0].mxu0 %v685
      %v786 = vpop.f32.mrb[0].mxu0
      %v787 = vadd.f32 %v643, %v786
      %v788 = vpop.f32.mrb[0].mxu0
      %789 = vmatprep.mubr.f32.mxu0 0.0
      %790 = vmatmul.mubr.f32.gmra.mrb[0].mxu0 %v687
      %v791 = vpop.f32.mrb[0].mxu0
      %v792 = vadd.f32 %v644, %v791
      %v793 = vpop.f32.mrb[0].mxu0
      %794 = vmatprep.mubr.f32.mxu0 0.0
      %795 = vmatmul.mubr.f32.gmra.mrb[0].mxu0 %v689
      %v796 = vpop.f32.mrb[0].mxu0
      %v797 = vadd.f32 %v645, %v796
      %v798 = vpop.f32.mrb[0].mxu0
      %799 = vmatprep.mubr.f32.mxu0 0.0
      %800 = vmatmul.mubr.f32.gmra.mrb[0].mxu0 %v691
      %v801 = vpop.f32.mrb[0].mxu0
      %v802 = vadd.f32 %v646, %v801
      %v803 = vpop.f32.mrb[0].mxu0
      %804 = vmatprep.mubr.f32.mxu0 0.0
      %805 = vmatmul.mubr.f32.gmra.mrb[0].mxu0 %v693
      %v806 = vpop.f32.mrb[0].mxu0
      %v807 = vadd.f32 %v647, %v806
      %v808 = vpop.f32.mrb[0].mxu0
      %809 = vmatprep.mubr.f32.mxu0 0.0
      %810 = vmatmul.mubr.f32.gmra.mrb[0].mxu0 %v695
      %v811 = vpop.f32.mrb[0].mxu0
      %v812 = vadd.f32 %v648, %v811
      %v813 = vpop.f32.mrb[0].mxu0
      %814 = vmatprep.mubr.f32.mxu0 0.0
      %815 = vmatmul.mubr.f32.gmra.mrb[0].mxu0 %v697
      %v816 = vpop.f32.mrb[0].mxu0
      %v817 = vadd.f32 %v649, %v816
      %v818 = vpop.f32.mrb[0].mxu0
      %819 = vdwg.mxu0
      %vm820 = vcmask 523264
      %v821 = vsel %vm820, %v782, -inf
      %822 = vmax.xlane.f32.xlu0 %v821
      %v823 = vpop.xlane.xlu0 %822
      %v824 = vsel %vm820, %v787, -inf
      %825 = vmax.xlane.f32.xlu0 %v824
      %v826 = vpop.xlane.xlu0 %825
      %v827 = vsel %vm820, %v792, -inf
      %828 = vmax.xlane.f32.xlu0 %v827
      %v829 = vpop.xlane.xlu0 %828
      %v830 = vsel %vm820, %v797, -inf
      %831 = vmax.xlane.f32.xlu0 %v830
      %v832 = vpop.xlane.xlu0 %831
      %v833 = vsel %vm820, %v802, -inf
      %834 = vmax.xlane.f32.xlu0 %v833
      %v835 = vpop.xlane.xlu0 %834
      %v836 = vsel %vm820, %v807, -inf
      %837 = vmax.xlane.f32.xlu0 %v836
      %v838 = vpop.xlane.xlu0 %837
      %v839 = vsel %vm820, %v812, -inf
      %840 = vmax.xlane.f32.xlu0 %v839
      %v841 = vpop.xlane.xlu0 %840
      %v842 = vsel %vm820, %v817, -inf
      %843 = vmax.xlane.f32.xlu0 %v842
      %v844 = vpop.xlane.xlu0 %843
      %v845 = vsub.f32 %v782, %v823
      %v846 = vsub.f32 %v787, %v826
      %v847 = vsub.f32 %v792, %v829
      %v848 = vsub.f32 %v797, %v832
      %v849 = vsub.f32 %v802, %v835
      %v850 = vsub.f32 %v807, %v838
      %v851 = vsub.f32 %v812, %v841
      %v852 = vsub.f32 %v817, %v844
      %v853 = vmul.f32 %v845, 1.442695
      %v854 = vpow.pop %v853
      %v855 = vmul.f32 %v846, 1.442695
      %v856 = vpow.pop %v855
      %v857 = vmul.f32 %v847, 1.442695
      %v858 = vpow.pop %v857
      %v859 = vmul.f32 %v848, 1.442695
      %v860 = vpow.pop %v859
      %v861 = vmul.f32 %v849, 1.442695
      %v862 = vpow.pop %v861
      %v863 = vmul.f32 %v850, 1.442695
      %v864 = vpow.pop %v863
      %v865 = vmul.f32 %v851, 1.442695
      %v866 = vpow.pop %v865
      %v867 = vmul.f32 %v852, 1.442695
      %v868 = vpow.pop %v867
      %v869 = vsel %vm820, %v854, 0.0
      %870 = vadd.xlane.f32.xlu0 %v869
      %v871 = vpop.xlane.xlu0 %870
      %v872 = vsel %vm820, %v856, 0.0
      %873 = vadd.xlane.f32.xlu0 %v872
      %v874 = vpop.xlane.xlu0 %873
      %v875 = vsel %vm820, %v858, 0.0
      %876 = vadd.xlane.f32.xlu0 %v875
      %v877 = vpop.xlane.xlu0 %876
      %v878 = vsel %vm820, %v860, 0.0
      %879 = vadd.xlane.f32.xlu0 %v878
      %v880 = vpop.xlane.xlu0 %879
      %v881 = vsel %vm820, %v862, 0.0
      %882 = vadd.xlane.f32.xlu0 %v881
      %v883 = vpop.xlane.xlu0 %882
      %v884 = vsel %vm820, %v864, 0.0
      %885 = vadd.xlane.f32.xlu0 %v884
      %v886 = vpop.xlane.xlu0 %885
      %v887 = vsel %vm820, %v866, 0.0
      %888 = vadd.xlane.f32.xlu0 %v887
      %v889 = vpop.xlane.xlu0 %888
      %v890 = vsel %vm820, %v868, 0.0
      %891 = vadd.xlane.f32.xlu0 %v890
      %v892 = vpop.xlane.xlu0 %891
      %v893 = vrcp.pop %v871
      %v894 = vrcp.pop %v874
      %v895 = vrcp.pop %v877
      %v896 = vrcp.pop %v880
      %v897 = vrcp.pop %v883
      %v898 = vrcp.pop %v886
      %v899 = vrcp.pop %v889
      %v900 = vrcp.pop %v892
      %v901 = vmul.f32 %v854, %v893
      %v902 = vmul.f32 %v856, %v894
      %v903 = vmul.f32 %v858, %v895
      %v904 = vmul.f32 %v860, %v896
      %v905 = vmul.f32 %v862, %v897
      %v906 = vmul.f32 %v864, %v898
      %v907 = vmul.f32 %v866, %v899
      %v908 = vmul.f32 %v868, %v900
      %909 = vrot.lane.b32.xlu0 %v460, 64
      %v910 = vpop.permute.xlu0 %909
      %911 = vrot.lane.b32.xlu0 %v465, 64
      %v912 = vpop.permute.xlu0 %911
      %913 = vrot.lane.b32.xlu0 %v470, 64
      %v914 = vpop.permute.xlu0 %913
      %915 = vrot.lane.b32.xlu0 %v475, 64
      %v916 = vpop.permute.xlu0 %915
      %917 = vrot.lane.b32.xlu0 %v480, 64
      %v918 = vpop.permute.xlu0 %917
      %919 = vrot.lane.b32.xlu0 %v485, 64
      %v920 = vpop.permute.xlu0 %919
      %921 = vrot.lane.b32.xlu0 %v490, 64
      %v922 = vpop.permute.xlu0 %921
      %923 = vrot.lane.b32.xlu0 %v495, 64
      %v924 = vpop.permute.xlu0 %923
      %v934 = vsel %vm820, %v901, 0
      %v937 = vsel %vm820, %v902, 0
      %v940 = vsel %vm820, %v903, 0
      %v943 = vsel %vm820, %v904, 0
      %v946 = vsel %vm820, %v905, 0
      %v949 = vsel %vm820, %v906, 0
      %v952 = vsel %vm820, %v907, 0
      %v955 = vsel %vm820, %v908, 0
      %957 = vmatprep.subr.mxu0 0.0
      %958 = vmatpush1.msra.mxu0 %v910
      %959 = vmatprep.subr.mxu0 0.0
      %960 = vmatpush1.msra.mxu0 %v912
      %961 = vmatprep.subr.mxu0 0.0
      %962 = vmatpush1.msra.mxu0 %v914
      %963 = vmatprep.subr.mxu0 0.0
      %964 = vmatpush1.msra.mxu0 %v916
      %965 = vmatprep.subr.mxu0 0.0
      %966 = vmatpush1.msra.mxu0 %v918
      %967 = vmatprep.subr.mxu0 0.0
      %968 = vmatpush1.msra.mxu0 %v920
      %969 = vmatprep.subr.mxu0 0.0
      %970 = vmatpush1.msra.mxu0 %v922
      %971 = vmatprep.subr.mxu0 0.0
      %972 = vmatpush1.msra.mxu0 %v924
      %973 = vmatprep.subr.mxu0 0.0
      %974 = vmatpush1.msra.mxu0 0.0
      %975 = vmatprep.subr.mxu0 0.0
      %976 = vmatpush1.msra.mxu0 0.0
      %977 = vmatprep.subr.mxu0 0.0
      %978 = vmatpush1.msra.mxu0 0.0
      %979 = vmatprep.subr.mxu0 0.0
      %980 = vmatpush1.msra.mxu0 0.0
      %981 = vmatprep.subr.mxu0 0.0
      %982 = vmatpush1.msra.mxu0 0.0
      %983 = vmatprep.subr.mxu0 0.0
      %984 = vmatpush1.msra.mxu0 0.0
      %985 = vmatprep.subr.mxu0 0.0
      %986 = vmatpush1.msra.mxu0 0.0
      %987 = vmatprep.subr.mxu0 0.0
      %988 = vmatpush1.msra.mxu0 0.0
      %989 = vmatprep.subr.mxu0 0.0
      %990 = vmatpush1.msra.mxu0 0.0
      %991 = vmatprep.subr.mxu0 0.0
      %992 = vmatpush1.msra.mxu0 0.0
      %993 = vmatprep.subr.mxu0 0.0
      %994 = vmatpush1.msra.mxu0 0.0
      %995 = vmatprep.subr.mxu0 0.0
      %996 = vmatpush1.msra.mxu0 0.0
      %997 = vmatprep.subr.mxu0 0.0
      %998 = vmatpush1.msra.mxu0 0.0
      %999 = vmatprep.subr.mxu0 0.0
      %1000 = vmatpush1.msra.mxu0 0.0
      %1001 = vmatprep.subr.mxu0 0.0
      %1002 = vmatpush1.msra.mxu0 0.0
      %1003 = vmatprep.subr.mxu0 0.0
      %1004 = vmatpush1.msra.mxu0 0.0
      %1005 = vmatprep.subr.mxu0 0.0
      %1006 = vmatpush1.msra.mxu0 0.0
      %1007 = vmatprep.subr.mxu0 0.0
      %1008 = vmatpush1.msra.mxu0 0.0
      %1009 = vmatprep.subr.mxu0 0.0
      %1010 = vmatpush1.msra.mxu0 0.0
      %1011 = vmatprep.subr.mxu0 0.0
      %1012 = vmatpush1.msra.mxu0 0.0
      %1013 = vmatprep.subr.mxu0 0.0
      %1014 = vmatpush1.msra.mxu0 0.0
      %1015 = vmatprep.subr.mxu0 0.0
      %1016 = vmatpush1.msra.mxu0 0.0
      %1017 = vmatprep.subr.mxu0 0.0
      %1018 = vmatpush1.msra.mxu0 0.0
      %1019 = vmatprep.subr.mxu0 0.0
      %1020 = vmatpush1.msra.mxu0 0.0
      %1021 = vmatprep.mubr.f32.mxu0 0.0
      %1022 = vmatmul.mubr.f32.gmra.mrb[0].mxu0 %v934
      %v1023 = vpop.f32.mrb[0].mxu0
      %v1024 = vadd.f32 0.0, %v1023
      %v1025 = vpop.f32.mrb[0].mxu0
      %1026 = vmatprep.mubr.f32.mxu0 0.0
      %1027 = vmatmul.mubr.f32.gmra.mrb[0].mxu0 %v937
      %v1028 = vpop.f32.mrb[0].mxu0
      %v1029 = vadd.f32 0.0, %v1028
      %v1030 = vpop.f32.mrb[0].mxu0
      %1031 = vmatprep.mubr.f32.mxu0 0.0
      %1032 = vmatmul.mubr.f32.gmra.mrb[0].mxu0 %v940
      %v1033 = vpop.f32.mrb[0].mxu0
      %v1034 = vadd.f32 0.0, %v1033
      %v1035 = vpop.f32.mrb[0].mxu0
      %1036 = vmatprep.mubr.f32.mxu0 0.0
      %1037 = vmatmul.mubr.f32.gmra.mrb[0].mxu0 %v943
      %v1038 = vpop.f32.mrb[0].mxu0
      %v1039 = vadd.f32 0.0, %v1038
      %v1040 = vpop.f32.mrb[0].mxu0
      %1041 = vmatprep.mubr.f32.mxu0 0.0
      %1042 = vmatmul.mubr.f32.gmra.mrb[0].mxu0 %v946
      %v1043 = vpop.f32.mrb[0].mxu0
      %v1044 = vadd.f32 0.0, %v1043
      %v1045 = vpop.f32.mrb[0].mxu0
      %1046 = vmatprep.mubr.f32.mxu0 0.0
      %1047 = vmatmul.mubr.f32.gmra.mrb[0].mxu0 %v949
      %v1048 = vpop.f32.mrb[0].mxu0
      %v1049 = vadd.f32 0.0, %v1048
      %v1050 = vpop.f32.mrb[0].mxu0
      %1051 = vmatprep.mubr.f32.mxu0 0.0
      %1052 = vmatmul.mubr.f32.gmra.mrb[0].mxu0 %v952
      %v1053 = vpop.f32.mrb[0].mxu0
      %v1054 = vadd.f32 0.0, %v1053
      %v1055 = vpop.f32.mrb[0].mxu0
      %1056 = vmatprep.mubr.f32.mxu0 0.0
      %1057 = vmatmul.mubr.f32.gmra.mrb[0].mxu0 %v955
      %v1058 = vpop.f32.mrb[0].mxu0
      %v1059 = vadd.f32 0.0, %v1058
      %v1060 = vpop.f32.mrb[0].mxu0
      %1061 = vdwg.mxu0
      %1062 = vrot.lane.b32.xlu0 %v460, 112
      %v1063 = vpop.permute.xlu0 %1062
      %1064 = vrot.lane.b32.xlu0 %v465, 112
      %v1065 = vpop.permute.xlu0 %1064
      %1066 = vrot.lane.b32.xlu0 %v470, 112
      %v1067 = vpop.permute.xlu0 %1066
      %1068 = vrot.lane.b32.xlu0 %v475, 112
      %v1069 = vpop.permute.xlu0 %1068
      %1070 = vrot.lane.b32.xlu0 %v480, 112
      %v1071 = vpop.permute.xlu0 %1070
      %1072 = vrot.lane.b32.xlu0 %v485, 112
      %v1073 = vpop.permute.xlu0 %1072
      %1074 = vrot.lane.b32.xlu0 %v490, 112
      %v1075 = vpop.permute.xlu0 %1074
      %1076 = vrot.lane.b32.xlu0 %v495, 112
      %v1077 = vpop.permute.xlu0 %1076
      %1078 = vrot.lane.b32.xlu0 %v460, 80
      %v1079 = vpop.permute.xlu0 %1078
      %1080 = vrot.lane.b32.xlu0 %v465, 80
      %v1081 = vpop.permute.xlu0 %1080
      %1082 = vrot.lane.b32.xlu0 %v470, 80
      %v1083 = vpop.permute.xlu0 %1082
      %1084 = vrot.lane.b32.xlu0 %v475, 80
      %v1085 = vpop.permute.xlu0 %1084
      %1086 = vrot.lane.b32.xlu0 %v480, 80
      %v1087 = vpop.permute.xlu0 %1086
      %1088 = vrot.lane.b32.xlu0 %v485, 80
      %v1089 = vpop.permute.xlu0 %1088
      %1090 = vrot.lane.b32.xlu0 %v490, 80
      %v1091 = vpop.permute.xlu0 %1090
      %1092 = vrot.lane.b32.xlu0 %v495, 80
      %v1093 = vpop.permute.xlu0 %1092
      %v1094 = vsel %vm682, %v1063, 0
      %v1096 = vsel %vm682, %v1065, 0
      %v1098 = vsel %vm682, %v1067, 0
      %v1100 = vsel %vm682, %v1069, 0
      %v1102 = vsel %vm682, %v1071, 0
      %v1104 = vsel %vm682, %v1073, 0
      %v1106 = vsel %vm682, %v1075, 0
      %v1108 = vsel %vm682, %v1077, 0
      %v1110 = vsel %vm682, %v1079, 0
      %v1112 = vsel %vm682, %v1081, 0
      %v1114 = vsel %vm682, %v1083, 0
      %v1116 = vsel %vm682, %v1085, 0
      %v1118 = vsel %vm682, %v1087, 0
      %v1120 = vsel %vm682, %v1089, 0
      %v1122 = vsel %vm682, %v1091, 0
      %v1124 = vsel %vm682, %v1093, 0
      %1126 = vmatprep.subr.mxu0 0.0
      %1127 = vmatpush1.xpose.msra.mxu0 %v1110
      %1128 = vmatprep.subr.mxu0 0.0
      %1129 = vmatpush1.xpose.msra.mxu0 %v1112
      %1130 = vmatprep.subr.mxu0 0.0
      %1131 = vmatpush1.xpose.msra.mxu0 %v1114
      %1132 = vmatprep.subr.mxu0 0.0
      %1133 = vmatpush1.xpose.msra.mxu0 %v1116
      %1134 = vmatprep.subr.mxu0 0.0
      %1135 = vmatpush1.xpose.msra.mxu0 %v1118
      %1136 = vmatprep.subr.mxu0 0.0
      %1137 = vmatpush1.xpose.msra.mxu0 %v1120
      %1138 = vmatprep.subr.mxu0 0.0
      %1139 = vmatpush1.xpose.msra.mxu0 %v1122
      %1140 = vmatprep.subr.mxu0 0.0
      %1141 = vmatpush1.xpose.msra.mxu0 %v1124
      %1142 = vmatprep.subr.mxu0 0.0
      %1143 = vmatpush1.xpose.msra.mxu0 0.0
      %1144 = vmatprep.subr.mxu0 0.0
      %1145 = vmatpush1.xpose.msra.mxu0 0.0
      %1146 = vmatprep.subr.mxu0 0.0
      %1147 = vmatpush1.xpose.msra.mxu0 0.0
      %1148 = vmatprep.subr.mxu0 0.0
      %1149 = vmatpush1.xpose.msra.mxu0 0.0
      %1150 = vmatprep.subr.mxu0 0.0
      %1151 = vmatpush1.xpose.msra.mxu0 0.0
      %1152 = vmatprep.subr.mxu0 0.0
      %1153 = vmatpush1.xpose.msra.mxu0 0.0
      %1154 = vmatprep.subr.mxu0 0.0
      %1155 = vmatpush1.xpose.msra.mxu0 0.0
      %1156 = vmatprep.subr.mxu0 0.0
      %1157 = vmatpush1.xpose.msra.mxu0 0.0
      %1158 = vmatprep.subr.mxu0 0.0
      %1159 = vmatpush1.xpose.msra.mxu0 0.0
      %1160 = vmatprep.subr.mxu0 0.0
      %1161 = vmatpush1.xpose.msra.mxu0 0.0
      %1162 = vmatprep.subr.mxu0 0.0
      %1163 = vmatpush1.xpose.msra.mxu0 0.0
      %1164 = vmatprep.subr.mxu0 0.0
      %1165 = vmatpush1.xpose.msra.mxu0 0.0
      %1166 = vmatprep.subr.mxu0 0.0
      %1167 = vmatpush1.xpose.msra.mxu0 0.0
      %1168 = vmatprep.subr.mxu0 0.0
      %1169 = vmatpush1.xpose.msra.mxu0 0.0
      %1170 = vmatprep.subr.mxu0 0.0
      %1171 = vmatpush1.xpose.msra.mxu0 0.0
      %1172 = vmatprep.subr.mxu0 0.0
      %1173 = vmatpush1.xpose.msra.mxu0 0.0
      %1174 = vmatprep.subr.mxu0 0.0
      %1175 = vmatpush1.xpose.msra.mxu0 0.0
      %1176 = vmatprep.subr.mxu0 0.0
      %1177 = vmatpush1.xpose.msra.mxu0 0.0
      %1178 = vmatprep.subr.mxu0 0.0
      %1179 = vmatpush1.xpose.msra.mxu0 0.0
      %1180 = vmatprep.subr.mxu0 0.0
      %1181 = vmatpush1.xpose.msra.mxu0 0.0
      %1182 = vmatprep.subr.mxu0 0.0
      %1183 = vmatpush1.xpose.msra.mxu0 0.0
      %1184 = vmatprep.subr.mxu0 0.0
      %1185 = vmatpush1.xpose.msra.mxu0 0.0
      %1186 = vmatprep.subr.mxu0 0.0
      %1187 = vmatpush1.xpose.msra.mxu0 0.0
      %1188 = vmatprep.subr.mxu0 0.0
      %1189 = vmatpush1.xpose.msra.mxu0 0.0
      %1190 = vmatprep.mubr.f32.mxu0 0.0
      %1191 = vmatmul.mubr.f32.gmra.mrb[0].mxu0 %v1094
      %v1192 = vpop.f32.mrb[0].mxu0
      %v1193 = vadd.f32 %v650, %v1192
      %v1194 = vpop.f32.mrb[0].mxu0
      %1195 = vmatprep.mubr.f32.mxu0 0.0
      %1196 = vmatmul.mubr.f32.gmra.mrb[0].mxu0 %v1096
      %v1197 = vpop.f32.mrb[0].mxu0
      %v1198 = vadd.f32 %v651, %v1197
      %v1199 = vpop.f32.mrb[0].mxu0
      %1200 = vmatprep.mubr.f32.mxu0 0.0
      %1201 = vmatmul.mubr.f32.gmra.mrb[0].mxu0 %v1098
      %v1202 = vpop.f32.mrb[0].mxu0
      %v1203 = vadd.f32 %v652, %v1202
      %v1204 = vpop.f32.mrb[0].mxu0
      %1205 = vmatprep.mubr.f32.mxu0 0.0
      %1206 = vmatmul.mubr.f32.gmra.mrb[0].mxu0 %v1100
      %v1207 = vpop.f32.mrb[0].mxu0
      %v1208 = vadd.f32 %v653, %v1207
      %v1209 = vpop.f32.mrb[0].mxu0
      %1210 = vmatprep.mubr.f32.mxu0 0.0
      %1211 = vmatmul.mubr.f32.gmra.mrb[0].mxu0 %v1102
      %v1212 = vpop.f32.mrb[0].mxu0
      %v1213 = vadd.f32 %v654, %v1212
      %v1214 = vpop.f32.mrb[0].mxu0
      %1215 = vmatprep.mubr.f32.mxu0 0.0
      %1216 = vmatmul.mubr.f32.gmra.mrb[0].mxu0 %v1104
      %v1217 = vpop.f32.mrb[0].mxu0
      %v1218 = vadd.f32 %v655, %v1217
      %v1219 = vpop.f32.mrb[0].mxu0
      %1220 = vmatprep.mubr.f32.mxu0 0.0
      %1221 = vmatmul.mubr.f32.gmra.mrb[0].mxu0 %v1106
      %v1222 = vpop.f32.mrb[0].mxu0
      %v1223 = vadd.f32 %v656, %v1222
      %v1224 = vpop.f32.mrb[0].mxu0
      %1225 = vmatprep.mubr.f32.mxu0 0.0
      %1226 = vmatmul.mubr.f32.gmra.mrb[0].mxu0 %v1108
      %v1227 = vpop.f32.mrb[0].mxu0
      %v1228 = vadd.f32 %v657, %v1227
      %v1229 = vpop.f32.mrb[0].mxu0
      %1230 = vdwg.mxu0
      %v1231 = vsel %vm820, %v1193, -inf
      %1232 = vmax.xlane.f32.xlu0 %v1231
      %v1233 = vpop.xlane.xlu0 %1232
      %v1234 = vsel %vm820, %v1198, -inf
      %1235 = vmax.xlane.f32.xlu0 %v1234
      %v1236 = vpop.xlane.xlu0 %1235
      %v1237 = vsel %vm820, %v1203, -inf
      %1238 = vmax.xlane.f32.xlu0 %v1237
      %v1239 = vpop.xlane.xlu0 %1238
      %v1240 = vsel %vm820, %v1208, -inf
      %1241 = vmax.xlane.f32.xlu0 %v1240
      %v1242 = vpop.xlane.xlu0 %1241
      %v1243 = vsel %vm820, %v1213, -inf
      %1244 = vmax.xlane.f32.xlu0 %v1243
      %v1245 = vpop.xlane.xlu0 %1244
      %v1246 = vsel %vm820, %v1218, -inf
      %1247 = vmax.xlane.f32.xlu0 %v1246
      %v1248 = vpop.xlane.xlu0 %1247
      %v1249 = vsel %vm820, %v1223, -inf
      %1250 = vmax.xlane.f32.xlu0 %v1249
      %v1251 = vpop.xlane.xlu0 %1250
      %v1252 = vsel %vm820, %v1228, -inf
      %1253 = vmax.xlane.f32.xlu0 %v1252
      %v1254 = vpop.xlane.xlu0 %1253
      %v1255 = vsub.f32 %v1193, %v1233
      %v1256 = vsub.f32 %v1198, %v1236
      %v1257 = vsub.f32 %v1203, %v1239
      %v1258 = vsub.f32 %v1208, %v1242
      %v1259 = vsub.f32 %v1213, %v1245
      %v1260 = vsub.f32 %v1218, %v1248
      %v1261 = vsub.f32 %v1223, %v1251
      %v1262 = vsub.f32 %v1228, %v1254
      %v1263 = vmul.f32 %v1255, 1.442695
      %v1264 = vpow.pop %v1263
      %v1265 = vmul.f32 %v1256, 1.442695
      %v1266 = vpow.pop %v1265
      %v1267 = vmul.f32 %v1257, 1.442695
      %v1268 = vpow.pop %v1267
      %v1269 = vmul.f32 %v1258, 1.442695
      %v1270 = vpow.pop %v1269
      %v1271 = vmul.f32 %v1259, 1.442695
      %v1272 = vpow.pop %v1271
      %v1273 = vmul.f32 %v1260, 1.442695
      %v1274 = vpow.pop %v1273
      %v1275 = vmul.f32 %v1261, 1.442695
      %v1276 = vpow.pop %v1275
      %v1277 = vmul.f32 %v1262, 1.442695
      %v1278 = vpow.pop %v1277
      %v1279 = vsel %vm820, %v1264, 0.0
      %1280 = vadd.xlane.f32.xlu0 %v1279
      %v1281 = vpop.xlane.xlu0 %1280
      %v1282 = vsel %vm820, %v1266, 0.0
      %1283 = vadd.xlane.f32.xlu0 %v1282
      %v1284 = vpop.xlane.xlu0 %1283
      %v1285 = vsel %vm820, %v1268, 0.0
      %1286 = vadd.xlane.f32.xlu0 %v1285
      %v1287 = vpop.xlane.xlu0 %1286
      %v1288 = vsel %vm820, %v1270, 0.0
      %1289 = vadd.xlane.f32.xlu0 %v1288
      %v1290 = vpop.xlane.xlu0 %1289
      %v1291 = vsel %vm820, %v1272, 0.0
      %1292 = vadd.xlane.f32.xlu0 %v1291
      %v1293 = vpop.xlane.xlu0 %1292
      %v1294 = vsel %vm820, %v1274, 0.0
      %1295 = vadd.xlane.f32.xlu0 %v1294
      %v1296 = vpop.xlane.xlu0 %1295
      %v1297 = vsel %vm820, %v1276, 0.0
      %1298 = vadd.xlane.f32.xlu0 %v1297
      %v1299 = vpop.xlane.xlu0 %1298
      %v1300 = vsel %vm820, %v1278, 0.0
      %1301 = vadd.xlane.f32.xlu0 %v1300
      %v1302 = vpop.xlane.xlu0 %1301
      %v1303 = vrcp.pop %v1281
      %v1304 = vrcp.pop %v1284
      %v1305 = vrcp.pop %v1287
      %v1306 = vrcp.pop %v1290
      %v1307 = vrcp.pop %v1293
      %v1308 = vrcp.pop %v1296
      %v1309 = vrcp.pop %v1299
      %v1310 = vrcp.pop %v1302
      %v1311 = vmul.f32 %v1264, %v1303
      %v1312 = vmul.f32 %v1266, %v1304
      %v1313 = vmul.f32 %v1268, %v1305
      %v1314 = vmul.f32 %v1270, %v1306
      %v1315 = vmul.f32 %v1272, %v1307
      %v1316 = vmul.f32 %v1274, %v1308
      %v1317 = vmul.f32 %v1276, %v1309
      %v1318 = vmul.f32 %v1278, %v1310
      %1319 = vrot.lane.b32.xlu0 %v460, 48
      %v1320 = vpop.permute.xlu0 %1319
      %1321 = vrot.lane.b32.xlu0 %v465, 48
      %v1322 = vpop.permute.xlu0 %1321
      %1323 = vrot.lane.b32.xlu0 %v470, 48
      %v1324 = vpop.permute.xlu0 %1323
      %1325 = vrot.lane.b32.xlu0 %v475, 48
      %v1326 = vpop.permute.xlu0 %1325
      %1327 = vrot.lane.b32.xlu0 %v480, 48
      %v1328 = vpop.permute.xlu0 %1327
      %1329 = vrot.lane.b32.xlu0 %v485, 48
      %v1330 = vpop.permute.xlu0 %1329
      %1331 = vrot.lane.b32.xlu0 %v490, 48
      %v1332 = vpop.permute.xlu0 %1331
      %1333 = vrot.lane.b32.xlu0 %v495, 48
      %v1334 = vpop.permute.xlu0 %1333
      %v1344 = vsel %vm820, %v1311, 0
      %v1347 = vsel %vm820, %v1312, 0
      %v1350 = vsel %vm820, %v1313, 0
      %v1353 = vsel %vm820, %v1314, 0
      %v1356 = vsel %vm820, %v1315, 0
      %v1359 = vsel %vm820, %v1316, 0
      %v1362 = vsel %vm820, %v1317, 0
      %v1365 = vsel %vm820, %v1318, 0
      %1367 = vmatprep.subr.mxu0 0.0
      %1368 = vmatpush1.msra.mxu0 %v1320
      %1369 = vmatprep.subr.mxu0 0.0
      %1370 = vmatpush1.msra.mxu0 %v1322
      %1371 = vmatprep.subr.mxu0 0.0
      %1372 = vmatpush1.msra.mxu0 %v1324
      %1373 = vmatprep.subr.mxu0 0.0
      %1374 = vmatpush1.msra.mxu0 %v1326
      %1375 = vmatprep.subr.mxu0 0.0
      %1376 = vmatpush1.msra.mxu0 %v1328
      %1377 = vmatprep.subr.mxu0 0.0
      %1378 = vmatpush1.msra.mxu0 %v1330
      %1379 = vmatprep.subr.mxu0 0.0
      %1380 = vmatpush1.msra.mxu0 %v1332
      %1381 = vmatprep.subr.mxu0 0.0
      %1382 = vmatpush1.msra.mxu0 %v1334
      %1383 = vmatprep.subr.mxu0 0.0
      %1384 = vmatpush1.msra.mxu0 0.0
      %1385 = vmatprep.subr.mxu0 0.0
      %1386 = vmatpush1.msra.mxu0 0.0
      %1387 = vmatprep.subr.mxu0 0.0
      %1388 = vmatpush1.msra.mxu0 0.0
      %1389 = vmatprep.subr.mxu0 0.0
      %1390 = vmatpush1.msra.mxu0 0.0
      %1391 = vmatprep.subr.mxu0 0.0
      %1392 = vmatpush1.msra.mxu0 0.0
      %1393 = vmatprep.subr.mxu0 0.0
      %1394 = vmatpush1.msra.mxu0 0.0
      %1395 = vmatprep.subr.mxu0 0.0
      %1396 = vmatpush1.msra.mxu0 0.0
      %1397 = vmatprep.subr.mxu0 0.0
      %1398 = vmatpush1.msra.mxu0 0.0
      %1399 = vmatprep.subr.mxu0 0.0
      %1400 = vmatpush1.msra.mxu0 0.0
      %1401 = vmatprep.subr.mxu0 0.0
      %1402 = vmatpush1.msra.mxu0 0.0
      %1403 = vmatprep.subr.mxu0 0.0
      %1404 = vmatpush1.msra.mxu0 0.0
      %1405 = vmatprep.subr.mxu0 0.0
      %1406 = vmatpush1.msra.mxu0 0.0
      %1407 = vmatprep.subr.mxu0 0.0
      %1408 = vmatpush1.msra.mxu0 0.0
      %1409 = vmatprep.subr.mxu0 0.0
      %1410 = vmatpush1.msra.mxu0 0.0
      %1411 = vmatprep.subr.mxu0 0.0
      %1412 = vmatpush1.msra.mxu0 0.0
      %1413 = vmatprep.subr.mxu0 0.0
      %1414 = vmatpush1.msra.mxu0 0.0
      %1415 = vmatprep.subr.mxu0 0.0
      %1416 = vmatpush1.msra.mxu0 0.0
      %1417 = vmatprep.subr.mxu0 0.0
      %1418 = vmatpush1.msra.mxu0 0.0
      %1419 = vmatprep.subr.mxu0 0.0
      %1420 = vmatpush1.msra.mxu0 0.0
      %1421 = vmatprep.subr.mxu0 0.0
      %1422 = vmatpush1.msra.mxu0 0.0
      %1423 = vmatprep.subr.mxu0 0.0
      %1424 = vmatpush1.msra.mxu0 0.0
      %1425 = vmatprep.subr.mxu0 0.0
      %1426 = vmatpush1.msra.mxu0 0.0
      %1427 = vmatprep.subr.mxu0 0.0
      %1428 = vmatpush1.msra.mxu0 0.0
      %1429 = vmatprep.subr.mxu0 0.0
      %1430 = vmatpush1.msra.mxu0 0.0
      %1431 = vmatprep.mubr.f32.mxu0 0.0
      %1432 = vmatmul.mubr.f32.gmra.mrb[0].mxu0 %v1344
      %v1433 = vpop.f32.mrb[0].mxu0
      %v1434 = vadd.f32 0.0, %v1433
      %v1435 = vpop.f32.mrb[0].mxu0
      %1436 = vmatprep.mubr.f32.mxu0 0.0
      %1437 = vmatmul.mubr.f32.gmra.mrb[0].mxu0 %v1347
      %v1438 = vpop.f32.mrb[0].mxu0
      %v1439 = vadd.f32 0.0, %v1438
      %v1440 = vpop.f32.mrb[0].mxu0
      %1441 = vmatprep.mubr.f32.mxu0 0.0
      %1442 = vmatmul.mubr.f32.gmra.mrb[0].mxu0 %v1350
      %v1443 = vpop.f32.mrb[0].mxu0
      %v1444 = vadd.f32 0.0, %v1443
      %v1445 = vpop.f32.mrb[0].mxu0
      %1446 = vmatprep.mubr.f32.mxu0 0.0
      %1447 = vmatmul.mubr.f32.gmra.mrb[0].mxu0 %v1353
      %v1448 = vpop.f32.mrb[0].mxu0
      %v1449 = vadd.f32 0.0, %v1448
      %v1450 = vpop.f32.mrb[0].mxu0
      %1451 = vmatprep.mubr.f32.mxu0 0.0
      %1452 = vmatmul.mubr.f32.gmra.mrb[0].mxu0 %v1356
      %v1453 = vpop.f32.mrb[0].mxu0
      %v1454 = vadd.f32 0.0, %v1453
      %v1455 = vpop.f32.mrb[0].mxu0
      %1456 = vmatprep.mubr.f32.mxu0 0.0
      %1457 = vmatmul.mubr.f32.gmra.mrb[0].mxu0 %v1359
      %v1458 = vpop.f32.mrb[0].mxu0
      %v1459 = vadd.f32 0.0, %v1458
      %v1460 = vpop.f32.mrb[0].mxu0
      %1461 = vmatprep.mubr.f32.mxu0 0.0
      %1462 = vmatmul.mubr.f32.gmra.mrb[0].mxu0 %v1362
      %v1463 = vpop.f32.mrb[0].mxu0
      %v1464 = vadd.f32 0.0, %v1463
      %v1465 = vpop.f32.mrb[0].mxu0
      %1466 = vmatprep.mubr.f32.mxu0 0.0
      %1467 = vmatmul.mubr.f32.gmra.mrb[0].mxu0 %v1365
      %v1468 = vpop.f32.mrb[0].mxu0
      %v1469 = vadd.f32 0.0, %v1468
      %v1470 = vpop.f32.mrb[0].mxu0
      %1471 = vdwg.mxu0
      %1480 = vrot.lane.b32.xlu0 %v1434, 16
      %v1481 = vpop.permute.xlu0 %1480
      %1482 = vrot.lane.b32.xlu0 %v1439, 16
      %v1483 = vpop.permute.xlu0 %1482
      %1484 = vrot.lane.b32.xlu0 %v1444, 16
      %v1485 = vpop.permute.xlu0 %1484
      %1486 = vrot.lane.b32.xlu0 %v1449, 16
      %v1487 = vpop.permute.xlu0 %1486
      %1488 = vrot.lane.b32.xlu0 %v1454, 16
      %v1489 = vpop.permute.xlu0 %1488
      %1490 = vrot.lane.b32.xlu0 %v1459, 16
      %v1491 = vpop.permute.xlu0 %1490
      %1492 = vrot.lane.b32.xlu0 %v1464, 16
      %v1493 = vpop.permute.xlu0 %1492
      %1494 = vrot.lane.b32.xlu0 %v1469, 16
      %v1495 = vpop.permute.xlu0 %1494
      %v1504 = vsel %vm682, %v1024, %v1481
      %v1505 = vsel %vm682, %v1029, %v1483
      %v1506 = vsel %vm682, %v1034, %v1485
      %v1507 = vsel %vm682, %v1039, %v1487
      %v1508 = vsel %vm682, %v1044, %v1489
      %v1509 = vsel %vm682, %v1049, %v1491
      %v1510 = vsel %vm682, %v1054, %v1493
      %v1511 = vsel %vm682, %v1059, %v1495
      %s1512 = scalar_lea.vmem %s1, 64
      %v1513 = vld [vmem:[%s1512] sm:$0xff]
      %v1514 = vld [vmem:[%s1512 + $0x8] sm:$0xff]
      %v1515 = vld [vmem:[%s1512 + $0x10] sm:$0xff]
      %v1516 = vld [vmem:[%s1512 + $0x18] sm:$0xff]
      %v1517 = vld [vmem:[%s1512 + $0x20] sm:$0xff]
      %v1518 = vld [vmem:[%s1512 + $0x28] sm:$0xff]
      %v1519 = vld [vmem:[%s1512 + $0x30] sm:$0xff]
      %v1520 = vld [vmem:[%s1512 + $0x38] sm:$0xff]
      %v1521 = vadd.f32 %v618, %v1513
      %v1522 = vadd.f32 %v619, %v1514
      %v1523 = vadd.f32 %v620, %v1515
      %v1524 = vadd.f32 %v621, %v1516
      %v1525 = vadd.f32 %v622, %v1517
      %v1526 = vadd.f32 %v623, %v1518
      %v1527 = vadd.f32 %v624, %v1519
      %v1528 = vadd.f32 %v625, %v1520
      %v1529 = vadd.f32 %v626, %v1513
      %v1530 = vadd.f32 %v627, %v1514
      %v1531 = vadd.f32 %v628, %v1515
      %v1532 = vadd.f32 %v629, %v1516
      %v1533 = vadd.f32 %v630, %v1517
      %v1534 = vadd.f32 %v631, %v1518
      %v1535 = vadd.f32 %v632, %v1519
      %v1536 = vadd.f32 %v633, %v1520
      %1545 = vrot.lane.b32.xlu0 %v500, 96
      %v1546 = vpop.permute.xlu0 %1545
      %1547 = vrot.lane.b32.xlu0 %v505, 96
      %v1548 = vpop.permute.xlu0 %1547
      %1549 = vrot.lane.b32.xlu0 %v510, 96
      %v1550 = vpop.permute.xlu0 %1549
      %1551 = vrot.lane.b32.xlu0 %v515, 96
      %v1552 = vpop.permute.xlu0 %1551
      %1553 = vrot.lane.b32.xlu0 %v520, 96
      %v1554 = vpop.permute.xlu0 %1553
      %1555 = vrot.lane.b32.xlu0 %v525, 96
      %v1556 = vpop.permute.xlu0 %1555
      %1557 = vrot.lane.b32.xlu0 %v530, 96
      %v1558 = vpop.permute.xlu0 %1557
      %1559 = vrot.lane.b32.xlu0 %v535, 96
      %v1560 = vpop.permute.xlu0 %1559
      %v1561 = vsel %vm682, %v500, 0
      %v1563 = vsel %vm682, %v505, 0
      %v1565 = vsel %vm682, %v510, 0
      %v1567 = vsel %vm682, %v515, 0
      %v1569 = vsel %vm682, %v520, 0
      %v1571 = vsel %vm682, %v525, 0
      %v1573 = vsel %vm682, %v530, 0
      %v1575 = vsel %vm682, %v535, 0
      %v1577 = vsel %vm682, %v1546, 0
      %v1579 = vsel %vm682, %v1548, 0
      %v1581 = vsel %vm682, %v1550, 0
      %v1583 = vsel %vm682, %v1552, 0
      %v1585 = vsel %vm682, %v1554, 0
      %v1587 = vsel %vm682, %v1556, 0
      %v1589 = vsel %vm682, %v1558, 0
      %v1591 = vsel %vm682, %v1560, 0
      %1593 = vmatprep.subr.mxu0 0.0
      %1594 = vmatpush1.xpose.msra.mxu0 %v1577
      %1595 = vmatprep.subr.mxu0 0.0
      %1596 = vmatpush1.xpose.msra.mxu0 %v1579
      %1597 = vmatprep.subr.mxu0 0.0
      %1598 = vmatpush1.xpose.msra.mxu0 %v1581
      %1599 = vmatprep.subr.mxu0 0.0
      %1600 = vmatpush1.xpose.msra.mxu0 %v1583
      %1601 = vmatprep.subr.mxu0 0.0
      %1602 = vmatpush1.xpose.msra.mxu0 %v1585
      %1603 = vmatprep.subr.mxu0 0.0
      %1604 = vmatpush1.xpose.msra.mxu0 %v1587
      %1605 = vmatprep.subr.mxu0 0.0
      %1606 = vmatpush1.xpose.msra.mxu0 %v1589
      %1607 = vmatprep.subr.mxu0 0.0
      %1608 = vmatpush1.xpose.msra.mxu0 %v1591
      %1609 = vmatprep.subr.mxu0 0.0
      %1610 = vmatpush1.xpose.msra.mxu0 0.0
      %1611 = vmatprep.subr.mxu0 0.0
      %1612 = vmatpush1.xpose.msra.mxu0 0.0
      %1613 = vmatprep.subr.mxu0 0.0
      %1614 = vmatpush1.xpose.msra.mxu0 0.0
      %1615 = vmatprep.subr.mxu0 0.0
      %1616 = vmatpush1.xpose.msra.mxu0 0.0
      %1617 = vmatprep.subr.mxu0 0.0
      %1618 = vmatpush1.xpose.msra.mxu0 0.0
      %1619 = vmatprep.subr.mxu0 0.0
      %1620 = vmatpush1.xpose.msra.mxu0 0.0
      %1621 = vmatprep.subr.mxu0 0.0
      %1622 = vmatpush1.xpose.msra.mxu0 0.0
      %1623 = vmatprep.subr.mxu0 0.0
      %1624 = vmatpush1.xpose.msra.mxu0 0.0
      %1625 = vmatprep.subr.mxu0 0.0
      %1626 = vmatpush1.xpose.msra.mxu0 0.0
      %1627 = vmatprep.subr.mxu0 0.0
      %1628 = vmatpush1.xpose.msra.mxu0 0.0
      %1629 = vmatprep.subr.mxu0 0.0
      %1630 = vmatpush1.xpose.msra.mxu0 0.0
      %1631 = vmatprep.subr.mxu0 0.0
      %1632 = vmatpush1.xpose.msra.mxu0 0.0
      %1633 = vmatprep.subr.mxu0 0.0
      %1634 = vmatpush1.xpose.msra.mxu0 0.0
      %1635 = vmatprep.subr.mxu0 0.0
      %1636 = vmatpush1.xpose.msra.mxu0 0.0
      %1637 = vmatprep.subr.mxu0 0.0
      %1638 = vmatpush1.xpose.msra.mxu0 0.0
      %1639 = vmatprep.subr.mxu0 0.0
      %1640 = vmatpush1.xpose.msra.mxu0 0.0
      %1641 = vmatprep.subr.mxu0 0.0
      %1642 = vmatpush1.xpose.msra.mxu0 0.0
      %1643 = vmatprep.subr.mxu0 0.0
      %1644 = vmatpush1.xpose.msra.mxu0 0.0
      %1645 = vmatprep.subr.mxu0 0.0
      %1646 = vmatpush1.xpose.msra.mxu0 0.0
      %1647 = vmatprep.subr.mxu0 0.0
      %1648 = vmatpush1.xpose.msra.mxu0 0.0
      %1649 = vmatprep.subr.mxu0 0.0
      %1650 = vmatpush1.xpose.msra.mxu0 0.0
      %1651 = vmatprep.subr.mxu0 0.0
      %1652 = vmatpush1.xpose.msra.mxu0 0.0
      %1653 = vmatprep.subr.mxu0 0.0
      %1654 = vmatpush1.xpose.msra.mxu0 0.0
      %1655 = vmatprep.subr.mxu0 0.0
      %1656 = vmatpush1.xpose.msra.mxu0 0.0
      %1657 = vmatprep.mubr.f32.mxu0 0.0
      %1658 = vmatmul.mubr.f32.gmra.mrb[0].mxu0 %v1561
      %v1659 = vpop.f32.mrb[0].mxu0
      %v1660 = vadd.f32 %v1521, %v1659
      %v1661 = vpop.f32.mrb[0].mxu0
      %1662 = vmatprep.mubr.f32.mxu0 0.0
      %1663 = vmatmul.mubr.f32.gmra.mrb[0].mxu0 %v1563
      %v1664 = vpop.f32.mrb[0].mxu0
      %v1665 = vadd.f32 %v1522, %v1664
      %v1666 = vpop.f32.mrb[0].mxu0
      %1667 = vmatprep.mubr.f32.mxu0 0.0
      %1668 = vmatmul.mubr.f32.gmra.mrb[0].mxu0 %v1565
      %v1669 = vpop.f32.mrb[0].mxu0
      %v1670 = vadd.f32 %v1523, %v1669
      %v1671 = vpop.f32.mrb[0].mxu0
      %1672 = vmatprep.mubr.f32.mxu0 0.0
      %1673 = vmatmul.mubr.f32.gmra.mrb[0].mxu0 %v1567
      %v1674 = vpop.f32.mrb[0].mxu0
      %v1675 = vadd.f32 %v1524, %v1674
      %v1676 = vpop.f32.mrb[0].mxu0
      %1677 = vmatprep.mubr.f32.mxu0 0.0
      %1678 = vmatmul.mubr.f32.gmra.mrb[0].mxu0 %v1569
      %v1679 = vpop.f32.mrb[0].mxu0
      %v1680 = vadd.f32 %v1525, %v1679
      %v1681 = vpop.f32.mrb[0].mxu0
      %1682 = vmatprep.mubr.f32.mxu0 0.0
      %1683 = vmatmul.mubr.f32.gmra.mrb[0].mxu0 %v1571
      %v1684 = vpop.f32.mrb[0].mxu0
      %v1685 = vadd.f32 %v1526, %v1684
      %v1686 = vpop.f32.mrb[0].mxu0
      %1687 = vmatprep.mubr.f32.mxu0 0.0
      %1688 = vmatmul.mubr.f32.gmra.mrb[0].mxu0 %v1573
      %v1689 = vpop.f32.mrb[0].mxu0
      %v1690 = vadd.f32 %v1527, %v1689
      %v1691 = vpop.f32.mrb[0].mxu0
      %1692 = vmatprep.mubr.f32.mxu0 0.0
      %1693 = vmatmul.mubr.f32.gmra.mrb[0].mxu0 %v1575
      %v1694 = vpop.f32.mrb[0].mxu0
      %v1695 = vadd.f32 %v1528, %v1694
      %v1696 = vpop.f32.mrb[0].mxu0
      %1697 = vdwg.mxu0
      %v1698 = vsel %vm820, %v1660, -inf
      %1699 = vmax.xlane.f32.xlu0 %v1698
      %v1700 = vpop.xlane.xlu0 %1699
      %v1701 = vsel %vm820, %v1665, -inf
      %1702 = vmax.xlane.f32.xlu0 %v1701
      %v1703 = vpop.xlane.xlu0 %1702
      %v1704 = vsel %vm820, %v1670, -inf
      %1705 = vmax.xlane.f32.xlu0 %v1704
      %v1706 = vpop.xlane.xlu0 %1705
      %v1707 = vsel %vm820, %v1675, -inf
      %1708 = vmax.xlane.f32.xlu0 %v1707
      %v1709 = vpop.xlane.xlu0 %1708
      %v1710 = vsel %vm820, %v1680, -inf
      %1711 = vmax.xlane.f32.xlu0 %v1710
      %v1712 = vpop.xlane.xlu0 %1711
      %v1713 = vsel %vm820, %v1685, -inf
      %1714 = vmax.xlane.f32.xlu0 %v1713
      %v1715 = vpop.xlane.xlu0 %1714
      %v1716 = vsel %vm820, %v1690, -inf
      %1717 = vmax.xlane.f32.xlu0 %v1716
      %v1718 = vpop.xlane.xlu0 %1717
      %v1719 = vsel %vm820, %v1695, -inf
      %1720 = vmax.xlane.f32.xlu0 %v1719
      %v1721 = vpop.xlane.xlu0 %1720
      %v1722 = vsub.f32 %v1660, %v1700
      %v1723 = vsub.f32 %v1665, %v1703
      %v1724 = vsub.f32 %v1670, %v1706
      %v1725 = vsub.f32 %v1675, %v1709
      %v1726 = vsub.f32 %v1680, %v1712
      %v1727 = vsub.f32 %v1685, %v1715
      %v1728 = vsub.f32 %v1690, %v1718
      %v1729 = vsub.f32 %v1695, %v1721
      %v1730 = vmul.f32 %v1722, 1.442695
      %v1731 = vpow.pop %v1730
      %v1732 = vmul.f32 %v1723, 1.442695
      %v1733 = vpow.pop %v1732
      %v1734 = vmul.f32 %v1724, 1.442695
      %v1735 = vpow.pop %v1734
      %v1736 = vmul.f32 %v1725, 1.442695
      %v1737 = vpow.pop %v1736
      %v1738 = vmul.f32 %v1726, 1.442695
      %v1739 = vpow.pop %v1738
      %v1740 = vmul.f32 %v1727, 1.442695
      %v1741 = vpow.pop %v1740
      %v1742 = vmul.f32 %v1728, 1.442695
      %v1743 = vpow.pop %v1742
      %v1744 = vmul.f32 %v1729, 1.442695
      %v1745 = vpow.pop %v1744
      %v1746 = vsel %vm820, %v1731, 0.0
      %1747 = vadd.xlane.f32.xlu0 %v1746
      %v1748 = vpop.xlane.xlu0 %1747
      %v1749 = vsel %vm820, %v1733, 0.0
      %1750 = vadd.xlane.f32.xlu0 %v1749
      %v1751 = vpop.xlane.xlu0 %1750
      %v1752 = vsel %vm820, %v1735, 0.0
      %1753 = vadd.xlane.f32.xlu0 %v1752
      %v1754 = vpop.xlane.xlu0 %1753
      %v1755 = vsel %vm820, %v1737, 0.0
      %1756 = vadd.xlane.f32.xlu0 %v1755
      %v1757 = vpop.xlane.xlu0 %1756
      %v1758 = vsel %vm820, %v1739, 0.0
      %1759 = vadd.xlane.f32.xlu0 %v1758
      %v1760 = vpop.xlane.xlu0 %1759
      %v1761 = vsel %vm820, %v1741, 0.0
      %1762 = vadd.xlane.f32.xlu0 %v1761
      %v1763 = vpop.xlane.xlu0 %1762
      %v1764 = vsel %vm820, %v1743, 0.0
      %1765 = vadd.xlane.f32.xlu0 %v1764
      %v1766 = vpop.xlane.xlu0 %1765
      %v1767 = vsel %vm820, %v1745, 0.0
      %1768 = vadd.xlane.f32.xlu0 %v1767
      %v1769 = vpop.xlane.xlu0 %1768
      %v1770 = vrcp.pop %v1748
      %v1771 = vrcp.pop %v1751
      %v1772 = vrcp.pop %v1754
      %v1773 = vrcp.pop %v1757
      %v1774 = vrcp.pop %v1760
      %v1775 = vrcp.pop %v1763
      %v1776 = vrcp.pop %v1766
      %v1777 = vrcp.pop %v1769
      %v1778 = vmul.f32 %v1731, %v1770
      %v1779 = vmul.f32 %v1733, %v1771
      %v1780 = vmul.f32 %v1735, %v1772
      %v1781 = vmul.f32 %v1737, %v1773
      %v1782 = vmul.f32 %v1739, %v1774
      %v1783 = vmul.f32 %v1741, %v1775
      %v1784 = vmul.f32 %v1743, %v1776
      %v1785 = vmul.f32 %v1745, %v1777
      %1786 = vrot.lane.b32.xlu0 %v500, 64
      %v1787 = vpop.permute.xlu0 %1786
      %1788 = vrot.lane.b32.xlu0 %v505, 64
      %v1789 = vpop.permute.xlu0 %1788
      %1790 = vrot.lane.b32.xlu0 %v510, 64
      %v1791 = vpop.permute.xlu0 %1790
      %1792 = vrot.lane.b32.xlu0 %v515, 64
      %v1793 = vpop.permute.xlu0 %1792
      %1794 = vrot.lane.b32.xlu0 %v520, 64
      %v1795 = vpop.permute.xlu0 %1794
      %1796 = vrot.lane.b32.xlu0 %v525, 64
      %v1797 = vpop.permute.xlu0 %1796
      %1798 = vrot.lane.b32.xlu0 %v530, 64
      %v1799 = vpop.permute.xlu0 %1798
      %1800 = vrot.lane.b32.xlu0 %v535, 64
      %v1801 = vpop.permute.xlu0 %1800
      %v1811 = vsel %vm820, %v1778, 0
      %v1814 = vsel %vm820, %v1779, 0
      %v1817 = vsel %vm820, %v1780, 0
      %v1820 = vsel %vm820, %v1781, 0
      %v1823 = vsel %vm820, %v1782, 0
      %v1826 = vsel %vm820, %v1783, 0
      %v1829 = vsel %vm820, %v1784, 0
      %v1832 = vsel %vm820, %v1785, 0
      %1834 = vmatprep.subr.mxu0 0.0
      %1835 = vmatpush1.msra.mxu0 %v1787
      %1836 = vmatprep.subr.mxu0 0.0
      %1837 = vmatpush1.msra.mxu0 %v1789
      %1838 = vmatprep.subr.mxu0 0.0
      %1839 = vmatpush1.msra.mxu0 %v1791
      %1840 = vmatprep.subr.mxu0 0.0
      %1841 = vmatpush1.msra.mxu0 %v1793
      %1842 = vmatprep.subr.mxu0 0.0
      %1843 = vmatpush1.msra.mxu0 %v1795
      %1844 = vmatprep.subr.mxu0 0.0
      %1845 = vmatpush1.msra.mxu0 %v1797
      %1846 = vmatprep.subr.mxu0 0.0
      %1847 = vmatpush1.msra.mxu0 %v1799
      %1848 = vmatprep.subr.mxu0 0.0
      %1849 = vmatpush1.msra.mxu0 %v1801
      %1850 = vmatprep.subr.mxu0 0.0
      %1851 = vmatpush1.msra.mxu0 0.0
      %1852 = vmatprep.subr.mxu0 0.0
      %1853 = vmatpush1.msra.mxu0 0.0
      %1854 = vmatprep.subr.mxu0 0.0
      %1855 = vmatpush1.msra.mxu0 0.0
      %1856 = vmatprep.subr.mxu0 0.0
      %1857 = vmatpush1.msra.mxu0 0.0
      %1858 = vmatprep.subr.mxu0 0.0
      %1859 = vmatpush1.msra.mxu0 0.0
      %1860 = vmatprep.subr.mxu0 0.0
      %1861 = vmatpush1.msra.mxu0 0.0
      %1862 = vmatprep.subr.mxu0 0.0
      %1863 = vmatpush1.msra.mxu0 0.0
      %1864 = vmatprep.subr.mxu0 0.0
      %1865 = vmatpush1.msra.mxu0 0.0
      %1866 = vmatprep.subr.mxu0 0.0
      %1867 = vmatpush1.msra.mxu0 0.0
      %1868 = vmatprep.subr.mxu0 0.0
      %1869 = vmatpush1.msra.mxu0 0.0
      %1870 = vmatprep.subr.mxu0 0.0
      %1871 = vmatpush1.msra.mxu0 0.0
      %1872 = vmatprep.subr.mxu0 0.0
      %1873 = vmatpush1.msra.mxu0 0.0
      %1874 = vmatprep.subr.mxu0 0.0
      %1875 = vmatpush1.msra.mxu0 0.0
      %1876 = vmatprep.subr.mxu0 0.0
      %1877 = vmatpush1.msra.mxu0 0.0
      %1878 = vmatprep.subr.mxu0 0.0
      %1879 = vmatpush1.msra.mxu0 0.0
      %1880 = vmatprep.subr.mxu0 0.0
      %1881 = vmatpush1.msra.mxu0 0.0
      %1882 = vmatprep.subr.mxu0 0.0
      %1883 = vmatpush1.msra.mxu0 0.0
      %1884 = vmatprep.subr.mxu0 0.0
      %1885 = vmatpush1.msra.mxu0 0.0
      %1886 = vmatprep.subr.mxu0 0.0
      %1887 = vmatpush1.msra.mxu0 0.0
      %1888 = vmatprep.subr.mxu0 0.0
      %1889 = vmatpush1.msra.mxu0 0.0
      %1890 = vmatprep.subr.mxu0 0.0
      %1891 = vmatpush1.msra.mxu0 0.0
      %1892 = vmatprep.subr.mxu0 0.0
      %1893 = vmatpush1.msra.mxu0 0.0
      %1894 = vmatprep.subr.mxu0 0.0
      %1895 = vmatpush1.msra.mxu0 0.0
      %1896 = vmatprep.subr.mxu0 0.0
      %1897 = vmatpush1.msra.mxu0 0.0
      %1898 = vmatprep.mubr.f32.mxu0 0.0
      %1899 = vmatmul.mubr.f32.gmra.mrb[0].mxu0 %v1811
      %v1900 = vpop.f32.mrb[0].mxu0
      %v1901 = vadd.f32 0.0, %v1900
      %v1902 = vpop.f32.mrb[0].mxu0
      %1903 = vmatprep.mubr.f32.mxu0 0.0
      %1904 = vmatmul.mubr.f32.gmra.mrb[0].mxu0 %v1814
      %v1905 = vpop.f32.mrb[0].mxu0
      %v1906 = vadd.f32 0.0, %v1905
      %v1907 = vpop.f32.mrb[0].mxu0
      %1908 = vmatprep.mubr.f32.mxu0 0.0
      %1909 = vmatmul.mubr.f32.gmra.mrb[0].mxu0 %v1817
      %v1910 = vpop.f32.mrb[0].mxu0
      %v1911 = vadd.f32 0.0, %v1910
      %v1912 = vpop.f32.mrb[0].mxu0
      %1913 = vmatprep.mubr.f32.mxu0 0.0
      %1914 = vmatmul.mubr.f32.gmra.mrb[0].mxu0 %v1820
      %v1915 = vpop.f32.mrb[0].mxu0
      %v1916 = vadd.f32 0.0, %v1915
      %v1917 = vpop.f32.mrb[0].mxu0
      %1918 = vmatprep.mubr.f32.mxu0 0.0
      %1919 = vmatmul.mubr.f32.gmra.mrb[0].mxu0 %v1823
      %v1920 = vpop.f32.mrb[0].mxu0
      %v1921 = vadd.f32 0.0, %v1920
      %v1922 = vpop.f32.mrb[0].mxu0
      %1923 = vmatprep.mubr.f32.mxu0 0.0
      %1924 = vmatmul.mubr.f32.gmra.mrb[0].mxu0 %v1826
      %v1925 = vpop.f32.mrb[0].mxu0
      %v1926 = vadd.f32 0.0, %v1925
      %v1927 = vpop.f32.mrb[0].mxu0
      %1928 = vmatprep.mubr.f32.mxu0 0.0
      %1929 = vmatmul.mubr.f32.gmra.mrb[0].mxu0 %v1829
      %v1930 = vpop.f32.mrb[0].mxu0
      %v1931 = vadd.f32 0.0, %v1930
      %v1932 = vpop.f32.mrb[0].mxu0
      %1933 = vmatprep.mubr.f32.mxu0 0.0
      %1934 = vmatmul.mubr.f32.gmra.mrb[0].mxu0 %v1832
      %v1935 = vpop.f32.mrb[0].mxu0
      %v1936 = vadd.f32 0.0, %v1935
      %v1937 = vpop.f32.mrb[0].mxu0
      %1938 = vdwg.mxu0
      %1939 = vrot.lane.b32.xlu0 %v500, 112
      %v1940 = vpop.permute.xlu0 %1939
      %1941 = vrot.lane.b32.xlu0 %v505, 112
      %v1942 = vpop.permute.xlu0 %1941
      %1943 = vrot.lane.b32.xlu0 %v510, 112
      %v1944 = vpop.permute.xlu0 %1943
      %1945 = vrot.lane.b32.xlu0 %v515, 112
      %v1946 = vpop.permute.xlu0 %1945
      %1947 = vrot.lane.b32.xlu0 %v520, 112
      %v1948 = vpop.permute.xlu0 %1947
      %1949 = vrot.lane.b32.xlu0 %v525, 112
      %v1950 = vpop.permute.xlu0 %1949
      %1951 = vrot.lane.b32.xlu0 %v530, 112
      %v1952 = vpop.permute.xlu0 %1951
      %1953 = vrot.lane.b32.xlu0 %v535, 112
      %v1954 = vpop.permute.xlu0 %1953
      %1955 = vrot.lane.b32.xlu0 %v500, 80
      %v1956 = vpop.permute.xlu0 %1955
      %1957 = vrot.lane.b32.xlu0 %v505, 80
      %v1958 = vpop.permute.xlu0 %1957
      %1959 = vrot.lane.b32.xlu0 %v510, 80
      %v1960 = vpop.permute.xlu0 %1959
      %1961 = vrot.lane.b32.xlu0 %v515, 80
      %v1962 = vpop.permute.xlu0 %1961
      %1963 = vrot.lane.b32.xlu0 %v520, 80
      %v1964 = vpop.permute.xlu0 %1963
      %1965 = vrot.lane.b32.xlu0 %v525, 80
      %v1966 = vpop.permute.xlu0 %1965
      %1967 = vrot.lane.b32.xlu0 %v530, 80
      %v1968 = vpop.permute.xlu0 %1967
      %1969 = vrot.lane.b32.xlu0 %v535, 80
      %v1970 = vpop.permute.xlu0 %1969
      %v1971 = vsel %vm682, %v1940, 0
      %v1973 = vsel %vm682, %v1942, 0
      %v1975 = vsel %vm682, %v1944, 0
      %v1977 = vsel %vm682, %v1946, 0
      %v1979 = vsel %vm682, %v1948, 0
      %v1981 = vsel %vm682, %v1950, 0
      %v1983 = vsel %vm682, %v1952, 0
      %v1985 = vsel %vm682, %v1954, 0
      %v1987 = vsel %vm682, %v1956, 0
      %v1989 = vsel %vm682, %v1958, 0
      %v1991 = vsel %vm682, %v1960, 0
      %v1993 = vsel %vm682, %v1962, 0
      %v1995 = vsel %vm682, %v1964, 0
      %v1997 = vsel %vm682, %v1966, 0
      %v1999 = vsel %vm682, %v1968, 0
      %v2001 = vsel %vm682, %v1970, 0
      %2003 = vmatprep.subr.mxu0 0.0
      %2004 = vmatpush1.xpose.msra.mxu0 %v1987
      %2005 = vmatprep.subr.mxu0 0.0
      %2006 = vmatpush1.xpose.msra.mxu0 %v1989
      %2007 = vmatprep.subr.mxu0 0.0
      %2008 = vmatpush1.xpose.msra.mxu0 %v1991
      %2009 = vmatprep.subr.mxu0 0.0
      %2010 = vmatpush1.xpose.msra.mxu0 %v1993
      %2011 = vmatprep.subr.mxu0 0.0
      %2012 = vmatpush1.xpose.msra.mxu0 %v1995
      %2013 = vmatprep.subr.mxu0 0.0
      %2014 = vmatpush1.xpose.msra.mxu0 %v1997
      %2015 = vmatprep.subr.mxu0 0.0
      %2016 = vmatpush1.xpose.msra.mxu0 %v1999
      %2017 = vmatprep.subr.mxu0 0.0
      %2018 = vmatpush1.xpose.msra.mxu0 %v2001
      %2019 = vmatprep.subr.mxu0 0.0
      %2020 = vmatpush1.xpose.msra.mxu0 0.0
      %2021 = vmatprep.subr.mxu0 0.0
      %2022 = vmatpush1.xpose.msra.mxu0 0.0
      %2023 = vmatprep.subr.mxu0 0.0
      %2024 = vmatpush1.xpose.msra.mxu0 0.0
      %2025 = vmatprep.subr.mxu0 0.0
      %2026 = vmatpush1.xpose.msra.mxu0 0.0
      %2027 = vmatprep.subr.mxu0 0.0
      %2028 = vmatpush1.xpose.msra.mxu0 0.0
      %2029 = vmatprep.subr.mxu0 0.0
      %2030 = vmatpush1.xpose.msra.mxu0 0.0
      %2031 = vmatprep.subr.mxu0 0.0
      %2032 = vmatpush1.xpose.msra.mxu0 0.0
      %2033 = vmatprep.subr.mxu0 0.0
      %2034 = vmatpush1.xpose.msra.mxu0 0.0
      %2035 = vmatprep.subr.mxu0 0.0
      %2036 = vmatpush1.xpose.msra.mxu0 0.0
      %2037 = vmatprep.subr.mxu0 0.0
      %2038 = vmatpush1.xpose.msra.mxu0 0.0
      %2039 = vmatprep.subr.mxu0 0.0
      %2040 = vmatpush1.xpose.msra.mxu0 0.0
      %2041 = vmatprep.subr.mxu0 0.0
      %2042 = vmatpush1.xpose.msra.mxu0 0.0
      %2043 = vmatprep.subr.mxu0 0.0
      %2044 = vmatpush1.xpose.msra.mxu0 0.0
      %2045 = vmatprep.subr.mxu0 0.0
      %2046 = vmatpush1.xpose.msra.mxu0 0.0
      %2047 = vmatprep.subr.mxu0 0.0
      %2048 = vmatpush1.xpose.msra.mxu0 0.0
      %2049 = vmatprep.subr.mxu0 0.0
      %2050 = vmatpush1.xpose.msra.mxu0 0.0
      %2051 = vmatprep.subr.mxu0 0.0
      %2052 = vmatpush1.xpose.msra.mxu0 0.0
      %2053 = vmatprep.subr.mxu0 0.0
      %2054 = vmatpush1.xpose.msra.mxu0 0.0
      %2055 = vmatprep.subr.mxu0 0.0
      %2056 = vmatpush1.xpose.msra.mxu0 0.0
      %2057 = vmatprep.subr.mxu0 0.0
      %2058 = vmatpush1.xpose.msra.mxu0 0.0
      %2059 = vmatprep.subr.mxu0 0.0
      %2060 = vmatpush1.xpose.msra.mxu0 0.0
      %2061 = vmatprep.subr.mxu0 0.0
      %2062 = vmatpush1.xpose.msra.mxu0 0.0
      %2063 = vmatprep.subr.mxu0 0.0
      %2064 = vmatpush1.xpose.msra.mxu0 0.0
      %2065 = vmatprep.subr.mxu0 0.0
      %2066 = vmatpush1.xpose.msra.mxu0 0.0
      %2067 = vmatprep.mubr.f32.mxu0 0.0
      %2068 = vmatmul.mubr.f32.gmra.mrb[0].mxu0 %v1971
      %v2069 = vpop.f32.mrb[0].mxu0
      %v2070 = vadd.f32 %v1529, %v2069
      %v2071 = vpop.f32.mrb[0].mxu0
      %2072 = vmatprep.mubr.f32.mxu0 0.0
      %2073 = vmatmul.mubr.f32.gmra.mrb[0].mxu0 %v1973
      %v2074 = vpop.f32.mrb[0].mxu0
      %v2075 = vadd.f32 %v1530, %v2074
      %v2076 = vpop.f32.mrb[0].mxu0
      %2077 = vmatprep.mubr.f32.mxu0 0.0
      %2078 = vmatmul.mubr.f32.gmra.mrb[0].mxu0 %v1975
      %v2079 = vpop.f32.mrb[0].mxu0
      %v2080 = vadd.f32 %v1531, %v2079
      %v2081 = vpop.f32.mrb[0].mxu0
      %2082 = vmatprep.mubr.f32.mxu0 0.0
      %2083 = vmatmul.mubr.f32.gmra.mrb[0].mxu0 %v1977
      %v2084 = vpop.f32.mrb[0].mxu0
      %v2085 = vadd.f32 %v1532, %v2084
      %v2086 = vpop.f32.mrb[0].mxu0
      %2087 = vmatprep.mubr.f32.mxu0 0.0
      %2088 = vmatmul.mubr.f32.gmra.mrb[0].mxu0 %v1979
      %v2089 = vpop.f32.mrb[0].mxu0
      %v2090 = vadd.f32 %v1533, %v2089
      %v2091 = vpop.f32.mrb[0].mxu0
      %2092 = vmatprep.mubr.f32.mxu0 0.0
      %2093 = vmatmul.mubr.f32.gmra.mrb[0].mxu0 %v1981
      %v2094 = vpop.f32.mrb[0].mxu0
      %v2095 = vadd.f32 %v1534, %v2094
      %v2096 = vpop.f32.mrb[0].mxu0
      %2097 = vmatprep.mubr.f32.mxu0 0.0
      %2098 = vmatmul.mubr.f32.gmra.mrb[0].mxu0 %v1983
      %v2099 = vpop.f32.mrb[0].mxu0
      %v2100 = vadd.f32 %v1535, %v2099
      %v2101 = vpop.f32.mrb[0].mxu0
      %2102 = vmatprep.mubr.f32.mxu0 0.0
      %2103 = vmatmul.mubr.f32.gmra.mrb[0].mxu0 %v1985
      %v2104 = vpop.f32.mrb[0].mxu0
      %v2105 = vadd.f32 %v1536, %v2104
      %v2106 = vpop.f32.mrb[0].mxu0
      %2107 = vdwg.mxu0
      %v2108 = vsel %vm820, %v2070, -inf
      %2109 = vmax.xlane.f32.xlu0 %v2108
      %v2110 = vpop.xlane.xlu0 %2109
      %v2111 = vsel %vm820, %v2075, -inf
      %2112 = vmax.xlane.f32.xlu0 %v2111
      %v2113 = vpop.xlane.xlu0 %2112
      %v2114 = vsel %vm820, %v2080, -inf
      %2115 = vmax.xlane.f32.xlu0 %v2114
      %v2116 = vpop.xlane.xlu0 %2115
      %v2117 = vsel %vm820, %v2085, -inf
      %2118 = vmax.xlane.f32.xlu0 %v2117
      %v2119 = vpop.xlane.xlu0 %2118
      %v2120 = vsel %vm820, %v2090, -inf
      %2121 = vmax.xlane.f32.xlu0 %v2120
      %v2122 = vpop.xlane.xlu0 %2121
      %v2123 = vsel %vm820, %v2095, -inf
      %2124 = vmax.xlane.f32.xlu0 %v2123
      %v2125 = vpop.xlane.xlu0 %2124
      %v2126 = vsel %vm820, %v2100, -inf
      %2127 = vmax.xlane.f32.xlu0 %v2126
      %v2128 = vpop.xlane.xlu0 %2127
      %v2129 = vsel %vm820, %v2105, -inf
      %2130 = vmax.xlane.f32.xlu0 %v2129
      %v2131 = vpop.xlane.xlu0 %2130
      %v2132 = vsub.f32 %v2070, %v2110
      %v2133 = vsub.f32 %v2075, %v2113
      %v2134 = vsub.f32 %v2080, %v2116
      %v2135 = vsub.f32 %v2085, %v2119
      %v2136 = vsub.f32 %v2090, %v2122
      %v2137 = vsub.f32 %v2095, %v2125
      %v2138 = vsub.f32 %v2100, %v2128
      %v2139 = vsub.f32 %v2105, %v2131
      %v2140 = vmul.f32 %v2132, 1.442695
      %v2141 = vpow.pop %v2140
      %v2142 = vmul.f32 %v2133, 1.442695
      %v2143 = vpow.pop %v2142
      %v2144 = vmul.f32 %v2134, 1.442695
      %v2145 = vpow.pop %v2144
      %v2146 = vmul.f32 %v2135, 1.442695
      %v2147 = vpow.pop %v2146
      %v2148 = vmul.f32 %v2136, 1.442695
      %v2149 = vpow.pop %v2148
      %v2150 = vmul.f32 %v2137, 1.442695
      %v2151 = vpow.pop %v2150
      %v2152 = vmul.f32 %v2138, 1.442695
      %v2153 = vpow.pop %v2152
      %v2154 = vmul.f32 %v2139, 1.442695
      %v2155 = vpow.pop %v2154
      %v2156 = vsel %vm820, %v2141, 0.0
      %2157 = vadd.xlane.f32.xlu0 %v2156
      %v2158 = vpop.xlane.xlu0 %2157
      %v2159 = vsel %vm820, %v2143, 0.0
      %2160 = vadd.xlane.f32.xlu0 %v2159
      %v2161 = vpop.xlane.xlu0 %2160
      %v2162 = vsel %vm820, %v2145, 0.0
      %2163 = vadd.xlane.f32.xlu0 %v2162
      %v2164 = vpop.xlane.xlu0 %2163
      %v2165 = vsel %vm820, %v2147, 0.0
      %2166 = vadd.xlane.f32.xlu0 %v2165
      %v2167 = vpop.xlane.xlu0 %2166
      %v2168 = vsel %vm820, %v2149, 0.0
      %2169 = vadd.xlane.f32.xlu0 %v2168
      %v2170 = vpop.xlane.xlu0 %2169
      %v2171 = vsel %vm820, %v2151, 0.0
      %2172 = vadd.xlane.f32.xlu0 %v2171
      %v2173 = vpop.xlane.xlu0 %2172
      %v2174 = vsel %vm820, %v2153, 0.0
      %2175 = vadd.xlane.f32.xlu0 %v2174
      %v2176 = vpop.xlane.xlu0 %2175
      %v2177 = vsel %vm820, %v2155, 0.0
      %2178 = vadd.xlane.f32.xlu0 %v2177
      %v2179 = vpop.xlane.xlu0 %2178
      %v2180 = vrcp.pop %v2158
      %v2181 = vrcp.pop %v2161
      %v2182 = vrcp.pop %v2164
      %v2183 = vrcp.pop %v2167
      %v2184 = vrcp.pop %v2170
      %v2185 = vrcp.pop %v2173
      %v2186 = vrcp.pop %v2176
      %v2187 = vrcp.pop %v2179
      %v2188 = vmul.f32 %v2141, %v2180
      %v2189 = vmul.f32 %v2143, %v2181
      %v2190 = vmul.f32 %v2145, %v2182
      %v2191 = vmul.f32 %v2147, %v2183
      %v2192 = vmul.f32 %v2149, %v2184
      %v2193 = vmul.f32 %v2151, %v2185
      %v2194 = vmul.f32 %v2153, %v2186
      %v2195 = vmul.f32 %v2155, %v2187
      %2196 = vrot.lane.b32.xlu0 %v500, 48
      %v2197 = vpop.permute.xlu0 %2196
      %2198 = vrot.lane.b32.xlu0 %v505, 48
      %v2199 = vpop.permute.xlu0 %2198
      %2200 = vrot.lane.b32.xlu0 %v510, 48
      %v2201 = vpop.permute.xlu0 %2200
      %2202 = vrot.lane.b32.xlu0 %v515, 48
      %v2203 = vpop.permute.xlu0 %2202
      %2204 = vrot.lane.b32.xlu0 %v520, 48
      %v2205 = vpop.permute.xlu0 %2204
      %2206 = vrot.lane.b32.xlu0 %v525, 48
      %v2207 = vpop.permute.xlu0 %2206
      %2208 = vrot.lane.b32.xlu0 %v530, 48
      %v2209 = vpop.permute.xlu0 %2208
      %2210 = vrot.lane.b32.xlu0 %v535, 48
      %v2211 = vpop.permute.xlu0 %2210
      %v2221 = vsel %vm820, %v2188, 0
      %v2224 = vsel %vm820, %v2189, 0
      %v2227 = vsel %vm820, %v2190, 0
      %v2230 = vsel %vm820, %v2191, 0
      %v2233 = vsel %vm820, %v2192, 0
      %v2236 = vsel %vm820, %v2193, 0
      %v2239 = vsel %vm820, %v2194, 0
      %v2242 = vsel %vm820, %v2195, 0
      %2244 = vmatprep.subr.mxu0 0.0
      %2245 = vmatpush1.msra.mxu0 %v2197
      %2246 = vmatprep.subr.mxu0 0.0
      %2247 = vmatpush1.msra.mxu0 %v2199
      %2248 = vmatprep.subr.mxu0 0.0
      %2249 = vmatpush1.msra.mxu0 %v2201
      %2250 = vmatprep.subr.mxu0 0.0
      %2251 = vmatpush1.msra.mxu0 %v2203
      %2252 = vmatprep.subr.mxu0 0.0
      %2253 = vmatpush1.msra.mxu0 %v2205
      %2254 = vmatprep.subr.mxu0 0.0
      %2255 = vmatpush1.msra.mxu0 %v2207
      %2256 = vmatprep.subr.mxu0 0.0
      %2257 = vmatpush1.msra.mxu0 %v2209
      %2258 = vmatprep.subr.mxu0 0.0
      %2259 = vmatpush1.msra.mxu0 %v2211
      %2260 = vmatprep.subr.mxu0 0.0
      %2261 = vmatpush1.msra.mxu0 0.0
      %2262 = vmatprep.subr.mxu0 0.0
      %2263 = vmatpush1.msra.mxu0 0.0
      %2264 = vmatprep.subr.mxu0 0.0
      %2265 = vmatpush1.msra.mxu0 0.0
      %2266 = vmatprep.subr.mxu0 0.0
      %2267 = vmatpush1.msra.mxu0 0.0
      %2268 = vmatprep.subr.mxu0 0.0
      %2269 = vmatpush1.msra.mxu0 0.0
      %2270 = vmatprep.subr.mxu0 0.0
      %2271 = vmatpush1.msra.mxu0 0.0
      %2272 = vmatprep.subr.mxu0 0.0
      %2273 = vmatpush1.msra.mxu0 0.0
      %2274 = vmatprep.subr.mxu0 0.0
      %2275 = vmatpush1.msra.mxu0 0.0
      %2276 = vmatprep.subr.mxu0 0.0
      %2277 = vmatpush1.msra.mxu0 0.0
      %2278 = vmatprep.subr.mxu0 0.0
      %2279 = vmatpush1.msra.mxu0 0.0
      %2280 = vmatprep.subr.mxu0 0.0
      %2281 = vmatpush1.msra.mxu0 0.0
      %2282 = vmatprep.subr.mxu0 0.0
      %2283 = vmatpush1.msra.mxu0 0.0
      %2284 = vmatprep.subr.mxu0 0.0
      %2285 = vmatpush1.msra.mxu0 0.0
      %2286 = vmatprep.subr.mxu0 0.0
      %2287 = vmatpush1.msra.mxu0 0.0
      %2288 = vmatprep.subr.mxu0 0.0
      %2289 = vmatpush1.msra.mxu0 0.0
      %2290 = vmatprep.subr.mxu0 0.0
      %2291 = vmatpush1.msra.mxu0 0.0
      %2292 = vmatprep.subr.mxu0 0.0
      %2293 = vmatpush1.msra.mxu0 0.0
      %2294 = vmatprep.subr.mxu0 0.0
      %2295 = vmatpush1.msra.mxu0 0.0
      %2296 = vmatprep.subr.mxu0 0.0
      %2297 = vmatpush1.msra.mxu0 0.0
      %2298 = vmatprep.subr.mxu0 0.0
      %2299 = vmatpush1.msra.mxu0 0.0
      %2300 = vmatprep.subr.mxu0 0.0
      %2301 = vmatpush1.msra.mxu0 0.0
      %2302 = vmatprep.subr.mxu0 0.0
      %2303 = vmatpush1.msra.mxu0 0.0
      %2304 = vmatprep.subr.mxu0 0.0
      %2305 = vmatpush1.msra.mxu0 0.0
      %2306 = vmatprep.subr.mxu0 0.0
      %2307 = vmatpush1.msra.mxu0 0.0
      %2308 = vmatprep.mubr.f32.mxu0 0.0
      %2309 = vmatmul.mubr.f32.gmra.mrb[0].mxu0 %v2221
      %v2310 = vpop.f32.mrb[0].mxu0
      %v2311 = vadd.f32 0.0, %v2310
      %v2312 = vpop.f32.mrb[0].mxu0
      %2313 = vmatprep.mubr.f32.mxu0 0.0
      %2314 = vmatmul.mubr.f32.gmra.mrb[0].mxu0 %v2224
      %v2315 = vpop.f32.mrb[0].mxu0
      %v2316 = vadd.f32 0.0, %v2315
      %v2317 = vpop.f32.mrb[0].mxu0
      %2318 = vmatprep.mubr.f32.mxu0 0.0
      %2319 = vmatmul.mubr.f32.gmra.mrb[0].mxu0 %v2227
      %v2320 = vpop.f32.mrb[0].mxu0
      %v2321 = vadd.f32 0.0, %v2320
      %v2322 = vpop.f32.mrb[0].mxu0
      %2323 = vmatprep.mubr.f32.mxu0 0.0
      %2324 = vmatmul.mubr.f32.gmra.mrb[0].mxu0 %v2230
      %v2325 = vpop.f32.mrb[0].mxu0
      %v2326 = vadd.f32 0.0, %v2325
      %v2327 = vpop.f32.mrb[0].mxu0
      %2328 = vmatprep.mubr.f32.mxu0 0.0
      %2329 = vmatmul.mubr.f32.gmra.mrb[0].mxu0 %v2233
      %v2330 = vpop.f32.mrb[0].mxu0
      %v2331 = vadd.f32 0.0, %v2330
      %v2332 = vpop.f32.mrb[0].mxu0
      %2333 = vmatprep.mubr.f32.mxu0 0.0
      %2334 = vmatmul.mubr.f32.gmra.mrb[0].mxu0 %v2236
      %v2335 = vpop.f32.mrb[0].mxu0
      %v2336 = vadd.f32 0.0, %v2335
      %v2337 = vpop.f32.mrb[0].mxu0
      %2338 = vmatprep.mubr.f32.mxu0 0.0
      %2339 = vmatmul.mubr.f32.gmra.mrb[0].mxu0 %v2239
      %v2340 = vpop.f32.mrb[0].mxu0
      %v2341 = vadd.f32 0.0, %v2340
      %v2342 = vpop.f32.mrb[0].mxu0
      %2343 = vmatprep.mubr.f32.mxu0 0.0
      %2344 = vmatmul.mubr.f32.gmra.mrb[0].mxu0 %v2242
      %v2345 = vpop.f32.mrb[0].mxu0
      %v2346 = vadd.f32 0.0, %v2345
      %v2347 = vpop.f32.mrb[0].mxu0
      %2348 = vdwg.mxu0
      %2357 = vrot.lane.b32.xlu0 %v2311, 16
      %v2358 = vpop.permute.xlu0 %2357
      %2359 = vrot.lane.b32.xlu0 %v2316, 16
      %v2360 = vpop.permute.xlu0 %2359
      %2361 = vrot.lane.b32.xlu0 %v2321, 16
      %v2362 = vpop.permute.xlu0 %2361
      %2363 = vrot.lane.b32.xlu0 %v2326, 16
      %v2364 = vpop.permute.xlu0 %2363
      %2365 = vrot.lane.b32.xlu0 %v2331, 16
      %v2366 = vpop.permute.xlu0 %2365
      %2367 = vrot.lane.b32.xlu0 %v2336, 16
      %v2368 = vpop.permute.xlu0 %2367
      %2369 = vrot.lane.b32.xlu0 %v2341, 16
      %v2370 = vpop.permute.xlu0 %2369
      %2371 = vrot.lane.b32.xlu0 %v2346, 16
      %v2372 = vpop.permute.xlu0 %2371
      %v2381 = vsel %vm682, %v1901, %v2358
      %v2382 = vsel %vm682, %v1906, %v2360
      %v2383 = vsel %vm682, %v1911, %v2362
      %v2384 = vsel %vm682, %v1916, %v2364
      %v2385 = vsel %vm682, %v1921, %v2366
      %v2386 = vsel %vm682, %v1926, %v2368
      %v2387 = vsel %vm682, %v1931, %v2370
      %v2388 = vsel %vm682, %v1936, %v2372
      %s2389 = scalar_lea.vmem %s1, 128
      %v2390 = vld [vmem:[%s2389] sm:$0xff]
      %v2391 = vld [vmem:[%s2389 + $0x8] sm:$0xff]
      %v2392 = vld [vmem:[%s2389 + $0x10] sm:$0xff]
      %v2393 = vld [vmem:[%s2389 + $0x18] sm:$0xff]
      %v2394 = vld [vmem:[%s2389 + $0x20] sm:$0xff]
      %v2395 = vld [vmem:[%s2389 + $0x28] sm:$0xff]
      %v2396 = vld [vmem:[%s2389 + $0x30] sm:$0xff]
      %v2397 = vld [vmem:[%s2389 + $0x38] sm:$0xff]
      %v2398 = vadd.f32 %v618, %v2390
      %v2399 = vadd.f32 %v619, %v2391
      %v2400 = vadd.f32 %v620, %v2392
      %v2401 = vadd.f32 %v621, %v2393
      %v2402 = vadd.f32 %v622, %v2394
      %v2403 = vadd.f32 %v623, %v2395
      %v2404 = vadd.f32 %v624, %v2396
      %v2405 = vadd.f32 %v625, %v2397
      %v2406 = vadd.f32 %v626, %v2390
      %v2407 = vadd.f32 %v627, %v2391
      %v2408 = vadd.f32 %v628, %v2392
      %v2409 = vadd.f32 %v629, %v2393
      %v2410 = vadd.f32 %v630, %v2394
      %v2411 = vadd.f32 %v631, %v2395
      %v2412 = vadd.f32 %v632, %v2396
      %v2413 = vadd.f32 %v633, %v2397
      %2422 = vrot.lane.b32.xlu0 %v540, 96
      %v2423 = vpop.permute.xlu0 %2422
      %2424 = vrot.lane.b32.xlu0 %v545, 96
      %v2425 = vpop.permute.xlu0 %2424
      %2426 = vrot.lane.b32.xlu0 %v550, 96
      %v2427 = vpop.permute.xlu0 %2426
      %2428 = vrot.lane.b32.xlu0 %v555, 96
      %v2429 = vpop.permute.xlu0 %2428
      %2430 = vrot.lane.b32.xlu0 %v560, 96
      %v2431 = vpop.permute.xlu0 %2430
      %2432 = vrot.lane.b32.xlu0 %v565, 96
      %v2433 = vpop.permute.xlu0 %2432
      %2434 = vrot.lane.b32.xlu0 %v570, 96
      %v2435 = vpop.permute.xlu0 %2434
      %2436 = vrot.lane.b32.xlu0 %v575, 96
      %v2437 = vpop.permute.xlu0 %2436
      %v2438 = vsel %vm682, %v540, 0
      %v2440 = vsel %vm682, %v545, 0
      %v2442 = vsel %vm682, %v550, 0
      %v2444 = vsel %vm682, %v555, 0
      %v2446 = vsel %vm682, %v560, 0
      %v2448 = vsel %vm682, %v565, 0
      %v2450 = vsel %vm682, %v570, 0
      %v2452 = vsel %vm682, %v575, 0
      %v2454 = vsel %vm682, %v2423, 0
      %v2456 = vsel %vm682, %v2425, 0
      %v2458 = vsel %vm682, %v2427, 0
      %v2460 = vsel %vm682, %v2429, 0
      %v2462 = vsel %vm682, %v2431, 0
      %v2464 = vsel %vm682, %v2433, 0
      %v2466 = vsel %vm682, %v2435, 0
      %v2468 = vsel %vm682, %v2437, 0
      %2470 = vmatprep.subr.mxu0 0.0
      %2471 = vmatpush1.xpose.msra.mxu0 %v2454
      %2472 = vmatprep.subr.mxu0 0.0
      %2473 = vmatpush1.xpose.msra.mxu0 %v2456
      %2474 = vmatprep.subr.mxu0 0.0
      %2475 = vmatpush1.xpose.msra.mxu0 %v2458
      %2476 = vmatprep.subr.mxu0 0.0
      %2477 = vmatpush1.xpose.msra.mxu0 %v2460
      %2478 = vmatprep.subr.mxu0 0.0
      %2479 = vmatpush1.xpose.msra.mxu0 %v2462
      %2480 = vmatprep.subr.mxu0 0.0
      %2481 = vmatpush1.xpose.msra.mxu0 %v2464
      %2482 = vmatprep.subr.mxu0 0.0
      %2483 = vmatpush1.xpose.msra.mxu0 %v2466
      %2484 = vmatprep.subr.mxu0 0.0
      %2485 = vmatpush1.xpose.msra.mxu0 %v2468
      %2486 = vmatprep.subr.mxu0 0.0
      %2487 = vmatpush1.xpose.msra.mxu0 0.0
      %2488 = vmatprep.subr.mxu0 0.0
      %2489 = vmatpush1.xpose.msra.mxu0 0.0
      %2490 = vmatprep.subr.mxu0 0.0
      %2491 = vmatpush1.xpose.msra.mxu0 0.0
      %2492 = vmatprep.subr.mxu0 0.0
      %2493 = vmatpush1.xpose.msra.mxu0 0.0
      %2494 = vmatprep.subr.mxu0 0.0
      %2495 = vmatpush1.xpose.msra.mxu0 0.0
      %2496 = vmatprep.subr.mxu0 0.0
      %2497 = vmatpush1.xpose.msra.mxu0 0.0
      %2498 = vmatprep.subr.mxu0 0.0
      %2499 = vmatpush1.xpose.msra.mxu0 0.0
      %2500 = vmatprep.subr.mxu0 0.0
      %2501 = vmatpush1.xpose.msra.mxu0 0.0
      %2502 = vmatprep.subr.mxu0 0.0
      %2503 = vmatpush1.xpose.msra.mxu0 0.0
      %2504 = vmatprep.subr.mxu0 0.0
      %2505 = vmatpush1.xpose.msra.mxu0 0.0
      %2506 = vmatprep.subr.mxu0 0.0
      %2507 = vmatpush1.xpose.msra.mxu0 0.0
      %2508 = vmatprep.subr.mxu0 0.0
      %2509 = vmatpush1.xpose.msra.mxu0 0.0
      %2510 = vmatprep.subr.mxu0 0.0
      %2511 = vmatpush1.xpose.msra.mxu0 0.0
      %2512 = vmatprep.subr.mxu0 0.0
      %2513 = vmatpush1.xpose.msra.mxu0 0.0
      %2514 = vmatprep.subr.mxu0 0.0
      %2515 = vmatpush1.xpose.msra.mxu0 0.0
      %2516 = vmatprep.subr.mxu0 0.0
      %2517 = vmatpush1.xpose.msra.mxu0 0.0
      %2518 = vmatprep.subr.mxu0 0.0
      %2519 = vmatpush1.xpose.msra.mxu0 0.0
      %2520 = vmatprep.subr.mxu0 0.0
      %2521 = vmatpush1.xpose.msra.mxu0 0.0
      %2522 = vmatprep.subr.mxu0 0.0
      %2523 = vmatpush1.xpose.msra.mxu0 0.0
      %2524 = vmatprep.subr.mxu0 0.0
      %2525 = vmatpush1.xpose.msra.mxu0 0.0
      %2526 = vmatprep.subr.mxu0 0.0
      %2527 = vmatpush1.xpose.msra.mxu0 0.0
      %2528 = vmatprep.subr.mxu0 0.0
      %2529 = vmatpush1.xpose.msra.mxu0 0.0
      %2530 = vmatprep.subr.mxu0 0.0
      %2531 = vmatpush1.xpose.msra.mxu0 0.0
      %2532 = vmatprep.subr.mxu0 0.0
      %2533 = vmatpush1.xpose.msra.mxu0 0.0
      %2534 = vmatprep.mubr.f32.mxu0 0.0
      %2535 = vmatmul.mubr.f32.gmra.mrb[0].mxu0 %v2438
      %v2536 = vpop.f32.mrb[0].mxu0
      %v2537 = vadd.f32 %v2398, %v2536
      %v2538 = vpop.f32.mrb[0].mxu0
      %2539 = vmatprep.mubr.f32.mxu0 0.0
      %2540 = vmatmul.mubr.f32.gmra.mrb[0].mxu0 %v2440
      %v2541 = vpop.f32.mrb[0].mxu0
      %v2542 = vadd.f32 %v2399, %v2541
      %v2543 = vpop.f32.mrb[0].mxu0
      %2544 = vmatprep.mubr.f32.mxu0 0.0
      %2545 = vmatmul.mubr.f32.gmra.mrb[0].mxu0 %v2442
      %v2546 = vpop.f32.mrb[0].mxu0
      %v2547 = vadd.f32 %v2400, %v2546
      %v2548 = vpop.f32.mrb[0].mxu0
      %2549 = vmatprep.mubr.f32.mxu0 0.0
      %2550 = vmatmul.mubr.f32.gmra.mrb[0].mxu0 %v2444
      %v2551 = vpop.f32.mrb[0].mxu0
      %v2552 = vadd.f32 %v2401, %v2551
      %v2553 = vpop.f32.mrb[0].mxu0
      %2554 = vmatprep.mubr.f32.mxu0 0.0
      %2555 = vmatmul.mubr.f32.gmra.mrb[0].mxu0 %v2446
      %v2556 = vpop.f32.mrb[0].mxu0
      %v2557 = vadd.f32 %v2402, %v2556
      %v2558 = vpop.f32.mrb[0].mxu0
      %2559 = vmatprep.mubr.f32.mxu0 0.0
      %2560 = vmatmul.mubr.f32.gmra.mrb[0].mxu0 %v2448
      %v2561 = vpop.f32.mrb[0].mxu0
      %v2562 = vadd.f32 %v2403, %v2561
      %v2563 = vpop.f32.mrb[0].mxu0
      %2564 = vmatprep.mubr.f32.mxu0 0.0
      %2565 = vmatmul.mubr.f32.gmra.mrb[0].mxu0 %v2450
      %v2566 = vpop.f32.mrb[0].mxu0
      %v2567 = vadd.f32 %v2404, %v2566
      %v2568 = vpop.f32.mrb[0].mxu0
      %2569 = vmatprep.mubr.f32.mxu0 0.0
      %2570 = vmatmul.mubr.f32.gmra.mrb[0].mxu0 %v2452
      %v2571 = vpop.f32.mrb[0].mxu0
      %v2572 = vadd.f32 %v2405, %v2571
      %v2573 = vpop.f32.mrb[0].mxu0
      %2574 = vdwg.mxu0
      %v2575 = vsel %vm820, %v2537, -inf
      %2576 = vmax.xlane.f32.xlu0 %v2575
      %v2577 = vpop.xlane.xlu0 %2576
      %v2578 = vsel %vm820, %v2542, -inf
      %2579 = vmax.xlane.f32.xlu0 %v2578
      %v2580 = vpop.xlane.xlu0 %2579
      %v2581 = vsel %vm820, %v2547, -inf
      %2582 = vmax.xlane.f32.xlu0 %v2581
      %v2583 = vpop.xlane.xlu0 %2582
      %v2584 = vsel %vm820, %v2552, -inf
      %2585 = vmax.xlane.f32.xlu0 %v2584
      %v2586 = vpop.xlane.xlu0 %2585
      %v2587 = vsel %vm820, %v2557, -inf
      %2588 = vmax.xlane.f32.xlu0 %v2587
      %v2589 = vpop.xlane.xlu0 %2588
      %v2590 = vsel %vm820, %v2562, -inf
      %2591 = vmax.xlane.f32.xlu0 %v2590
      %v2592 = vpop.xlane.xlu0 %2591
      %v2593 = vsel %vm820, %v2567, -inf
      %2594 = vmax.xlane.f32.xlu0 %v2593
      %v2595 = vpop.xlane.xlu0 %2594
      %v2596 = vsel %vm820, %v2572, -inf
      %2597 = vmax.xlane.f32.xlu0 %v2596
      %v2598 = vpop.xlane.xlu0 %2597
      %v2599 = vsub.f32 %v2537, %v2577
      %v2600 = vsub.f32 %v2542, %v2580
      %v2601 = vsub.f32 %v2547, %v2583
      %v2602 = vsub.f32 %v2552, %v2586
      %v2603 = vsub.f32 %v2557, %v2589
      %v2604 = vsub.f32 %v2562, %v2592
      %v2605 = vsub.f32 %v2567, %v2595
      %v2606 = vsub.f32 %v2572, %v2598
      %v2607 = vmul.f32 %v2599, 1.442695
      %v2608 = vpow.pop %v2607
      %v2609 = vmul.f32 %v2600, 1.442695
      %v2610 = vpow.pop %v2609
      %v2611 = vmul.f32 %v2601, 1.442695
      %v2612 = vpow.pop %v2611
      %v2613 = vmul.f32 %v2602, 1.442695
      %v2614 = vpow.pop %v2613
      %v2615 = vmul.f32 %v2603, 1.442695
      %v2616 = vpow.pop %v2615
      %v2617 = vmul.f32 %v2604, 1.442695
      %v2618 = vpow.pop %v2617
      %v2619 = vmul.f32 %v2605, 1.442695
      %v2620 = vpow.pop %v2619
      %v2621 = vmul.f32 %v2606, 1.442695
      %v2622 = vpow.pop %v2621
      %v2623 = vsel %vm820, %v2608, 0.0
      %2624 = vadd.xlane.f32.xlu0 %v2623
      %v2625 = vpop.xlane.xlu0 %2624
      %v2626 = vsel %vm820, %v2610, 0.0
      %2627 = vadd.xlane.f32.xlu0 %v2626
      %v2628 = vpop.xlane.xlu0 %2627
      %v2629 = vsel %vm820, %v2612, 0.0
      %2630 = vadd.xlane.f32.xlu0 %v2629
      %v2631 = vpop.xlane.xlu0 %2630
      %v2632 = vsel %vm820, %v2614, 0.0
      %2633 = vadd.xlane.f32.xlu0 %v2632
      %v2634 = vpop.xlane.xlu0 %2633
      %v2635 = vsel %vm820, %v2616, 0.0
      %2636 = vadd.xlane.f32.xlu0 %v2635
      %v2637 = vpop.xlane.xlu0 %2636
      %v2638 = vsel %vm820, %v2618, 0.0
      %2639 = vadd.xlane.f32.xlu0 %v2638
      %v2640 = vpop.xlane.xlu0 %2639
      %v2641 = vsel %vm820, %v2620, 0.0
      %2642 = vadd.xlane.f32.xlu0 %v2641
      %v2643 = vpop.xlane.xlu0 %2642
      %v2644 = vsel %vm820, %v2622, 0.0
      %2645 = vadd.xlane.f32.xlu0 %v2644
      %v2646 = vpop.xlane.xlu0 %2645
      %v2647 = vrcp.pop %v2625
      %v2648 = vrcp.pop %v2628
      %v2649 = vrcp.pop %v2631
      %v2650 = vrcp.pop %v2634
      %v2651 = vrcp.pop %v2637
      %v2652 = vrcp.pop %v2640
      %v2653 = vrcp.pop %v2643
      %v2654 = vrcp.pop %v2646
      %v2655 = vmul.f32 %v2608, %v2647
      %v2656 = vmul.f32 %v2610, %v2648
      %v2657 = vmul.f32 %v2612, %v2649
      %v2658 = vmul.f32 %v2614, %v2650
      %v2659 = vmul.f32 %v2616, %v2651
      %v2660 = vmul.f32 %v2618, %v2652
      %v2661 = vmul.f32 %v2620, %v2653
      %v2662 = vmul.f32 %v2622, %v2654
      %2663 = vrot.lane.b32.xlu0 %v540, 64
      %v2664 = vpop.permute.xlu0 %2663
      %2665 = vrot.lane.b32.xlu0 %v545, 64
      %v2666 = vpop.permute.xlu0 %2665
      %2667 = vrot.lane.b32.xlu0 %v550, 64
      %v2668 = vpop.permute.xlu0 %2667
      %2669 = vrot.lane.b32.xlu0 %v555, 64
      %v2670 = vpop.permute.xlu0 %2669
      %2671 = vrot.lane.b32.xlu0 %v560, 64
      %v2672 = vpop.permute.xlu0 %2671
      %2673 = vrot.lane.b32.xlu0 %v565, 64
      %v2674 = vpop.permute.xlu0 %2673
      %2675 = vrot.lane.b32.xlu0 %v570, 64
      %v2676 = vpop.permute.xlu0 %2675
      %2677 = vrot.lane.b32.xlu0 %v575, 64
      %v2678 = vpop.permute.xlu0 %2677
      %v2688 = vsel %vm820, %v2655, 0
      %v2691 = vsel %vm820, %v2656, 0
      %v2694 = vsel %vm820, %v2657, 0
      %v2697 = vsel %vm820, %v2658, 0
      %v2700 = vsel %vm820, %v2659, 0
      %v2703 = vsel %vm820, %v2660, 0
      %v2706 = vsel %vm820, %v2661, 0
      %v2709 = vsel %vm820, %v2662, 0
      %2711 = vmatprep.subr.mxu0 0.0
      %2712 = vmatpush1.msra.mxu0 %v2664
      %2713 = vmatprep.subr.mxu0 0.0
      %2714 = vmatpush1.msra.mxu0 %v2666
      %2715 = vmatprep.subr.mxu0 0.0
      %2716 = vmatpush1.msra.mxu0 %v2668
      %2717 = vmatprep.subr.mxu0 0.0
      %2718 = vmatpush1.msra.mxu0 %v2670
      %2719 = vmatprep.subr.mxu0 0.0
      %2720 = vmatpush1.msra.mxu0 %v2672
      %2721 = vmatprep.subr.mxu0 0.0
      %2722 = vmatpush1.msra.mxu0 %v2674
      %2723 = vmatprep.subr.mxu0 0.0
      %2724 = vmatpush1.msra.mxu0 %v2676
      %2725 = vmatprep.subr.mxu0 0.0
      %2726 = vmatpush1.msra.mxu0 %v2678
      %2727 = vmatprep.subr.mxu0 0.0
      %2728 = vmatpush1.msra.mxu0 0.0
      %2729 = vmatprep.subr.mxu0 0.0
      %2730 = vmatpush1.msra.mxu0 0.0
      %2731 = vmatprep.subr.mxu0 0.0
      %2732 = vmatpush1.msra.mxu0 0.0
      %2733 = vmatprep.subr.mxu0 0.0
      %2734 = vmatpush1.msra.mxu0 0.0
      %2735 = vmatprep.subr.mxu0 0.0
      %2736 = vmatpush1.msra.mxu0 0.0
      %2737 = vmatprep.subr.mxu0 0.0
      %2738 = vmatpush1.msra.mxu0 0.0
      %2739 = vmatprep.subr.mxu0 0.0
      %2740 = vmatpush1.msra.mxu0 0.0
      %2741 = vmatprep.subr.mxu0 0.0
      %2742 = vmatpush1.msra.mxu0 0.0
      %2743 = vmatprep.subr.mxu0 0.0
      %2744 = vmatpush1.msra.mxu0 0.0
      %2745 = vmatprep.subr.mxu0 0.0
      %2746 = vmatpush1.msra.mxu0 0.0
      %2747 = vmatprep.subr.mxu0 0.0
      %2748 = vmatpush1.msra.mxu0 0.0
      %2749 = vmatprep.subr.mxu0 0.0
      %2750 = vmatpush1.msra.mxu0 0.0
      %2751 = vmatprep.subr.mxu0 0.0
      %2752 = vmatpush1.msra.mxu0 0.0
      %2753 = vmatprep.subr.mxu0 0.0
      %2754 = vmatpush1.msra.mxu0 0.0
      %2755 = vmatprep.subr.mxu0 0.0
      %2756 = vmatpush1.msra.mxu0 0.0
      %2757 = vmatprep.subr.mxu0 0.0
      %2758 = vmatpush1.msra.mxu0 0.0
      %2759 = vmatprep.subr.mxu0 0.0
      %2760 = vmatpush1.msra.mxu0 0.0
      %2761 = vmatprep.subr.mxu0 0.0
      %2762 = vmatpush1.msra.mxu0 0.0
      %2763 = vmatprep.subr.mxu0 0.0
      %2764 = vmatpush1.msra.mxu0 0.0
      %2765 = vmatprep.subr.mxu0 0.0
      %2766 = vmatpush1.msra.mxu0 0.0
      %2767 = vmatprep.subr.mxu0 0.0
      %2768 = vmatpush1.msra.mxu0 0.0
      %2769 = vmatprep.subr.mxu0 0.0
      %2770 = vmatpush1.msra.mxu0 0.0
      %2771 = vmatprep.subr.mxu0 0.0
      %2772 = vmatpush1.msra.mxu0 0.0
      %2773 = vmatprep.subr.mxu0 0.0
      %2774 = vmatpush1.msra.mxu0 0.0
      %2775 = vmatprep.mubr.f32.mxu0 0.0
      %2776 = vmatmul.mubr.f32.gmra.mrb[0].mxu0 %v2688
      %v2777 = vpop.f32.mrb[0].mxu0
      %v2778 = vadd.f32 0.0, %v2777
      %v2779 = vpop.f32.mrb[0].mxu0
      %2780 = vmatprep.mubr.f32.mxu0 0.0
      %2781 = vmatmul.mubr.f32.gmra.mrb[0].mxu0 %v2691
      %v2782 = vpop.f32.mrb[0].mxu0
      %v2783 = vadd.f32 0.0, %v2782
      %v2784 = vpop.f32.mrb[0].mxu0
      %2785 = vmatprep.mubr.f32.mxu0 0.0
      %2786 = vmatmul.mubr.f32.gmra.mrb[0].mxu0 %v2694
      %v2787 = vpop.f32.mrb[0].mxu0
      %v2788 = vadd.f32 0.0, %v2787
      %v2789 = vpop.f32.mrb[0].mxu0
      %2790 = vmatprep.mubr.f32.mxu0 0.0
      %2791 = vmatmul.mubr.f32.gmra.mrb[0].mxu0 %v2697
      %v2792 = vpop.f32.mrb[0].mxu0
      %v2793 = vadd.f32 0.0, %v2792
      %v2794 = vpop.f32.mrb[0].mxu0
      %2795 = vmatprep.mubr.f32.mxu0 0.0
      %2796 = vmatmul.mubr.f32.gmra.mrb[0].mxu0 %v2700
      %v2797 = vpop.f32.mrb[0].mxu0
      %v2798 = vadd.f32 0.0, %v2797
      %v2799 = vpop.f32.mrb[0].mxu0
      %2800 = vmatprep.mubr.f32.mxu0 0.0
      %2801 = vmatmul.mubr.f32.gmra.mrb[0].mxu0 %v2703
      %v2802 = vpop.f32.mrb[0].mxu0
      %v2803 = vadd.f32 0.0, %v2802
      %v2804 = vpop.f32.mrb[0].mxu0
      %2805 = vmatprep.mubr.f32.mxu0 0.0
      %2806 = vmatmul.mubr.f32.gmra.mrb[0].mxu0 %v2706
      %v2807 = vpop.f32.mrb[0].mxu0
      %v2808 = vadd.f32 0.0, %v2807
      %v2809 = vpop.f32.mrb[0].mxu0
      %2810 = vmatprep.mubr.f32.mxu0 0.0
      %2811 = vmatmul.mubr.f32.gmra.mrb[0].mxu0 %v2709
      %v2812 = vpop.f32.mrb[0].mxu0
      %v2813 = vadd.f32 0.0, %v2812
      %v2814 = vpop.f32.mrb[0].mxu0
      %2815 = vdwg.mxu0
      %2816 = vrot.lane.b32.xlu0 %v540, 112
      %v2817 = vpop.permute.xlu0 %2816
      %2818 = vrot.lane.b32.xlu0 %v545, 112
      %v2819 = vpop.permute.xlu0 %2818
      %2820 = vrot.lane.b32.xlu0 %v550, 112
      %v2821 = vpop.permute.xlu0 %2820
      %2822 = vrot.lane.b32.xlu0 %v555, 112
      %v2823 = vpop.permute.xlu0 %2822
      %2824 = vrot.lane.b32.xlu0 %v560, 112
      %v2825 = vpop.permute.xlu0 %2824
      %2826 = vrot.lane.b32.xlu0 %v565, 112
      %v2827 = vpop.permute.xlu0 %2826
      %2828 = vrot.lane.b32.xlu0 %v570, 112
      %v2829 = vpop.permute.xlu0 %2828
      %2830 = vrot.lane.b32.xlu0 %v575, 112
      %v2831 = vpop.permute.xlu0 %2830
      %2832 = vrot.lane.b32.xlu0 %v540, 80
      %v2833 = vpop.permute.xlu0 %2832
      %2834 = vrot.lane.b32.xlu0 %v545, 80
      %v2835 = vpop.permute.xlu0 %2834
      %2836 = vrot.lane.b32.xlu0 %v550, 80
      %v2837 = vpop.permute.xlu0 %2836
      %2838 = vrot.lane.b32.xlu0 %v555, 80
      %v2839 = vpop.permute.xlu0 %2838
      %2840 = vrot.lane.b32.xlu0 %v560, 80
      %v2841 = vpop.permute.xlu0 %2840
      %2842 = vrot.lane.b32.xlu0 %v565, 80
      %v2843 = vpop.permute.xlu0 %2842
      %2844 = vrot.lane.b32.xlu0 %v570, 80
      %v2845 = vpop.permute.xlu0 %2844
      %2846 = vrot.lane.b32.xlu0 %v575, 80
      %v2847 = vpop.permute.xlu0 %2846
      %v2848 = vsel %vm682, %v2817, 0
      %v2850 = vsel %vm682, %v2819, 0
      %v2852 = vsel %vm682, %v2821, 0
      %v2854 = vsel %vm682, %v2823, 0
      %v2856 = vsel %vm682, %v2825, 0
      %v2858 = vsel %vm682, %v2827, 0
      %v2860 = vsel %vm682, %v2829, 0
      %v2862 = vsel %vm682, %v2831, 0
      %v2864 = vsel %vm682, %v2833, 0
      %v2866 = vsel %vm682, %v2835, 0
      %v2868 = vsel %vm682, %v2837, 0
      %v2870 = vsel %vm682, %v2839, 0
      %v2872 = vsel %vm682, %v2841, 0
      %v2874 = vsel %vm682, %v2843, 0
      %v2876 = vsel %vm682, %v2845, 0
      %v2878 = vsel %vm682, %v2847, 0
      %2880 = vmatprep.subr.mxu0 0.0
      %2881 = vmatpush1.xpose.msra.mxu0 %v2864
      %2882 = vmatprep.subr.mxu0 0.0
      %2883 = vmatpush1.xpose.msra.mxu0 %v2866
      %2884 = vmatprep.subr.mxu0 0.0
      %2885 = vmatpush1.xpose.msra.mxu0 %v2868
      %2886 = vmatprep.subr.mxu0 0.0
      %2887 = vmatpush1.xpose.msra.mxu0 %v2870
      %2888 = vmatprep.subr.mxu0 0.0
      %2889 = vmatpush1.xpose.msra.mxu0 %v2872
      %2890 = vmatprep.subr.mxu0 0.0
      %2891 = vmatpush1.xpose.msra.mxu0 %v2874
      %2892 = vmatprep.subr.mxu0 0.0
      %2893 = vmatpush1.xpose.msra.mxu0 %v2876
      %2894 = vmatprep.subr.mxu0 0.0
      %2895 = vmatpush1.xpose.msra.mxu0 %v2878
      %2896 = vmatprep.subr.mxu0 0.0
      %2897 = vmatpush1.xpose.msra.mxu0 0.0
      %2898 = vmatprep.subr.mxu0 0.0
      %2899 = vmatpush1.xpose.msra.mxu0 0.0
      %2900 = vmatprep.subr.mxu0 0.0
      %2901 = vmatpush1.xpose.msra.mxu0 0.0
      %2902 = vmatprep.subr.mxu0 0.0
      %2903 = vmatpush1.xpose.msra.mxu0 0.0
      %2904 = vmatprep.subr.mxu0 0.0
      %2905 = vmatpush1.xpose.msra.mxu0 0.0
      %2906 = vmatprep.subr.mxu0 0.0
      %2907 = vmatpush1.xpose.msra.mxu0 0.0
      %2908 = vmatprep.subr.mxu0 0.0
      %2909 = vmatpush1.xpose.msra.mxu0 0.0
      %2910 = vmatprep.subr.mxu0 0.0
      %2911 = vmatpush1.xpose.msra.mxu0 0.0
      %2912 = vmatprep.subr.mxu0 0.0
      %2913 = vmatpush1.xpose.msra.mxu0 0.0
      %2914 = vmatprep.subr.mxu0 0.0
      %2915 = vmatpush1.xpose.msra.mxu0 0.0
      %2916 = vmatprep.subr.mxu0 0.0
      %2917 = vmatpush1.xpose.msra.mxu0 0.0
      %2918 = vmatprep.subr.mxu0 0.0
      %2919 = vmatpush1.xpose.msra.mxu0 0.0
      %2920 = vmatprep.subr.mxu0 0.0
      %2921 = vmatpush1.xpose.msra.mxu0 0.0
      %2922 = vmatprep.subr.mxu0 0.0
      %2923 = vmatpush1.xpose.msra.mxu0 0.0
      %2924 = vmatprep.subr.mxu0 0.0
      %2925 = vmatpush1.xpose.msra.mxu0 0.0
      %2926 = vmatprep.subr.mxu0 0.0
      %2927 = vmatpush1.xpose.msra.mxu0 0.0
      %2928 = vmatprep.subr.mxu0 0.0
      %2929 = vmatpush1.xpose.msra.mxu0 0.0
      %2930 = vmatprep.subr.mxu0 0.0
      %2931 = vmatpush1.xpose.msra.mxu0 0.0
      %2932 = vmatprep.subr.mxu0 0.0
      %2933 = vmatpush1.xpose.msra.mxu0 0.0
      %2934 = vmatprep.subr.mxu0 0.0
      %2935 = vmatpush1.xpose.msra.mxu0 0.0
      %2936 = vmatprep.subr.mxu0 0.0
      %2937 = vmatpush1.xpose.msra.mxu0 0.0
      %2938 = vmatprep.subr.mxu0 0.0
      %2939 = vmatpush1.xpose.msra.mxu0 0.0
      %2940 = vmatprep.subr.mxu0 0.0
      %2941 = vmatpush1.xpose.msra.mxu0 0.0
      %2942 = vmatprep.subr.mxu0 0.0
      %2943 = vmatpush1.xpose.msra.mxu0 0.0
      %2944 = vmatprep.mubr.f32.mxu0 0.0
      %2945 = vmatmul.mubr.f32.gmra.mrb[0].mxu0 %v2848
      %v2946 = vpop.f32.mrb[0].mxu0
      %v2947 = vadd.f32 %v2406, %v2946
      %v2948 = vpop.f32.mrb[0].mxu0
      %2949 = vmatprep.mubr.f32.mxu0 0.0
      %2950 = vmatmul.mubr.f32.gmra.mrb[0].mxu0 %v2850
      %v2951 = vpop.f32.mrb[0].mxu0
      %v2952 = vadd.f32 %v2407, %v2951
      %v2953 = vpop.f32.mrb[0].mxu0
      %2954 = vmatprep.mubr.f32.mxu0 0.0
      %2955 = vmatmul.mubr.f32.gmra.mrb[0].mxu0 %v2852
      %v2956 = vpop.f32.mrb[0].mxu0
      %v2957 = vadd.f32 %v2408, %v2956
      %v2958 = vpop.f32.mrb[0].mxu0
      %2959 = vmatprep.mubr.f32.mxu0 0.0
      %2960 = vmatmul.mubr.f32.gmra.mrb[0].mxu0 %v2854
      %v2961 = vpop.f32.mrb[0].mxu0
      %v2962 = vadd.f32 %v2409, %v2961
      %v2963 = vpop.f32.mrb[0].mxu0
      %2964 = vmatprep.mubr.f32.mxu0 0.0
      %2965 = vmatmul.mubr.f32.gmra.mrb[0].mxu0 %v2856
      %v2966 = vpop.f32.mrb[0].mxu0
      %v2967 = vadd.f32 %v2410, %v2966
      %v2968 = vpop.f32.mrb[0].mxu0
      %2969 = vmatprep.mubr.f32.mxu0 0.0
      %2970 = vmatmul.mubr.f32.gmra.mrb[0].mxu0 %v2858
      %v2971 = vpop.f32.mrb[0].mxu0
      %v2972 = vadd.f32 %v2411, %v2971
      %v2973 = vpop.f32.mrb[0].mxu0
      %2974 = vmatprep.mubr.f32.mxu0 0.0
      %2975 = vmatmul.mubr.f32.gmra.mrb[0].mxu0 %v2860
      %v2976 = vpop.f32.mrb[0].mxu0
      %v2977 = vadd.f32 %v2412, %v2976
      %v2978 = vpop.f32.mrb[0].mxu0
      %2979 = vmatprep.mubr.f32.mxu0 0.0
      %2980 = vmatmul.mubr.f32.gmra.mrb[0].mxu0 %v2862
      %v2981 = vpop.f32.mrb[0].mxu0
      %v2982 = vadd.f32 %v2413, %v2981
      %v2983 = vpop.f32.mrb[0].mxu0
      %2984 = vdwg.mxu0
      %v2985 = vsel %vm820, %v2947, -inf
      %2986 = vmax.xlane.f32.xlu0 %v2985
      %v2987 = vpop.xlane.xlu0 %2986
      %v2988 = vsel %vm820, %v2952, -inf
      %2989 = vmax.xlane.f32.xlu0 %v2988
      %v2990 = vpop.xlane.xlu0 %2989
      %v2991 = vsel %vm820, %v2957, -inf
      %2992 = vmax.xlane.f32.xlu0 %v2991
      %v2993 = vpop.xlane.xlu0 %2992
      %v2994 = vsel %vm820, %v2962, -inf
      %2995 = vmax.xlane.f32.xlu0 %v2994
      %v2996 = vpop.xlane.xlu0 %2995
      %v2997 = vsel %vm820, %v2967, -inf
      %2998 = vmax.xlane.f32.xlu0 %v2997
      %v2999 = vpop.xlane.xlu0 %2998
      %v3000 = vsel %vm820, %v2972, -inf
      %3001 = vmax.xlane.f32.xlu0 %v3000
      %v3002 = vpop.xlane.xlu0 %3001
      %v3003 = vsel %vm820, %v2977, -inf
      %3004 = vmax.xlane.f32.xlu0 %v3003
      %v3005 = vpop.xlane.xlu0 %3004
      %v3006 = vsel %vm820, %v2982, -inf
      %3007 = vmax.xlane.f32.xlu0 %v3006
      %v3008 = vpop.xlane.xlu0 %3007
      %v3009 = vsub.f32 %v2947, %v2987
      %v3010 = vsub.f32 %v2952, %v2990
      %v3011 = vsub.f32 %v2957, %v2993
      %v3012 = vsub.f32 %v2962, %v2996
      %v3013 = vsub.f32 %v2967, %v2999
      %v3014 = vsub.f32 %v2972, %v3002
      %v3015 = vsub.f32 %v2977, %v3005
      %v3016 = vsub.f32 %v2982, %v3008
      %v3017 = vmul.f32 %v3009, 1.442695
      %v3018 = vpow.pop %v3017
      %v3019 = vmul.f32 %v3010, 1.442695
      %v3020 = vpow.pop %v3019
      %v3021 = vmul.f32 %v3011, 1.442695
      %v3022 = vpow.pop %v3021
      %v3023 = vmul.f32 %v3012, 1.442695
      %v3024 = vpow.pop %v3023
      %v3025 = vmul.f32 %v3013, 1.442695
      %v3026 = vpow.pop %v3025
      %v3027 = vmul.f32 %v3014, 1.442695
      %v3028 = vpow.pop %v3027
      %v3029 = vmul.f32 %v3015, 1.442695
      %v3030 = vpow.pop %v3029
      %v3031 = vmul.f32 %v3016, 1.442695
      %v3032 = vpow.pop %v3031
      %v3033 = vsel %vm820, %v3018, 0.0
      %3034 = vadd.xlane.f32.xlu0 %v3033
      %v3035 = vpop.xlane.xlu0 %3034
      %v3036 = vsel %vm820, %v3020, 0.0
      %3037 = vadd.xlane.f32.xlu0 %v3036
      %v3038 = vpop.xlane.xlu0 %3037
      %v3039 = vsel %vm820, %v3022, 0.0
      %3040 = vadd.xlane.f32.xlu0 %v3039
      %v3041 = vpop.xlane.xlu0 %3040
      %v3042 = vsel %vm820, %v3024, 0.0
      %3043 = vadd.xlane.f32.xlu0 %v3042
      %v3044 = vpop.xlane.xlu0 %3043
      %v3045 = vsel %vm820, %v3026, 0.0
      %3046 = vadd.xlane.f32.xlu0 %v3045
      %v3047 = vpop.xlane.xlu0 %3046
      %v3048 = vsel %vm820, %v3028, 0.0
      %3049 = vadd.xlane.f32.xlu0 %v3048
      %v3050 = vpop.xlane.xlu0 %3049
      %v3051 = vsel %vm820, %v3030, 0.0
      %3052 = vadd.xlane.f32.xlu0 %v3051
      %v3053 = vpop.xlane.xlu0 %3052
      %v3054 = vsel %vm820, %v3032, 0.0
      %3055 = vadd.xlane.f32.xlu0 %v3054
      %v3056 = vpop.xlane.xlu0 %3055
      %v3057 = vrcp.pop %v3035
      %v3058 = vrcp.pop %v3038
      %v3059 = vrcp.pop %v3041
      %v3060 = vrcp.pop %v3044
      %v3061 = vrcp.pop %v3047
      %v3062 = vrcp.pop %v3050
      %v3063 = vrcp.pop %v3053
      %v3064 = vrcp.pop %v3056
      %v3065 = vmul.f32 %v3018, %v3057
      %v3066 = vmul.f32 %v3020, %v3058
      %v3067 = vmul.f32 %v3022, %v3059
      %v3068 = vmul.f32 %v3024, %v3060
      %v3069 = vmul.f32 %v3026, %v3061
      %v3070 = vmul.f32 %v3028, %v3062
      %v3071 = vmul.f32 %v3030, %v3063
      %v3072 = vmul.f32 %v3032, %v3064
      %3073 = vrot.lane.b32.xlu0 %v540, 48
      %v3074 = vpop.permute.xlu0 %3073
      %3075 = vrot.lane.b32.xlu0 %v545, 48
      %v3076 = vpop.permute.xlu0 %3075
      %3077 = vrot.lane.b32.xlu0 %v550, 48
      %v3078 = vpop.permute.xlu0 %3077
      %3079 = vrot.lane.b32.xlu0 %v555, 48
      %v3080 = vpop.permute.xlu0 %3079
      %3081 = vrot.lane.b32.xlu0 %v560, 48
      %v3082 = vpop.permute.xlu0 %3081
      %3083 = vrot.lane.b32.xlu0 %v565, 48
      %v3084 = vpop.permute.xlu0 %3083
      %3085 = vrot.lane.b32.xlu0 %v570, 48
      %v3086 = vpop.permute.xlu0 %3085
      %3087 = vrot.lane.b32.xlu0 %v575, 48
      %v3088 = vpop.permute.xlu0 %3087
      %v3098 = vsel %vm820, %v3065, 0
      %v3101 = vsel %vm820, %v3066, 0
      %v3104 = vsel %vm820, %v3067, 0
      %v3107 = vsel %vm820, %v3068, 0
      %v3110 = vsel %vm820, %v3069, 0
      %v3113 = vsel %vm820, %v3070, 0
      %v3116 = vsel %vm820, %v3071, 0
      %v3119 = vsel %vm820, %v3072, 0
      %3121 = vmatprep.subr.mxu0 0.0
      %3122 = vmatpush1.msra.mxu0 %v3074
      %3123 = vmatprep.subr.mxu0 0.0
      %3124 = vmatpush1.msra.mxu0 %v3076
      %3125 = vmatprep.subr.mxu0 0.0
      %3126 = vmatpush1.msra.mxu0 %v3078
      %3127 = vmatprep.subr.mxu0 0.0
      %3128 = vmatpush1.msra.mxu0 %v3080
      %3129 = vmatprep.subr.mxu0 0.0
      %3130 = vmatpush1.msra.mxu0 %v3082
      %3131 = vmatprep.subr.mxu0 0.0
      %3132 = vmatpush1.msra.mxu0 %v3084
      %3133 = vmatprep.subr.mxu0 0.0
      %3134 = vmatpush1.msra.mxu0 %v3086
      %3135 = vmatprep.subr.mxu0 0.0
      %3136 = vmatpush1.msra.mxu0 %v3088
      %3137 = vmatprep.subr.mxu0 0.0
      %3138 = vmatpush1.msra.mxu0 0.0
      %3139 = vmatprep.subr.mxu0 0.0
      %3140 = vmatpush1.msra.mxu0 0.0
      %3141 = vmatprep.subr.mxu0 0.0
      %3142 = vmatpush1.msra.mxu0 0.0
      %3143 = vmatprep.subr.mxu0 0.0
      %3144 = vmatpush1.msra.mxu0 0.0
      %3145 = vmatprep.subr.mxu0 0.0
      %3146 = vmatpush1.msra.mxu0 0.0
      %3147 = vmatprep.subr.mxu0 0.0
      %3148 = vmatpush1.msra.mxu0 0.0
      %3149 = vmatprep.subr.mxu0 0.0
      %3150 = vmatpush1.msra.mxu0 0.0
      %3151 = vmatprep.subr.mxu0 0.0
      %3152 = vmatpush1.msra.mxu0 0.0
      %3153 = vmatprep.subr.mxu0 0.0
      %3154 = vmatpush1.msra.mxu0 0.0
      %3155 = vmatprep.subr.mxu0 0.0
      %3156 = vmatpush1.msra.mxu0 0.0
      %3157 = vmatprep.subr.mxu0 0.0
      %3158 = vmatpush1.msra.mxu0 0.0
      %3159 = vmatprep.subr.mxu0 0.0
      %3160 = vmatpush1.msra.mxu0 0.0
      %3161 = vmatprep.subr.mxu0 0.0
      %3162 = vmatpush1.msra.mxu0 0.0
      %3163 = vmatprep.subr.mxu0 0.0
      %3164 = vmatpush1.msra.mxu0 0.0
      %3165 = vmatprep.subr.mxu0 0.0
      %3166 = vmatpush1.msra.mxu0 0.0
      %3167 = vmatprep.subr.mxu0 0.0
      %3168 = vmatpush1.msra.mxu0 0.0
      %3169 = vmatprep.subr.mxu0 0.0
      %3170 = vmatpush1.msra.mxu0 0.0
      %3171 = vmatprep.subr.mxu0 0.0
      %3172 = vmatpush1.msra.mxu0 0.0
      %3173 = vmatprep.subr.mxu0 0.0
      %3174 = vmatpush1.msra.mxu0 0.0
      %3175 = vmatprep.subr.mxu0 0.0
      %3176 = vmatpush1.msra.mxu0 0.0
      %3177 = vmatprep.subr.mxu0 0.0
      %3178 = vmatpush1.msra.mxu0 0.0
      %3179 = vmatprep.subr.mxu0 0.0
      %3180 = vmatpush1.msra.mxu0 0.0
      %3181 = vmatprep.subr.mxu0 0.0
      %3182 = vmatpush1.msra.mxu0 0.0
      %3183 = vmatprep.subr.mxu0 0.0
      %3184 = vmatpush1.msra.mxu0 0.0
      %3185 = vmatprep.mubr.f32.mxu0 0.0
      %3186 = vmatmul.mubr.f32.gmra.mrb[0].mxu0 %v3098
      %v3187 = vpop.f32.mrb[0].mxu0
      %v3188 = vadd.f32 0.0, %v3187
      %v3189 = vpop.f32.mrb[0].mxu0
      %3190 = vmatprep.mubr.f32.mxu0 0.0
      %3191 = vmatmul.mubr.f32.gmra.mrb[0].mxu0 %v3101
      %v3192 = vpop.f32.mrb[0].mxu0
      %v3193 = vadd.f32 0.0, %v3192
      %v3194 = vpop.f32.mrb[0].mxu0
      %3195 = vmatprep.mubr.f32.mxu0 0.0
      %3196 = vmatmul.mubr.f32.gmra.mrb[0].mxu0 %v3104
      %v3197 = vpop.f32.mrb[0].mxu0
      %v3198 = vadd.f32 0.0, %v3197
      %v3199 = vpop.f32.mrb[0].mxu0
      %3200 = vmatprep.mubr.f32.mxu0 0.0
      %3201 = vmatmul.mubr.f32.gmra.mrb[0].mxu0 %v3107
      %v3202 = vpop.f32.mrb[0].mxu0
      %v3203 = vadd.f32 0.0, %v3202
      %v3204 = vpop.f32.mrb[0].mxu0
      %3205 = vmatprep.mubr.f32.mxu0 0.0
      %3206 = vmatmul.mubr.f32.gmra.mrb[0].mxu0 %v3110
      %v3207 = vpop.f32.mrb[0].mxu0
      %v3208 = vadd.f32 0.0, %v3207
      %v3209 = vpop.f32.mrb[0].mxu0
      %3210 = vmatprep.mubr.f32.mxu0 0.0
      %3211 = vmatmul.mubr.f32.gmra.mrb[0].mxu0 %v3113
      %v3212 = vpop.f32.mrb[0].mxu0
      %v3213 = vadd.f32 0.0, %v3212
      %v3214 = vpop.f32.mrb[0].mxu0
      %3215 = vmatprep.mubr.f32.mxu0 0.0
      %3216 = vmatmul.mubr.f32.gmra.mrb[0].mxu0 %v3116
      %v3217 = vpop.f32.mrb[0].mxu0
      %v3218 = vadd.f32 0.0, %v3217
      %v3219 = vpop.f32.mrb[0].mxu0
      %3220 = vmatprep.mubr.f32.mxu0 0.0
      %3221 = vmatmul.mubr.f32.gmra.mrb[0].mxu0 %v3119
      %v3222 = vpop.f32.mrb[0].mxu0
      %v3223 = vadd.f32 0.0, %v3222
      %v3224 = vpop.f32.mrb[0].mxu0
      %3225 = vdwg.mxu0
      %3234 = vrot.lane.b32.xlu0 %v3188, 16
      %v3235 = vpop.permute.xlu0 %3234
      %3236 = vrot.lane.b32.xlu0 %v3193, 16
      %v3237 = vpop.permute.xlu0 %3236
      %3238 = vrot.lane.b32.xlu0 %v3198, 16
      %v3239 = vpop.permute.xlu0 %3238
      %3240 = vrot.lane.b32.xlu0 %v3203, 16
      %v3241 = vpop.permute.xlu0 %3240
      %3242 = vrot.lane.b32.xlu0 %v3208, 16
      %v3243 = vpop.permute.xlu0 %3242
      %3244 = vrot.lane.b32.xlu0 %v3213, 16
      %v3245 = vpop.permute.xlu0 %3244
      %3246 = vrot.lane.b32.xlu0 %v3218, 16
      %v3247 = vpop.permute.xlu0 %3246
      %3248 = vrot.lane.b32.xlu0 %v3223, 16
      %v3249 = vpop.permute.xlu0 %3248
      %v3258 = vsel %vm682, %v2778, %v3235
      %v3259 = vsel %vm682, %v2783, %v3237
      %v3260 = vsel %vm682, %v2788, %v3239
      %v3261 = vsel %vm682, %v2793, %v3241
      %v3262 = vsel %vm682, %v2798, %v3243
      %v3263 = vsel %vm682, %v2803, %v3245
      %v3264 = vsel %vm682, %v2808, %v3247
      %v3265 = vsel %vm682, %v2813, %v3249
      %s3266 = scalar_lea.vmem %s1, 192
      %v3267 = vld [vmem:[%s3266] sm:$0xff]
      %v3268 = vld [vmem:[%s3266 + $0x8] sm:$0xff]
      %v3269 = vld [vmem:[%s3266 + $0x10] sm:$0xff]
      %v3270 = vld [vmem:[%s3266 + $0x18] sm:$0xff]
      %v3271 = vld [vmem:[%s3266 + $0x20] sm:$0xff]
      %v3272 = vld [vmem:[%s3266 + $0x28] sm:$0xff]
      %v3273 = vld [vmem:[%s3266 + $0x30] sm:$0xff]
      %v3274 = vld [vmem:[%s3266 + $0x38] sm:$0xff]
      %v3275 = vadd.f32 %v618, %v3267
      %v3276 = vadd.f32 %v619, %v3268
      %v3277 = vadd.f32 %v620, %v3269
      %v3278 = vadd.f32 %v621, %v3270
      %v3279 = vadd.f32 %v622, %v3271
      %v3280 = vadd.f32 %v623, %v3272
      %v3281 = vadd.f32 %v624, %v3273
      %v3282 = vadd.f32 %v625, %v3274
      %v3283 = vadd.f32 %v626, %v3267
      %v3284 = vadd.f32 %v627, %v3268
      %v3285 = vadd.f32 %v628, %v3269
      %v3286 = vadd.f32 %v629, %v3270
      %v3287 = vadd.f32 %v630, %v3271
      %v3288 = vadd.f32 %v631, %v3272
      %v3289 = vadd.f32 %v632, %v3273
      %v3290 = vadd.f32 %v633, %v3274
      %3299 = vrot.lane.b32.xlu0 %v580, 96
      %v3300 = vpop.permute.xlu0 %3299
      %3301 = vrot.lane.b32.xlu0 %v585, 96
      %v3302 = vpop.permute.xlu0 %3301
      %3303 = vrot.lane.b32.xlu0 %v590, 96
      %v3304 = vpop.permute.xlu0 %3303
      %3305 = vrot.lane.b32.xlu0 %v595, 96
      %v3306 = vpop.permute.xlu0 %3305
      %3307 = vrot.lane.b32.xlu0 %v600, 96
      %v3308 = vpop.permute.xlu0 %3307
      %3309 = vrot.lane.b32.xlu0 %v605, 96
      %v3310 = vpop.permute.xlu0 %3309
      %3311 = vrot.lane.b32.xlu0 %v610, 96
      %v3312 = vpop.permute.xlu0 %3311
      %3313 = vrot.lane.b32.xlu0 %v615, 96
      %v3314 = vpop.permute.xlu0 %3313
      %v3315 = vsel %vm682, %v580, 0
      %v3317 = vsel %vm682, %v585, 0
      %v3319 = vsel %vm682, %v590, 0
      %v3321 = vsel %vm682, %v595, 0
      %v3323 = vsel %vm682, %v600, 0
      %v3325 = vsel %vm682, %v605, 0
      %v3327 = vsel %vm682, %v610, 0
      %v3329 = vsel %vm682, %v615, 0
      %v3331 = vsel %vm682, %v3300, 0
      %v3333 = vsel %vm682, %v3302, 0
      %v3335 = vsel %vm682, %v3304, 0
      %v3337 = vsel %vm682, %v3306, 0
      %v3339 = vsel %vm682, %v3308, 0
      %v3341 = vsel %vm682, %v3310, 0
      %v3343 = vsel %vm682, %v3312, 0
      %v3345 = vsel %vm682, %v3314, 0
      %3347 = vmatprep.subr.mxu0 0.0
      %3348 = vmatpush1.xpose.msra.mxu0 %v3331
      %3349 = vmatprep.subr.mxu0 0.0
      %3350 = vmatpush1.xpose.msra.mxu0 %v3333
      %3351 = vmatprep.subr.mxu0 0.0
      %3352 = vmatpush1.xpose.msra.mxu0 %v3335
      %3353 = vmatprep.subr.mxu0 0.0
      %3354 = vmatpush1.xpose.msra.mxu0 %v3337
      %3355 = vmatprep.subr.mxu0 0.0
      %3356 = vmatpush1.xpose.msra.mxu0 %v3339
      %3357 = vmatprep.subr.mxu0 0.0
      %3358 = vmatpush1.xpose.msra.mxu0 %v3341
      %3359 = vmatprep.subr.mxu0 0.0
      %3360 = vmatpush1.xpose.msra.mxu0 %v3343
      %3361 = vmatprep.subr.mxu0 0.0
      %3362 = vmatpush1.xpose.msra.mxu0 %v3345
      %3363 = vmatprep.subr.mxu0 0.0
      %3364 = vmatpush1.xpose.msra.mxu0 0.0
      %3365 = vmatprep.subr.mxu0 0.0
      %3366 = vmatpush1.xpose.msra.mxu0 0.0
      %3367 = vmatprep.subr.mxu0 0.0
      %3368 = vmatpush1.xpose.msra.mxu0 0.0
      %3369 = vmatprep.subr.mxu0 0.0
      %3370 = vmatpush1.xpose.msra.mxu0 0.0
      %3371 = vmatprep.subr.mxu0 0.0
      %3372 = vmatpush1.xpose.msra.mxu0 0.0
      %3373 = vmatprep.subr.mxu0 0.0
      %3374 = vmatpush1.xpose.msra.mxu0 0.0
      %3375 = vmatprep.subr.mxu0 0.0
      %3376 = vmatpush1.xpose.msra.mxu0 0.0
      %3377 = vmatprep.subr.mxu0 0.0
      %3378 = vmatpush1.xpose.msra.mxu0 0.0
      %3379 = vmatprep.subr.mxu0 0.0
      %3380 = vmatpush1.xpose.msra.mxu0 0.0
      %3381 = vmatprep.subr.mxu0 0.0
      %3382 = vmatpush1.xpose.msra.mxu0 0.0
      %3383 = vmatprep.subr.mxu0 0.0
      %3384 = vmatpush1.xpose.msra.mxu0 0.0
      %3385 = vmatprep.subr.mxu0 0.0
      %3386 = vmatpush1.xpose.msra.mxu0 0.0
      %3387 = vmatprep.subr.mxu0 0.0
      %3388 = vmatpush1.xpose.msra.mxu0 0.0
      %3389 = vmatprep.subr.mxu0 0.0
      %3390 = vmatpush1.xpose.msra.mxu0 0.0
      %3391 = vmatprep.subr.mxu0 0.0
      %3392 = vmatpush1.xpose.msra.mxu0 0.0
      %3393 = vmatprep.subr.mxu0 0.0
      %3394 = vmatpush1.xpose.msra.mxu0 0.0
      %3395 = vmatprep.subr.mxu0 0.0
      %3396 = vmatpush1.xpose.msra.mxu0 0.0
      %3397 = vmatprep.subr.mxu0 0.0
      %3398 = vmatpush1.xpose.msra.mxu0 0.0
      %3399 = vmatprep.subr.mxu0 0.0
      %3400 = vmatpush1.xpose.msra.mxu0 0.0
      %3401 = vmatprep.subr.mxu0 0.0
      %3402 = vmatpush1.xpose.msra.mxu0 0.0
      %3403 = vmatprep.subr.mxu0 0.0
      %3404 = vmatpush1.xpose.msra.mxu0 0.0
      %3405 = vmatprep.subr.mxu0 0.0
      %3406 = vmatpush1.xpose.msra.mxu0 0.0
      %3407 = vmatprep.subr.mxu0 0.0
      %3408 = vmatpush1.xpose.msra.mxu0 0.0
      %3409 = vmatprep.subr.mxu0 0.0
      %3410 = vmatpush1.xpose.msra.mxu0 0.0
      %3411 = vmatprep.mubr.f32.mxu0 0.0
      %3412 = vmatmul.mubr.f32.gmra.mrb[0].mxu0 %v3315
      %v3413 = vpop.f32.mrb[0].mxu0
      %v3414 = vadd.f32 %v3275, %v3413
      %v3415 = vpop.f32.mrb[0].mxu0
      %3416 = vmatprep.mubr.f32.mxu0 0.0
      %3417 = vmatmul.mubr.f32.gmra.mrb[0].mxu0 %v3317
      %v3418 = vpop.f32.mrb[0].mxu0
      %v3419 = vadd.f32 %v3276, %v3418
      %v3420 = vpop.f32.mrb[0].mxu0
      %3421 = vmatprep.mubr.f32.mxu0 0.0
      %3422 = vmatmul.mubr.f32.gmra.mrb[0].mxu0 %v3319
      %v3423 = vpop.f32.mrb[0].mxu0
      %v3424 = vadd.f32 %v3277, %v3423
      %v3425 = vpop.f32.mrb[0].mxu0
      %3426 = vmatprep.mubr.f32.mxu0 0.0
      %3427 = vmatmul.mubr.f32.gmra.mrb[0].mxu0 %v3321
      %v3428 = vpop.f32.mrb[0].mxu0
      %v3429 = vadd.f32 %v3278, %v3428
      %v3430 = vpop.f32.mrb[0].mxu0
      %3431 = vmatprep.mubr.f32.mxu0 0.0
      %3432 = vmatmul.mubr.f32.gmra.mrb[0].mxu0 %v3323
      %v3433 = vpop.f32.mrb[0].mxu0
      %v3434 = vadd.f32 %v3279, %v3433
      %v3435 = vpop.f32.mrb[0].mxu0
      %3436 = vmatprep.mubr.f32.mxu0 0.0
      %3437 = vmatmul.mubr.f32.gmra.mrb[0].mxu0 %v3325
      %v3438 = vpop.f32.mrb[0].mxu0
      %v3439 = vadd.f32 %v3280, %v3438
      %v3440 = vpop.f32.mrb[0].mxu0
      %3441 = vmatprep.mubr.f32.mxu0 0.0
      %3442 = vmatmul.mubr.f32.gmra.mrb[0].mxu0 %v3327
      %v3443 = vpop.f32.mrb[0].mxu0
      %v3444 = vadd.f32 %v3281, %v3443
      %v3445 = vpop.f32.mrb[0].mxu0
      %3446 = vmatprep.mubr.f32.mxu0 0.0
      %3447 = vmatmul.mubr.f32.gmra.mrb[0].mxu0 %v3329
      %v3448 = vpop.f32.mrb[0].mxu0
      %v3449 = vadd.f32 %v3282, %v3448
      %v3450 = vpop.f32.mrb[0].mxu0
      %3451 = vdwg.mxu0
      %v3452 = vsel %vm820, %v3414, -inf
      %3453 = vmax.xlane.f32.xlu0 %v3452
      %v3454 = vpop.xlane.xlu0 %3453
      %v3455 = vsel %vm820, %v3419, -inf
      %3456 = vmax.xlane.f32.xlu0 %v3455
      %v3457 = vpop.xlane.xlu0 %3456
      %v3458 = vsel %vm820, %v3424, -inf
      %3459 = vmax.xlane.f32.xlu0 %v3458
      %v3460 = vpop.xlane.xlu0 %3459
      %v3461 = vsel %vm820, %v3429, -inf
      %3462 = vmax.xlane.f32.xlu0 %v3461
      %v3463 = vpop.xlane.xlu0 %3462
      %v3464 = vsel %vm820, %v3434, -inf
      %3465 = vmax.xlane.f32.xlu0 %v3464
      %v3466 = vpop.xlane.xlu0 %3465
      %v3467 = vsel %vm820, %v3439, -inf
      %3468 = vmax.xlane.f32.xlu0 %v3467
      %v3469 = vpop.xlane.xlu0 %3468
      %v3470 = vsel %vm820, %v3444, -inf
      %3471 = vmax.xlane.f32.xlu0 %v3470
      %v3472 = vpop.xlane.xlu0 %3471
      %v3473 = vsel %vm820, %v3449, -inf
      %3474 = vmax.xlane.f32.xlu0 %v3473
      %v3475 = vpop.xlane.xlu0 %3474
      %v3476 = vsub.f32 %v3414, %v3454
      %v3477 = vsub.f32 %v3419, %v3457
      %v3478 = vsub.f32 %v3424, %v3460
      %v3479 = vsub.f32 %v3429, %v3463
      %v3480 = vsub.f32 %v3434, %v3466
      %v3481 = vsub.f32 %v3439, %v3469
      %v3482 = vsub.f32 %v3444, %v3472
      %v3483 = vsub.f32 %v3449, %v3475
      %v3484 = vmul.f32 %v3476, 1.442695
      %v3485 = vpow.pop %v3484
      %v3486 = vmul.f32 %v3477, 1.442695
      %v3487 = vpow.pop %v3486
      %v3488 = vmul.f32 %v3478, 1.442695
      %v3489 = vpow.pop %v3488
      %v3490 = vmul.f32 %v3479, 1.442695
      %v3491 = vpow.pop %v3490
      %v3492 = vmul.f32 %v3480, 1.442695
      %v3493 = vpow.pop %v3492
      %v3494 = vmul.f32 %v3481, 1.442695
      %v3495 = vpow.pop %v3494
      %v3496 = vmul.f32 %v3482, 1.442695
      %v3497 = vpow.pop %v3496
      %v3498 = vmul.f32 %v3483, 1.442695
      %v3499 = vpow.pop %v3498
      %v3500 = vsel %vm820, %v3485, 0.0
      %3501 = vadd.xlane.f32.xlu0 %v3500
      %v3502 = vpop.xlane.xlu0 %3501
      %v3503 = vsel %vm820, %v3487, 0.0
      %3504 = vadd.xlane.f32.xlu0 %v3503
      %v3505 = vpop.xlane.xlu0 %3504
      %v3506 = vsel %vm820, %v3489, 0.0
      %3507 = vadd.xlane.f32.xlu0 %v3506
      %v3508 = vpop.xlane.xlu0 %3507
      %v3509 = vsel %vm820, %v3491, 0.0
      %3510 = vadd.xlane.f32.xlu0 %v3509
      %v3511 = vpop.xlane.xlu0 %3510
      %v3512 = vsel %vm820, %v3493, 0.0
      %3513 = vadd.xlane.f32.xlu0 %v3512
      %v3514 = vpop.xlane.xlu0 %3513
      %v3515 = vsel %vm820, %v3495, 0.0
      %3516 = vadd.xlane.f32.xlu0 %v3515
      %v3517 = vpop.xlane.xlu0 %3516
      %v3518 = vsel %vm820, %v3497, 0.0
      %3519 = vadd.xlane.f32.xlu0 %v3518
      %v3520 = vpop.xlane.xlu0 %3519
      %v3521 = vsel %vm820, %v3499, 0.0
      %3522 = vadd.xlane.f32.xlu0 %v3521
      %v3523 = vpop.xlane.xlu0 %3522
      %v3524 = vrcp.pop %v3502
      %v3525 = vrcp.pop %v3505
      %v3526 = vrcp.pop %v3508
      %v3527 = vrcp.pop %v3511
      %v3528 = vrcp.pop %v3514
      %v3529 = vrcp.pop %v3517
      %v3530 = vrcp.pop %v3520
      %v3531 = vrcp.pop %v3523
      %v3532 = vmul.f32 %v3485, %v3524
      %v3533 = vmul.f32 %v3487, %v3525
      %v3534 = vmul.f32 %v3489, %v3526
      %v3535 = vmul.f32 %v3491, %v3527
      %v3536 = vmul.f32 %v3493, %v3528
      %v3537 = vmul.f32 %v3495, %v3529
      %v3538 = vmul.f32 %v3497, %v3530
      %v3539 = vmul.f32 %v3499, %v3531
      %3540 = vrot.lane.b32.xlu0 %v580, 64
      %v3541 = vpop.permute.xlu0 %3540
      %3542 = vrot.lane.b32.xlu0 %v585, 64
      %v3543 = vpop.permute.xlu0 %3542
      %3544 = vrot.lane.b32.xlu0 %v590, 64
      %v3545 = vpop.permute.xlu0 %3544
      %3546 = vrot.lane.b32.xlu0 %v595, 64
      %v3547 = vpop.permute.xlu0 %3546
      %3548 = vrot.lane.b32.xlu0 %v600, 64
      %v3549 = vpop.permute.xlu0 %3548
      %3550 = vrot.lane.b32.xlu0 %v605, 64
      %v3551 = vpop.permute.xlu0 %3550
      %3552 = vrot.lane.b32.xlu0 %v610, 64
      %v3553 = vpop.permute.xlu0 %3552
      %3554 = vrot.lane.b32.xlu0 %v615, 64
      %v3555 = vpop.permute.xlu0 %3554
      %v3565 = vsel %vm820, %v3532, 0
      %v3568 = vsel %vm820, %v3533, 0
      %v3571 = vsel %vm820, %v3534, 0
      %v3574 = vsel %vm820, %v3535, 0
      %v3577 = vsel %vm820, %v3536, 0
      %v3580 = vsel %vm820, %v3537, 0
      %v3583 = vsel %vm820, %v3538, 0
      %v3586 = vsel %vm820, %v3539, 0
      %3588 = vmatprep.subr.mxu0 0.0
      %3589 = vmatpush1.msra.mxu0 %v3541
      %3590 = vmatprep.subr.mxu0 0.0
      %3591 = vmatpush1.msra.mxu0 %v3543
      %3592 = vmatprep.subr.mxu0 0.0
      %3593 = vmatpush1.msra.mxu0 %v3545
      %3594 = vmatprep.subr.mxu0 0.0
      %3595 = vmatpush1.msra.mxu0 %v3547
      %3596 = vmatprep.subr.mxu0 0.0
      %3597 = vmatpush1.msra.mxu0 %v3549
      %3598 = vmatprep.subr.mxu0 0.0
      %3599 = vmatpush1.msra.mxu0 %v3551
      %3600 = vmatprep.subr.mxu0 0.0
      %3601 = vmatpush1.msra.mxu0 %v3553
      %3602 = vmatprep.subr.mxu0 0.0
      %3603 = vmatpush1.msra.mxu0 %v3555
      %3604 = vmatprep.subr.mxu0 0.0
      %3605 = vmatpush1.msra.mxu0 0.0
      %3606 = vmatprep.subr.mxu0 0.0
      %3607 = vmatpush1.msra.mxu0 0.0
      %3608 = vmatprep.subr.mxu0 0.0
      %3609 = vmatpush1.msra.mxu0 0.0
      %3610 = vmatprep.subr.mxu0 0.0
      %3611 = vmatpush1.msra.mxu0 0.0
      %3612 = vmatprep.subr.mxu0 0.0
      %3613 = vmatpush1.msra.mxu0 0.0
      %3614 = vmatprep.subr.mxu0 0.0
      %3615 = vmatpush1.msra.mxu0 0.0
      %3616 = vmatprep.subr.mxu0 0.0
      %3617 = vmatpush1.msra.mxu0 0.0
      %3618 = vmatprep.subr.mxu0 0.0
      %3619 = vmatpush1.msra.mxu0 0.0
      %3620 = vmatprep.subr.mxu0 0.0
      %3621 = vmatpush1.msra.mxu0 0.0
      %3622 = vmatprep.subr.mxu0 0.0
      %3623 = vmatpush1.msra.mxu0 0.0
      %3624 = vmatprep.subr.mxu0 0.0
      %3625 = vmatpush1.msra.mxu0 0.0
      %3626 = vmatprep.subr.mxu0 0.0
      %3627 = vmatpush1.msra.mxu0 0.0
      %3628 = vmatprep.subr.mxu0 0.0
      %3629 = vmatpush1.msra.mxu0 0.0
      %3630 = vmatprep.subr.mxu0 0.0
      %3631 = vmatpush1.msra.mxu0 0.0
      %3632 = vmatprep.subr.mxu0 0.0
      %3633 = vmatpush1.msra.mxu0 0.0
      %3634 = vmatprep.subr.mxu0 0.0
      %3635 = vmatpush1.msra.mxu0 0.0
      %3636 = vmatprep.subr.mxu0 0.0
      %3637 = vmatpush1.msra.mxu0 0.0
      %3638 = vmatprep.subr.mxu0 0.0
      %3639 = vmatpush1.msra.mxu0 0.0
      %3640 = vmatprep.subr.mxu0 0.0
      %3641 = vmatpush1.msra.mxu0 0.0
      %3642 = vmatprep.subr.mxu0 0.0
      %3643 = vmatpush1.msra.mxu0 0.0
      %3644 = vmatprep.subr.mxu0 0.0
      %3645 = vmatpush1.msra.mxu0 0.0
      %3646 = vmatprep.subr.mxu0 0.0
      %3647 = vmatpush1.msra.mxu0 0.0
      %3648 = vmatprep.subr.mxu0 0.0
      %3649 = vmatpush1.msra.mxu0 0.0
      %3650 = vmatprep.subr.mxu0 0.0
      %3651 = vmatpush1.msra.mxu0 0.0
      %3652 = vmatprep.mubr.f32.mxu0 0.0
      %3653 = vmatmul.mubr.f32.gmra.mrb[0].mxu0 %v3565
      %v3654 = vpop.f32.mrb[0].mxu0
      %v3655 = vadd.f32 0.0, %v3654
      %v3656 = vpop.f32.mrb[0].mxu0
      %3657 = vmatprep.mubr.f32.mxu0 0.0
      %3658 = vmatmul.mubr.f32.gmra.mrb[0].mxu0 %v3568
      %v3659 = vpop.f32.mrb[0].mxu0
      %v3660 = vadd.f32 0.0, %v3659
      %v3661 = vpop.f32.mrb[0].mxu0
      %3662 = vmatprep.mubr.f32.mxu0 0.0
      %3663 = vmatmul.mubr.f32.gmra.mrb[0].mxu0 %v3571
      %v3664 = vpop.f32.mrb[0].mxu0
      %v3665 = vadd.f32 0.0, %v3664
      %v3666 = vpop.f32.mrb[0].mxu0
      %3667 = vmatprep.mubr.f32.mxu0 0.0
      %3668 = vmatmul.mubr.f32.gmra.mrb[0].mxu0 %v3574
      %v3669 = vpop.f32.mrb[0].mxu0
      %v3670 = vadd.f32 0.0, %v3669
      %v3671 = vpop.f32.mrb[0].mxu0
      %3672 = vmatprep.mubr.f32.mxu0 0.0
      %3673 = vmatmul.mubr.f32.gmra.mrb[0].mxu0 %v3577
      %v3674 = vpop.f32.mrb[0].mxu0
      %v3675 = vadd.f32 0.0, %v3674
      %v3676 = vpop.f32.mrb[0].mxu0
      %3677 = vmatprep.mubr.f32.mxu0 0.0
      %3678 = vmatmul.mubr.f32.gmra.mrb[0].mxu0 %v3580
      %v3679 = vpop.f32.mrb[0].mxu0
      %v3680 = vadd.f32 0.0, %v3679
      %v3681 = vpop.f32.mrb[0].mxu0
      %3682 = vmatprep.mubr.f32.mxu0 0.0
      %3683 = vmatmul.mubr.f32.gmra.mrb[0].mxu0 %v3583
      %v3684 = vpop.f32.mrb[0].mxu0
      %v3685 = vadd.f32 0.0, %v3684
      %v3686 = vpop.f32.mrb[0].mxu0
      %3687 = vmatprep.mubr.f32.mxu0 0.0
      %3688 = vmatmul.mubr.f32.gmra.mrb[0].mxu0 %v3586
      %v3689 = vpop.f32.mrb[0].mxu0
      %v3690 = vadd.f32 0.0, %v3689
      %v3691 = vpop.f32.mrb[0].mxu0
      %3692 = vdwg.mxu0
      %3693 = vrot.lane.b32.xlu0 %v580, 112
      %v3694 = vpop.permute.xlu0 %3693
      %3695 = vrot.lane.b32.xlu0 %v585, 112
      %v3696 = vpop.permute.xlu0 %3695
      %3697 = vrot.lane.b32.xlu0 %v590, 112
      %v3698 = vpop.permute.xlu0 %3697
      %3699 = vrot.lane.b32.xlu0 %v595, 112
      %v3700 = vpop.permute.xlu0 %3699
      %3701 = vrot.lane.b32.xlu0 %v600, 112
      %v3702 = vpop.permute.xlu0 %3701
      %3703 = vrot.lane.b32.xlu0 %v605, 112
      %v3704 = vpop.permute.xlu0 %3703
      %3705 = vrot.lane.b32.xlu0 %v610, 112
      %v3706 = vpop.permute.xlu0 %3705
      %3707 = vrot.lane.b32.xlu0 %v615, 112
      %v3708 = vpop.permute.xlu0 %3707
      %3709 = vrot.lane.b32.xlu0 %v580, 80
      %v3710 = vpop.permute.xlu0 %3709
      %3711 = vrot.lane.b32.xlu0 %v585, 80
      %v3712 = vpop.permute.xlu0 %3711
      %3713 = vrot.lane.b32.xlu0 %v590, 80
      %v3714 = vpop.permute.xlu0 %3713
      %3715 = vrot.lane.b32.xlu0 %v595, 80
      %v3716 = vpop.permute.xlu0 %3715
      %3717 = vrot.lane.b32.xlu0 %v600, 80
      %v3718 = vpop.permute.xlu0 %3717
      %3719 = vrot.lane.b32.xlu0 %v605, 80
      %v3720 = vpop.permute.xlu0 %3719
      %3721 = vrot.lane.b32.xlu0 %v610, 80
      %v3722 = vpop.permute.xlu0 %3721
      %3723 = vrot.lane.b32.xlu0 %v615, 80
      %v3724 = vpop.permute.xlu0 %3723
      %v3725 = vsel %vm682, %v3694, 0
      %v3727 = vsel %vm682, %v3696, 0
      %v3729 = vsel %vm682, %v3698, 0
      %v3731 = vsel %vm682, %v3700, 0
      %v3733 = vsel %vm682, %v3702, 0
      %v3735 = vsel %vm682, %v3704, 0
      %v3737 = vsel %vm682, %v3706, 0
      %v3739 = vsel %vm682, %v3708, 0
      %v3741 = vsel %vm682, %v3710, 0
      %v3743 = vsel %vm682, %v3712, 0
      %v3745 = vsel %vm682, %v3714, 0
      %v3747 = vsel %vm682, %v3716, 0
      %v3749 = vsel %vm682, %v3718, 0
      %v3751 = vsel %vm682, %v3720, 0
      %v3753 = vsel %vm682, %v3722, 0
      %v3755 = vsel %vm682, %v3724, 0
      %3757 = vmatprep.subr.mxu0 0.0
      %3758 = vmatpush1.xpose.msra.mxu0 %v3741
      %3759 = vmatprep.subr.mxu0 0.0
      %3760 = vmatpush1.xpose.msra.mxu0 %v3743
      %3761 = vmatprep.subr.mxu0 0.0
      %3762 = vmatpush1.xpose.msra.mxu0 %v3745
      %3763 = vmatprep.subr.mxu0 0.0
      %3764 = vmatpush1.xpose.msra.mxu0 %v3747
      %3765 = vmatprep.subr.mxu0 0.0
      %3766 = vmatpush1.xpose.msra.mxu0 %v3749
      %3767 = vmatprep.subr.mxu0 0.0
      %3768 = vmatpush1.xpose.msra.mxu0 %v3751
      %3769 = vmatprep.subr.mxu0 0.0
      %3770 = vmatpush1.xpose.msra.mxu0 %v3753
      %3771 = vmatprep.subr.mxu0 0.0
      %3772 = vmatpush1.xpose.msra.mxu0 %v3755
      %3773 = vmatprep.subr.mxu0 0.0
      %3774 = vmatpush1.xpose.msra.mxu0 0.0
      %3775 = vmatprep.subr.mxu0 0.0
      %3776 = vmatpush1.xpose.msra.mxu0 0.0
      %3777 = vmatprep.subr.mxu0 0.0
      %3778 = vmatpush1.xpose.msra.mxu0 0.0
      %3779 = vmatprep.subr.mxu0 0.0
      %3780 = vmatpush1.xpose.msra.mxu0 0.0
      %3781 = vmatprep.subr.mxu0 0.0
      %3782 = vmatpush1.xpose.msra.mxu0 0.0
      %3783 = vmatprep.subr.mxu0 0.0
      %3784 = vmatpush1.xpose.msra.mxu0 0.0
      %3785 = vmatprep.subr.mxu0 0.0
      %3786 = vmatpush1.xpose.msra.mxu0 0.0
      %3787 = vmatprep.subr.mxu0 0.0
      %3788 = vmatpush1.xpose.msra.mxu0 0.0
      %3789 = vmatprep.subr.mxu0 0.0
      %3790 = vmatpush1.xpose.msra.mxu0 0.0
      %3791 = vmatprep.subr.mxu0 0.0
      %3792 = vmatpush1.xpose.msra.mxu0 0.0
      %3793 = vmatprep.subr.mxu0 0.0
      %3794 = vmatpush1.xpose.msra.mxu0 0.0
      %3795 = vmatprep.subr.mxu0 0.0
      %3796 = vmatpush1.xpose.msra.mxu0 0.0
      %3797 = vmatprep.subr.mxu0 0.0
      %3798 = vmatpush1.xpose.msra.mxu0 0.0
      %3799 = vmatprep.subr.mxu0 0.0
      %3800 = vmatpush1.xpose.msra.mxu0 0.0
      %3801 = vmatprep.subr.mxu0 0.0
      %3802 = vmatpush1.xpose.msra.mxu0 0.0
      %3803 = vmatprep.subr.mxu0 0.0
      %3804 = vmatpush1.xpose.msra.mxu0 0.0
      %3805 = vmatprep.subr.mxu0 0.0
      %3806 = vmatpush1.xpose.msra.mxu0 0.0
      %3807 = vmatprep.subr.mxu0 0.0
      %3808 = vmatpush1.xpose.msra.mxu0 0.0
      %3809 = vmatprep.subr.mxu0 0.0
      %3810 = vmatpush1.xpose.msra.mxu0 0.0
      %3811 = vmatprep.subr.mxu0 0.0
      %3812 = vmatpush1.xpose.msra.mxu0 0.0
      %3813 = vmatprep.subr.mxu0 0.0
      %3814 = vmatpush1.xpose.msra.mxu0 0.0
      %3815 = vmatprep.subr.mxu0 0.0
      %3816 = vmatpush1.xpose.msra.mxu0 0.0
      %3817 = vmatprep.subr.mxu0 0.0
      %3818 = vmatpush1.xpose.msra.mxu0 0.0
      %3819 = vmatprep.subr.mxu0 0.0
      %3820 = vmatpush1.xpose.msra.mxu0 0.0
      %3821 = vmatprep.mubr.f32.mxu0 0.0
      %3822 = vmatmul.mubr.f32.gmra.mrb[0].mxu0 %v3725
      %v3823 = vpop.f32.mrb[0].mxu0
      %v3824 = vadd.f32 %v3283, %v3823
      %v3825 = vpop.f32.mrb[0].mxu0
      %3826 = vmatprep.mubr.f32.mxu0 0.0
      %3827 = vmatmul.mubr.f32.gmra.mrb[0].mxu0 %v3727
      %v3828 = vpop.f32.mrb[0].mxu0
      %v3829 = vadd.f32 %v3284, %v3828
      %v3830 = vpop.f32.mrb[0].mxu0
      %3831 = vmatprep.mubr.f32.mxu0 0.0
      %3832 = vmatmul.mubr.f32.gmra.mrb[0].mxu0 %v3729
      %v3833 = vpop.f32.mrb[0].mxu0
      %v3834 = vadd.f32 %v3285, %v3833
      %v3835 = vpop.f32.mrb[0].mxu0
      %3836 = vmatprep.mubr.f32.mxu0 0.0
      %3837 = vmatmul.mubr.f32.gmra.mrb[0].mxu0 %v3731
      %v3838 = vpop.f32.mrb[0].mxu0
      %v3839 = vadd.f32 %v3286, %v3838
      %v3840 = vpop.f32.mrb[0].mxu0
      %3841 = vmatprep.mubr.f32.mxu0 0.0
      %3842 = vmatmul.mubr.f32.gmra.mrb[0].mxu0 %v3733
      %v3843 = vpop.f32.mrb[0].mxu0
      %v3844 = vadd.f32 %v3287, %v3843
      %v3845 = vpop.f32.mrb[0].mxu0
      %3846 = vmatprep.mubr.f32.mxu0 0.0
      %3847 = vmatmul.mubr.f32.gmra.mrb[0].mxu0 %v3735
      %v3848 = vpop.f32.mrb[0].mxu0
      %v3849 = vadd.f32 %v3288, %v3848
      %v3850 = vpop.f32.mrb[0].mxu0
      %3851 = vmatprep.mubr.f32.mxu0 0.0
      %3852 = vmatmul.mubr.f32.gmra.mrb[0].mxu0 %v3737
      %v3853 = vpop.f32.mrb[0].mxu0
      %v3854 = vadd.f32 %v3289, %v3853
      %v3855 = vpop.f32.mrb[0].mxu0
      %3856 = vmatprep.mubr.f32.mxu0 0.0
      %3857 = vmatmul.mubr.f32.gmra.mrb[0].mxu0 %v3739
      %v3858 = vpop.f32.mrb[0].mxu0
      %v3859 = vadd.f32 %v3290, %v3858
      %v3860 = vpop.f32.mrb[0].mxu0
      %3861 = vdwg.mxu0
      %v3862 = vsel %vm820, %v3824, -inf
      %3863 = vmax.xlane.f32.xlu0 %v3862
      %v3864 = vpop.xlane.xlu0 %3863
      %v3865 = vsel %vm820, %v3829, -inf
      %3866 = vmax.xlane.f32.xlu0 %v3865
      %v3867 = vpop.xlane.xlu0 %3866
      %v3868 = vsel %vm820, %v3834, -inf
      %3869 = vmax.xlane.f32.xlu0 %v3868
      %v3870 = vpop.xlane.xlu0 %3869
      %v3871 = vsel %vm820, %v3839, -inf
      %3872 = vmax.xlane.f32.xlu0 %v3871
      %v3873 = vpop.xlane.xlu0 %3872
      %v3874 = vsel %vm820, %v3844, -inf
      %3875 = vmax.xlane.f32.xlu0 %v3874
      %v3876 = vpop.xlane.xlu0 %3875
      %v3877 = vsel %vm820, %v3849, -inf
      %3878 = vmax.xlane.f32.xlu0 %v3877
      %v3879 = vpop.xlane.xlu0 %3878
      %v3880 = vsel %vm820, %v3854, -inf
      %3881 = vmax.xlane.f32.xlu0 %v3880
      %v3882 = vpop.xlane.xlu0 %3881
      %v3883 = vsel %vm820, %v3859, -inf
      %3884 = vmax.xlane.f32.xlu0 %v3883
      %v3885 = vpop.xlane.xlu0 %3884
      %v3886 = vsub.f32 %v3824, %v3864
      %v3887 = vsub.f32 %v3829, %v3867
      %v3888 = vsub.f32 %v3834, %v3870
      %v3889 = vsub.f32 %v3839, %v3873
      %v3890 = vsub.f32 %v3844, %v3876
      %v3891 = vsub.f32 %v3849, %v3879
      %v3892 = vsub.f32 %v3854, %v3882
      %v3893 = vsub.f32 %v3859, %v3885
      %v3894 = vmul.f32 %v3886, 1.442695
      %v3895 = vpow.pop %v3894
      %v3896 = vmul.f32 %v3887, 1.442695
      %v3897 = vpow.pop %v3896
      %v3898 = vmul.f32 %v3888, 1.442695
      %v3899 = vpow.pop %v3898
      %v3900 = vmul.f32 %v3889, 1.442695
      %v3901 = vpow.pop %v3900
      %v3902 = vmul.f32 %v3890, 1.442695
      %v3903 = vpow.pop %v3902
      %v3904 = vmul.f32 %v3891, 1.442695
      %v3905 = vpow.pop %v3904
      %v3906 = vmul.f32 %v3892, 1.442695
      %v3907 = vpow.pop %v3906
      %v3908 = vmul.f32 %v3893, 1.442695
      %v3909 = vpow.pop %v3908
      %v3910 = vsel %vm820, %v3895, 0.0
      %3911 = vadd.xlane.f32.xlu0 %v3910
      %v3912 = vpop.xlane.xlu0 %3911
      %v3913 = vsel %vm820, %v3897, 0.0
      %3914 = vadd.xlane.f32.xlu0 %v3913
      %v3915 = vpop.xlane.xlu0 %3914
      %v3916 = vsel %vm820, %v3899, 0.0
      %3917 = vadd.xlane.f32.xlu0 %v3916
      %v3918 = vpop.xlane.xlu0 %3917
      %v3919 = vsel %vm820, %v3901, 0.0
      %3920 = vadd.xlane.f32.xlu0 %v3919
      %v3921 = vpop.xlane.xlu0 %3920
      %v3922 = vsel %vm820, %v3903, 0.0
      %3923 = vadd.xlane.f32.xlu0 %v3922
      %v3924 = vpop.xlane.xlu0 %3923
      %v3925 = vsel %vm820, %v3905, 0.0
      %3926 = vadd.xlane.f32.xlu0 %v3925
      %v3927 = vpop.xlane.xlu0 %3926
      %v3928 = vsel %vm820, %v3907, 0.0
      %3929 = vadd.xlane.f32.xlu0 %v3928
      %v3930 = vpop.xlane.xlu0 %3929
      %v3931 = vsel %vm820, %v3909, 0.0
      %3932 = vadd.xlane.f32.xlu0 %v3931
      %v3933 = vpop.xlane.xlu0 %3932
      %v3934 = vrcp.pop %v3912
      %v3935 = vrcp.pop %v3915
      %v3936 = vrcp.pop %v3918
      %v3937 = vrcp.pop %v3921
      %v3938 = vrcp.pop %v3924
      %v3939 = vrcp.pop %v3927
      %v3940 = vrcp.pop %v3930
      %v3941 = vrcp.pop %v3933
      %v3942 = vmul.f32 %v3895, %v3934
      %v3943 = vmul.f32 %v3897, %v3935
      %v3944 = vmul.f32 %v3899, %v3936
      %v3945 = vmul.f32 %v3901, %v3937
      %v3946 = vmul.f32 %v3903, %v3938
      %v3947 = vmul.f32 %v3905, %v3939
      %v3948 = vmul.f32 %v3907, %v3940
      %v3949 = vmul.f32 %v3909, %v3941
      %3950 = vrot.lane.b32.xlu0 %v580, 48
      %v3951 = vpop.permute.xlu0 %3950
      %3952 = vrot.lane.b32.xlu0 %v585, 48
      %v3953 = vpop.permute.xlu0 %3952
      %3954 = vrot.lane.b32.xlu0 %v590, 48
      %v3955 = vpop.permute.xlu0 %3954
      %3956 = vrot.lane.b32.xlu0 %v595, 48
      %v3957 = vpop.permute.xlu0 %3956
      %3958 = vrot.lane.b32.xlu0 %v600, 48
      %v3959 = vpop.permute.xlu0 %3958
      %3960 = vrot.lane.b32.xlu0 %v605, 48
      %v3961 = vpop.permute.xlu0 %3960
      %3962 = vrot.lane.b32.xlu0 %v610, 48
      %v3963 = vpop.permute.xlu0 %3962
      %3964 = vrot.lane.b32.xlu0 %v615, 48
      %v3965 = vpop.permute.xlu0 %3964
      %v3975 = vsel %vm820, %v3942, 0
      %v3978 = vsel %vm820, %v3943, 0
      %v3981 = vsel %vm820, %v3944, 0
      %v3984 = vsel %vm820, %v3945, 0
      %v3987 = vsel %vm820, %v3946, 0
      %v3990 = vsel %vm820, %v3947, 0
      %v3993 = vsel %vm820, %v3948, 0
      %v3996 = vsel %vm820, %v3949, 0
      %3998 = vmatprep.subr.mxu0 0.0
      %3999 = vmatpush1.msra.mxu0 %v3951
      %4000 = vmatprep.subr.mxu0 0.0
      %4001 = vmatpush1.msra.mxu0 %v3953
      %4002 = vmatprep.subr.mxu0 0.0
      %4003 = vmatpush1.msra.mxu0 %v3955
      %4004 = vmatprep.subr.mxu0 0.0
      %4005 = vmatpush1.msra.mxu0 %v3957
      %4006 = vmatprep.subr.mxu0 0.0
      %4007 = vmatpush1.msra.mxu0 %v3959
      %4008 = vmatprep.subr.mxu0 0.0
      %4009 = vmatpush1.msra.mxu0 %v3961
      %4010 = vmatprep.subr.mxu0 0.0
      %4011 = vmatpush1.msra.mxu0 %v3963
      %4012 = vmatprep.subr.mxu0 0.0
      %4013 = vmatpush1.msra.mxu0 %v3965
      %4014 = vmatprep.subr.mxu0 0.0
      %4015 = vmatpush1.msra.mxu0 0.0
      %4016 = vmatprep.subr.mxu0 0.0
      %4017 = vmatpush1.msra.mxu0 0.0
      %4018 = vmatprep.subr.mxu0 0.0
      %4019 = vmatpush1.msra.mxu0 0.0
      %4020 = vmatprep.subr.mxu0 0.0
      %4021 = vmatpush1.msra.mxu0 0.0
      %4022 = vmatprep.subr.mxu0 0.0
      %4023 = vmatpush1.msra.mxu0 0.0
      %4024 = vmatprep.subr.mxu0 0.0
      %4025 = vmatpush1.msra.mxu0 0.0
      %4026 = vmatprep.subr.mxu0 0.0
      %4027 = vmatpush1.msra.mxu0 0.0
      %4028 = vmatprep.subr.mxu0 0.0
      %4029 = vmatpush1.msra.mxu0 0.0
      %4030 = vmatprep.subr.mxu0 0.0
      %4031 = vmatpush1.msra.mxu0 0.0
      %4032 = vmatprep.subr.mxu0 0.0
      %4033 = vmatpush1.msra.mxu0 0.0
      %4034 = vmatprep.subr.mxu0 0.0
      %4035 = vmatpush1.msra.mxu0 0.0
      %4036 = vmatprep.subr.mxu0 0.0
      %4037 = vmatpush1.msra.mxu0 0.0
      %4038 = vmatprep.subr.mxu0 0.0
      %4039 = vmatpush1.msra.mxu0 0.0
      %4040 = vmatprep.subr.mxu0 0.0
      %4041 = vmatpush1.msra.mxu0 0.0
      %4042 = vmatprep.subr.mxu0 0.0
      %4043 = vmatpush1.msra.mxu0 0.0
      %4044 = vmatprep.subr.mxu0 0.0
      %4045 = vmatpush1.msra.mxu0 0.0
      %4046 = vmatprep.subr.mxu0 0.0
      %4047 = vmatpush1.msra.mxu0 0.0
      %4048 = vmatprep.subr.mxu0 0.0
      %4049 = vmatpush1.msra.mxu0 0.0
      %4050 = vmatprep.subr.mxu0 0.0
      %4051 = vmatpush1.msra.mxu0 0.0
      %4052 = vmatprep.subr.mxu0 0.0
      %4053 = vmatpush1.msra.mxu0 0.0
      %4054 = vmatprep.subr.mxu0 0.0
      %4055 = vmatpush1.msra.mxu0 0.0
      %4056 = vmatprep.subr.mxu0 0.0
      %4057 = vmatpush1.msra.mxu0 0.0
      %4058 = vmatprep.subr.mxu0 0.0
      %4059 = vmatpush1.msra.mxu0 0.0
      %4060 = vmatprep.subr.mxu0 0.0
      %4061 = vmatpush1.msra.mxu0 0.0
      %4062 = vmatprep.mubr.f32.mxu0 0.0
      %4063 = vmatmul.mubr.f32.gmra.mrb[0].mxu0 %v3975
      %v4064 = vpop.f32.mrb[0].mxu0
      %v4065 = vadd.f32 0.0, %v4064
      %v4066 = vpop.f32.mrb[0].mxu0
      %4067 = vmatprep.mubr.f32.mxu0 0.0
      %4068 = vmatmul.mubr.f32.gmra.mrb[0].mxu0 %v3978
      %v4069 = vpop.f32.mrb[0].mxu0
      %v4070 = vadd.f32 0.0, %v4069
      %v4071 = vpop.f32.mrb[0].mxu0
      %4072 = vmatprep.mubr.f32.mxu0 0.0
      %4073 = vmatmul.mubr.f32.gmra.mrb[0].mxu0 %v3981
      %v4074 = vpop.f32.mrb[0].mxu0
      %v4075 = vadd.f32 0.0, %v4074
      %v4076 = vpop.f32.mrb[0].mxu0
      %4077 = vmatprep.mubr.f32.mxu0 0.0
      %4078 = vmatmul.mubr.f32.gmra.mrb[0].mxu0 %v3984
      %v4079 = vpop.f32.mrb[0].mxu0
      %v4080 = vadd.f32 0.0, %v4079
      %v4081 = vpop.f32.mrb[0].mxu0
      %4082 = vmatprep.mubr.f32.mxu0 0.0
      %4083 = vmatmul.mubr.f32.gmra.mrb[0].mxu0 %v3987
      %v4084 = vpop.f32.mrb[0].mxu0
      %v4085 = vadd.f32 0.0, %v4084
      %v4086 = vpop.f32.mrb[0].mxu0
      %4087 = vmatprep.mubr.f32.mxu0 0.0
      %4088 = vmatmul.mubr.f32.gmra.mrb[0].mxu0 %v3990
      %v4089 = vpop.f32.mrb[0].mxu0
      %v4090 = vadd.f32 0.0, %v4089
      %v4091 = vpop.f32.mrb[0].mxu0
      %4092 = vmatprep.mubr.f32.mxu0 0.0
      %4093 = vmatmul.mubr.f32.gmra.mrb[0].mxu0 %v3993
      %v4094 = vpop.f32.mrb[0].mxu0
      %v4095 = vadd.f32 0.0, %v4094
      %v4096 = vpop.f32.mrb[0].mxu0
      %4097 = vmatprep.mubr.f32.mxu0 0.0
      %4098 = vmatmul.mubr.f32.gmra.mrb[0].mxu0 %v3996
      %v4099 = vpop.f32.mrb[0].mxu0
      %v4100 = vadd.f32 0.0, %v4099
      %v4101 = vpop.f32.mrb[0].mxu0
      %4102 = vdwg.mxu0
      %4111 = vrot.lane.b32.xlu0 %v4065, 16
      %v4112 = vpop.permute.xlu0 %4111
      %4113 = vrot.lane.b32.xlu0 %v4070, 16
      %v4114 = vpop.permute.xlu0 %4113
      %4115 = vrot.lane.b32.xlu0 %v4075, 16
      %v4116 = vpop.permute.xlu0 %4115
      %4117 = vrot.lane.b32.xlu0 %v4080, 16
      %v4118 = vpop.permute.xlu0 %4117
      %4119 = vrot.lane.b32.xlu0 %v4085, 16
      %v4120 = vpop.permute.xlu0 %4119
      %4121 = vrot.lane.b32.xlu0 %v4090, 16
      %v4122 = vpop.permute.xlu0 %4121
      %4123 = vrot.lane.b32.xlu0 %v4095, 16
      %v4124 = vpop.permute.xlu0 %4123
      %4125 = vrot.lane.b32.xlu0 %v4100, 16
      %v4126 = vpop.permute.xlu0 %4125
      %v4135 = vsel %vm682, %v3655, %v4112
      %v4136 = vsel %vm682, %v3660, %v4114
      %v4137 = vsel %vm682, %v3665, %v4116
      %v4138 = vsel %vm682, %v3670, %v4118
      %v4139 = vsel %vm682, %v3675, %v4120
      %v4140 = vsel %vm682, %v3680, %v4122
      %v4141 = vsel %vm682, %v3685, %v4124
      %v4142 = vsel %vm682, %v3690, %v4126
      %v4143 = vld [vmem:[%s4] sm:$0xff]
      %v4144 = vld [vmem:[%s4 + $0x8] sm:$0xff]
      %v4145 = vld [vmem:[%s4 + $0x10] sm:$0xff]
      %v4146 = vld [vmem:[%s4 + $0x18] sm:$0xff]
      %v4147 = vld [vmem:[%s5] sm:$0x1]
      %v4149 = vlaneseq
      %v4150 = vshrl.u32 %v4149, 7
      %v4151 = vsub.s32 0, %v4150
      %v4152 = vrot.slane %v4147, %v4151
      %v4155 = vsel %vm296, %v1504, 0
      %v4158 = vsel %vm296, %v1505, 0
      %v4161 = vsel %vm296, %v1506, 0
      %v4164 = vsel %vm296, %v1507, 0
      %v4167 = vsel %vm296, %v1508, 0
      %v4170 = vsel %vm296, %v1509, 0
      %v4173 = vsel %vm296, %v1510, 0
      %v4176 = vsel %vm296, %v1511, 0
      %v4179 = vsel %vm296, %v2381, 0
      %v4182 = vsel %vm296, %v2382, 0
      %v4185 = vsel %vm296, %v2383, 0
      %v4188 = vsel %vm296, %v2384, 0
      %v4191 = vsel %vm296, %v2385, 0
      %v4194 = vsel %vm296, %v2386, 0
      %v4197 = vsel %vm296, %v2387, 0
      %v4200 = vsel %vm296, %v2388, 0
      %v4203 = vsel %vm296, %v3258, 0
      %v4206 = vsel %vm296, %v3259, 0
      %v4209 = vsel %vm296, %v3260, 0
      %v4212 = vsel %vm296, %v3261, 0
      %v4215 = vsel %vm296, %v3262, 0
      %v4218 = vsel %vm296, %v3263, 0
      %v4221 = vsel %vm296, %v3264, 0
      %v4224 = vsel %vm296, %v3265, 0
      %v4227 = vsel %vm296, %v4135, 0
      %v4230 = vsel %vm296, %v4136, 0
      %v4233 = vsel %vm296, %v4137, 0
      %v4236 = vsel %vm296, %v4138, 0
      %v4239 = vsel %vm296, %v4139, 0
      %v4242 = vsel %vm296, %v4140, 0
      %v4245 = vsel %vm296, %v4141, 0
      %v4248 = vsel %vm296, %v4142, 0
      %4250 = vmatprep.subr.mxu0 0.0
      %4251 = vmatpush1.msra.mxu0 %v4143
      %4252 = vmatprep.subr.mxu0 0.0
      %4253 = vmatpush1.msra.mxu0 %v4144
      %4254 = vmatprep.subr.mxu0 0.0
      %4255 = vmatpush1.msra.mxu0 %v4145
      %4256 = vmatprep.subr.mxu0 0.0
      %4257 = vmatpush1.msra.mxu0 %v4146
      %4258 = vmatprep.subr.mxu0 0.0
      %4259 = vmatpush1.msra.mxu0 0.0
      %4260 = vmatprep.subr.mxu0 0.0
      %4261 = vmatpush1.msra.mxu0 0.0
      %4262 = vmatprep.subr.mxu0 0.0
      %4263 = vmatpush1.msra.mxu0 0.0
      %4264 = vmatprep.subr.mxu0 0.0
      %4265 = vmatpush1.msra.mxu0 0.0
      %4266 = vmatprep.subr.mxu0 0.0
      %4267 = vmatpush1.msra.mxu0 0.0
      %4268 = vmatprep.subr.mxu0 0.0
      %4269 = vmatpush1.msra.mxu0 0.0
      %4270 = vmatprep.subr.mxu0 0.0
      %4271 = vmatpush1.msra.mxu0 0.0
      %4272 = vmatprep.subr.mxu0 0.0
      %4273 = vmatpush1.msra.mxu0 0.0
      %4274 = vmatprep.subr.mxu0 0.0
      %4275 = vmatpush1.msra.mxu0 0.0
      %4276 = vmatprep.subr.mxu0 0.0
      %4277 = vmatpush1.msra.mxu0 0.0
      %4278 = vmatprep.subr.mxu0 0.0
      %4279 = vmatpush1.msra.mxu0 0.0
      %4280 = vmatprep.subr.mxu0 0.0
      %4281 = vmatpush1.msra.mxu0 0.0
      %4282 = vmatprep.subr.mxu0 0.0
      %4283 = vmatpush1.msra.mxu0 0.0
      %4284 = vmatprep.subr.mxu0 0.0
      %4285 = vmatpush1.msra.mxu0 0.0
      %4286 = vmatprep.subr.mxu0 0.0
      %4287 = vmatpush1.msra.mxu0 0.0
      %4288 = vmatprep.subr.mxu0 0.0
      %4289 = vmatpush1.msra.mxu0 0.0
      %4290 = vmatprep.subr.mxu0 0.0
      %4291 = vmatpush1.msra.mxu0 0.0
      %4292 = vmatprep.subr.mxu0 0.0
      %4293 = vmatpush1.msra.mxu0 0.0
      %4294 = vmatprep.subr.mxu0 0.0
      %4295 = vmatpush1.msra.mxu0 0.0
      %4296 = vmatprep.subr.mxu0 0.0
      %4297 = vmatpush1.msra.mxu0 0.0
      %4298 = vmatprep.subr.mxu0 0.0
      %4299 = vmatpush1.msra.mxu0 0.0
      %4300 = vmatprep.subr.mxu0 0.0
      %4301 = vmatpush1.msra.mxu0 0.0
      %4302 = vmatprep.subr.mxu0 0.0
      %4303 = vmatpush1.msra.mxu0 0.0
      %4304 = vmatprep.subr.mxu0 0.0
      %4305 = vmatpush1.msra.mxu0 0.0
      %4306 = vmatprep.subr.mxu0 0.0
      %4307 = vmatpush1.msra.mxu0 0.0
      %4308 = vmatprep.subr.mxu0 0.0
      %4309 = vmatpush1.msra.mxu0 0.0
      %4310 = vmatprep.subr.mxu0 0.0
      %4311 = vmatpush1.msra.mxu0 0.0
      %4312 = vmatprep.subr.mxu0 0.0
      %4313 = vmatpush1.msra.mxu0 0.0
      %4314 = vmatprep.mubr.f32.mxu0 0.0
      %4315 = vmatmul.mubr.f32.gmra.mrb[0].mxu0 %v4155
      %v4316 = vpop.f32.mrb[0].mxu0
      %v4317 = vadd.f32 %v4152, %v4316
      %v4318 = vpop.f32.mrb[0].mxu0
      %4319 = vmatprep.mubr.f32.mxu0 0.0
      %4320 = vmatmul.mubr.f32.gmra.mrb[0].mxu0 %v4158
      %v4321 = vpop.f32.mrb[0].mxu0
      %v4322 = vadd.f32 %v4152, %v4321
      %v4323 = vpop.f32.mrb[0].mxu0
      %4324 = vmatprep.mubr.f32.mxu0 0.0
      %4325 = vmatmul.mubr.f32.gmra.mrb[0].mxu0 %v4161
      %v4326 = vpop.f32.mrb[0].mxu0
      %v4327 = vadd.f32 %v4152, %v4326
      %v4328 = vpop.f32.mrb[0].mxu0
      %4329 = vmatprep.mubr.f32.mxu0 0.0
      %4330 = vmatmul.mubr.f32.gmra.mrb[0].mxu0 %v4164
      %v4331 = vpop.f32.mrb[0].mxu0
      %v4332 = vadd.f32 %v4152, %v4331
      %v4333 = vpop.f32.mrb[0].mxu0
      %4334 = vmatprep.mubr.f32.mxu0 0.0
      %4335 = vmatmul.mubr.f32.gmra.mrb[0].mxu0 %v4167
      %v4336 = vpop.f32.mrb[0].mxu0
      %v4337 = vadd.f32 %v4152, %v4336
      %v4338 = vpop.f32.mrb[0].mxu0
      %4339 = vmatprep.mubr.f32.mxu0 0.0
      %4340 = vmatmul.mubr.f32.gmra.mrb[0].mxu0 %v4170
      %v4341 = vpop.f32.mrb[0].mxu0
      %v4342 = vadd.f32 %v4152, %v4341
      %v4343 = vpop.f32.mrb[0].mxu0
      %4344 = vmatprep.mubr.f32.mxu0 0.0
      %4345 = vmatmul.mubr.f32.gmra.mrb[0].mxu0 %v4173
      %v4346 = vpop.f32.mrb[0].mxu0
      %v4347 = vadd.f32 %v4152, %v4346
      %v4348 = vpop.f32.mrb[0].mxu0
      %4349 = vmatprep.mubr.f32.mxu0 0.0
      %4350 = vmatmul.mubr.f32.gmra.mrb[0].mxu0 %v4176
      %v4351 = vpop.f32.mrb[0].mxu0
      %v4352 = vadd.f32 %v4152, %v4351
      %v4353 = vpop.f32.mrb[0].mxu0
      %4354 = vmatprep.mubr.f32.mxu0 0.0
      %4355 = vmatmul.mubr.f32.gmra.mrb[0].mxu0 %v4179
      %v4356 = vpop.f32.mrb[0].mxu0
      %v4357 = vadd.f32 %v4152, %v4356
      %v4358 = vpop.f32.mrb[0].mxu0
      %4359 = vmatprep.mubr.f32.mxu0 0.0
      %4360 = vmatmul.mubr.f32.gmra.mrb[0].mxu0 %v4182
      %v4361 = vpop.f32.mrb[0].mxu0
      %v4362 = vadd.f32 %v4152, %v4361
      %v4363 = vpop.f32.mrb[0].mxu0
      %4364 = vmatprep.mubr.f32.mxu0 0.0
      %4365 = vmatmul.mubr.f32.gmra.mrb[0].mxu0 %v4185
      %v4366 = vpop.f32.mrb[0].mxu0
      %v4367 = vadd.f32 %v4152, %v4366
      %v4368 = vpop.f32.mrb[0].mxu0
      %4369 = vmatprep.mubr.f32.mxu0 0.0
      %4370 = vmatmul.mubr.f32.gmra.mrb[0].mxu0 %v4188
      %v4371 = vpop.f32.mrb[0].mxu0
      %v4372 = vadd.f32 %v4152, %v4371
      %v4373 = vpop.f32.mrb[0].mxu0
      %4374 = vmatprep.mubr.f32.mxu0 0.0
      %4375 = vmatmul.mubr.f32.gmra.mrb[0].mxu0 %v4191
      %v4376 = vpop.f32.mrb[0].mxu0
      %v4377 = vadd.f32 %v4152, %v4376
      %v4378 = vpop.f32.mrb[0].mxu0
      %4379 = vmatprep.mubr.f32.mxu0 0.0
      %4380 = vmatmul.mubr.f32.gmra.mrb[0].mxu0 %v4194
      %v4381 = vpop.f32.mrb[0].mxu0
      %v4382 = vadd.f32 %v4152, %v4381
      %v4383 = vpop.f32.mrb[0].mxu0
      %4384 = vmatprep.mubr.f32.mxu0 0.0
      %4385 = vmatmul.mubr.f32.gmra.mrb[0].mxu0 %v4197
      %v4386 = vpop.f32.mrb[0].mxu0
      %v4387 = vadd.f32 %v4152, %v4386
      %v4388 = vpop.f32.mrb[0].mxu0
      %4389 = vmatprep.mubr.f32.mxu0 0.0
      %4390 = vmatmul.mubr.f32.gmra.mrb[0].mxu0 %v4200
      %v4391 = vpop.f32.mrb[0].mxu0
      %v4392 = vadd.f32 %v4152, %v4391
      %v4393 = vpop.f32.mrb[0].mxu0
      %4394 = vmatprep.mubr.f32.mxu0 0.0
      %4395 = vmatmul.mubr.f32.gmra.mrb[0].mxu0 %v4203
      %v4396 = vpop.f32.mrb[0].mxu0
      %v4397 = vadd.f32 %v4152, %v4396
      %v4398 = vpop.f32.mrb[0].mxu0
      %4399 = vmatprep.mubr.f32.mxu0 0.0
      %4400 = vmatmul.mubr.f32.gmra.mrb[0].mxu0 %v4206
      %v4401 = vpop.f32.mrb[0].mxu0
      %v4402 = vadd.f32 %v4152, %v4401
      %v4403 = vpop.f32.mrb[0].mxu0
      %4404 = vmatprep.mubr.f32.mxu0 0.0
      %4405 = vmatmul.mubr.f32.gmra.mrb[0].mxu0 %v4209
      %v4406 = vpop.f32.mrb[0].mxu0
      %v4407 = vadd.f32 %v4152, %v4406
      %v4408 = vpop.f32.mrb[0].mxu0
      %4409 = vmatprep.mubr.f32.mxu0 0.0
      %4410 = vmatmul.mubr.f32.gmra.mrb[0].mxu0 %v4212
      %v4411 = vpop.f32.mrb[0].mxu0
      %v4412 = vadd.f32 %v4152, %v4411
      %v4413 = vpop.f32.mrb[0].mxu0
      %4414 = vmatprep.mubr.f32.mxu0 0.0
      %4415 = vmatmul.mubr.f32.gmra.mrb[0].mxu0 %v4215
      %v4416 = vpop.f32.mrb[0].mxu0
      %v4417 = vadd.f32 %v4152, %v4416
      %v4418 = vpop.f32.mrb[0].mxu0
      %4419 = vmatprep.mubr.f32.mxu0 0.0
      %4420 = vmatmul.mubr.f32.gmra.mrb[0].mxu0 %v4218
      %v4421 = vpop.f32.mrb[0].mxu0
      %v4422 = vadd.f32 %v4152, %v4421
      %v4423 = vpop.f32.mrb[0].mxu0
      %4424 = vmatprep.mubr.f32.mxu0 0.0
      %4425 = vmatmul.mubr.f32.gmra.mrb[0].mxu0 %v4221
      %v4426 = vpop.f32.mrb[0].mxu0
      %v4427 = vadd.f32 %v4152, %v4426
      %v4428 = vpop.f32.mrb[0].mxu0
      %4429 = vmatprep.mubr.f32.mxu0 0.0
      %4430 = vmatmul.mubr.f32.gmra.mrb[0].mxu0 %v4224
      %v4431 = vpop.f32.mrb[0].mxu0
      %v4432 = vadd.f32 %v4152, %v4431
      %v4433 = vpop.f32.mrb[0].mxu0
      %4434 = vmatprep.mubr.f32.mxu0 0.0
      %4435 = vmatmul.mubr.f32.gmra.mrb[0].mxu0 %v4227
      %v4436 = vpop.f32.mrb[0].mxu0
      %v4437 = vadd.f32 %v4152, %v4436
      %v4438 = vpop.f32.mrb[0].mxu0
      %4439 = vmatprep.mubr.f32.mxu0 0.0
      %4440 = vmatmul.mubr.f32.gmra.mrb[0].mxu0 %v4230
      %v4441 = vpop.f32.mrb[0].mxu0
      %v4442 = vadd.f32 %v4152, %v4441
      %v4443 = vpop.f32.mrb[0].mxu0
      %4444 = vmatprep.mubr.f32.mxu0 0.0
      %4445 = vmatmul.mubr.f32.gmra.mrb[0].mxu0 %v4233
      %v4446 = vpop.f32.mrb[0].mxu0
      %v4447 = vadd.f32 %v4152, %v4446
      %v4448 = vpop.f32.mrb[0].mxu0
      %4449 = vmatprep.mubr.f32.mxu0 0.0
      %4450 = vmatmul.mubr.f32.gmra.mrb[0].mxu0 %v4236
      %v4451 = vpop.f32.mrb[0].mxu0
      %v4452 = vadd.f32 %v4152, %v4451
      %v4453 = vpop.f32.mrb[0].mxu0
      %4454 = vmatprep.mubr.f32.mxu0 0.0
      %4455 = vmatmul.mubr.f32.gmra.mrb[0].mxu0 %v4239
      %v4456 = vpop.f32.mrb[0].mxu0
      %v4457 = vadd.f32 %v4152, %v4456
      %v4458 = vpop.f32.mrb[0].mxu0
      %4459 = vmatprep.mubr.f32.mxu0 0.0
      %4460 = vmatmul.mubr.f32.gmra.mrb[0].mxu0 %v4242
      %v4461 = vpop.f32.mrb[0].mxu0
      %v4462 = vadd.f32 %v4152, %v4461
      %v4463 = vpop.f32.mrb[0].mxu0
      %4464 = vmatprep.mubr.f32.mxu0 0.0
      %4465 = vmatmul.mubr.f32.gmra.mrb[0].mxu0 %v4245
      %v4466 = vpop.f32.mrb[0].mxu0
      %v4467 = vadd.f32 %v4152, %v4466
      %v4468 = vpop.f32.mrb[0].mxu0
      %4469 = vmatprep.mubr.f32.mxu0 0.0
      %4470 = vmatmul.mubr.f32.gmra.mrb[0].mxu0 %v4248
      %v4471 = vpop.f32.mrb[0].mxu0
      %v4472 = vadd.f32 %v4152, %v4471
      %v4473 = vpop.f32.mrb[0].mxu0
      %4474 = vdwg.mxu0
      %4475 = vst.msk [vmem:[%s258] sm:$0xff] %vm296, %v4317
      %4476 = vst.msk [vmem:[%s258 + $0x8] sm:$0xff] %vm296, %v4322
      %4477 = vst.msk [vmem:[%s258 + $0x10] sm:$0xff] %vm296, %v4327
      %4478 = vst.msk [vmem:[%s258 + $0x18] sm:$0xff] %vm296, %v4332
      %4479 = vst.msk [vmem:[%s258 + $0x20] sm:$0xff] %vm296, %v4337
      %4480 = vst.msk [vmem:[%s258 + $0x28] sm:$0xff] %vm296, %v4342
      %4481 = vst.msk [vmem:[%s258 + $0x30] sm:$0xff] %vm296, %v4347
      %4482 = vst.msk [vmem:[%s258 + $0x38] sm:$0xff] %vm296, %v4352
      %4483 = vst.msk [vmem:[%s258 + $0x40] sm:$0xff] %vm296, %v4357
      %4484 = vst.msk [vmem:[%s258 + $0x48] sm:$0xff] %vm296, %v4362
      %4485 = vst.msk [vmem:[%s258 + $0x50] sm:$0xff] %vm296, %v4367
      %4486 = vst.msk [vmem:[%s258 + $0x58] sm:$0xff] %vm296, %v4372
      %4487 = vst.msk [vmem:[%s258 + $0x60] sm:$0xff] %vm296, %v4377
      %4488 = vst.msk [vmem:[%s258 + $0x68] sm:$0xff] %vm296, %v4382
      %4489 = vst.msk [vmem:[%s258 + $0x70] sm:$0xff] %vm296, %v4387
      %4490 = vst.msk [vmem:[%s258 + $0x78] sm:$0xff] %vm296, %v4392
      %4491 = vst.msk [vmem:[%s258 + $0x80] sm:$0xff] %vm296, %v4397
      %4492 = vst.msk [vmem:[%s258 + $0x88] sm:$0xff] %vm296, %v4402
      %4493 = vst.msk [vmem:[%s258 + $0x90] sm:$0xff] %vm296, %v4407
      %4494 = vst.msk [vmem:[%s258 + $0x98] sm:$0xff] %vm296, %v4412
      %4495 = vst.msk [vmem:[%s258 + $0xa0] sm:$0xff] %vm296, %v4417
      %4496 = vst.msk [vmem:[%s258 + $0xa8] sm:$0xff] %vm296, %v4422
      %4497 = vst.msk [vmem:[%s258 + $0xb0] sm:$0xff] %vm296, %v4427
      %4498 = vst.msk [vmem:[%s258 + $0xb8] sm:$0xff] %vm296, %v4432
      %4499 = vst.msk [vmem:[%s258 + $0xc0] sm:$0xff] %vm296, %v4437
      %4500 = vst.msk [vmem:[%s258 + $0xc8] sm:$0xff] %vm296, %v4442
      %4501 = vst.msk [vmem:[%s258 + $0xd0] sm:$0xff] %vm296, %v4447
      %4502 = vst.msk [vmem:[%s258 + $0xd8] sm:$0xff] %vm296, %v4452
      %4503 = vst.msk [vmem:[%s258 + $0xe0] sm:$0xff] %vm296, %v4457
      %4504 = vst.msk [vmem:[%s258 + $0xe8] sm:$0xff] %vm296, %v4462
      %4505 = vst.msk [vmem:[%s258 + $0xf0] sm:$0xff] %vm296, %v4467
      %4506 = vst.msk [vmem:[%s258 + $0xf8] sm:$0xff] %vm296, %v4472
      %s4507 = smul.u32 4, %s17
      %p4508 = scmp.lt.s32.totalorder %s4507, 7
      %s4509 = scalar_select %p4508, %s4507, 7
      %s4510 = smul.addr %s4509, 8
      %s4511 = smul.addr %s4510, 8
      %s4512 = scalar_lea.vmem %s6, %s4511
      // Predicated region
      $region45: #{tpu_custom_call.1} parent=43 // pred_check
        %p4513 = pneg %p166
      $region46: #{tpu_custom_call.1} parent=43 // pred_check_branch
        %4515 = sbr.rel (%p4513) target = $region48
      $region47: #{tpu_custom_call.1} parent=43 // pred_region
        %s4516 = smul.u32 4, %s17
      $region48: #{tpu_custom_call.1} parent=43 // pred_fallthru
        _
    $region44: #{tpu_custom_call.1} parent=5 // pred_fallthru
      _
    %p4517 = scmp.le.s32.totalorder 2, %s12
    // Predicated region
    $region49: #{tpu_custom_call.1} parent=5 // pred_check
      %p4518 = pneg %p4517
    $region50: #{tpu_custom_call.1} parent=5 // pred_check_branch
      %4520 = sbr.rel (%p4518) target = $region52
    $region51: #{tpu_custom_call.1} parent=5 // pred_region
      %s4521 = ssub.s32 %s12, 2
      // Predicated region
      $region53: #{tpu_custom_call.1} parent=51 // pred_check
        %p4522 = pneg %p172
      $region54: #{tpu_custom_call.1} parent=51 // pred_check_branch
        %4524 = sbr.rel (%p4522) target = $region56
      $region55: #{tpu_custom_call.1} parent=51 // pred_region
        %s4525 = smul.u32 4, %s18
        %p4526 = scmp.lt.s32.totalorder %s4525, 7
        %s4527 = scalar_select %p4526, %s4525, 7
        %s4528 = smul.addr %s4527, 8
        %s4529 = smul.addr %s4528, 8
        %s4530 = scalar_lea.vmem %s6, %s4529
      $region56: #{tpu_custom_call.1} parent=51 // pred_fallthru
        _
    $region52: #{tpu_custom_call.1} parent=5 // pred_fallthru
      _
  $region6: #{tpu_custom_call.1} parent=0 // loop_footer
    %s16 = sadd.s32 1, %s12
  $region7: #{tpu_custom_call.1} parent=0 // loop_footer_branch
    %11 = sbr.rel target = $region3
  $region8: #{tpu_custom_call.1} parent=0 // loop_exit
    _

</llo_original>
